<compile_context>
chip_gen: v7x
topology: tpu7x:2x2x1
jax: 0.10.0
libtpu: 0.0.40
codegen_flags: <defaults>
</compile_context>

<pallas_src>
import functools
import math

import jax
import jax.numpy as jnp
from jax import lax
from jax.experimental import pallas as pl
from jax.experimental.pallas import tpu as pltpu

_LANE = 128
_SUBLANE = 8
_ROW_TILE = 512          # in-kernel row block (bounds one-hot intermediates)


def _round_up(x, m):
    return ((x + m - 1) // m) * m


def _sigmoid(x):
    # single-transcendental sigmoid: one EUP tanh instead of exp + divide
    return 0.5 * (1.0 + jnp.tanh(0.5 * x))


def _erf(x):
    # Abramowitz & Stegun 7.1.26, |err| <= 1.5e-7 (exact-GELU parity with
    # torch nn.GELU without relying on a lax.erf lowering)
    p = 0.3275911
    a1, a2, a3, a4, a5 = (0.254829592, -0.284496736, 1.421413741,
                          -1.453152027, 1.061405429)
    ax = jnp.abs(x)
    t = 1.0 / (1.0 + p * ax)
    poly = ((((a5 * t + a4) * t + a3) * t + a2) * t + a1) * t
    y = 1.0 - poly * jnp.exp(-ax * ax)
    return jnp.where(x >= 0.0, y, -y)


# ---------------------------------------------------------------------------
# Fused kernel: full DGCNGRU depth loop + node update.
#   per depth step d (h kept in VMEM ping-pong scratch):
#     h_nei_j = onehot(bgraph[:,j]) @ h          (gather-as-matmul, on-chip)
#     sum_h   = sum_j h_nei_j
#     z       = sigmoid(x@Wz_x + b_z + sum_h@Wz_h)
#     r_j     = sigmoid(x@Wr_x + b_Ur + h_nei_j@U_r)
#     sum_g   = sum_j r_j * h_nei_j
#     pre_h   = tanh(x@Wh_x + b_h + sum_g@Wh_h)
#     h       = ((1-z)*sum_h + z*pre_h), row 0 zeroed
#   node update:
#     nei = (sum_j onehot(agraph[:,j])) @ h
#     out = GELU(fnode@Wo_n + nei@Wo_h + b_o) * mask
# ---------------------------------------------------------------------------
def _dgcn_fused_kernel(depth,
                       fmess_ref, fnode_ref, bgraph_ref, agraph_ref, mask_ref,
                       wx_ref, b3_ref, wzh_ref, whh_ref, ur_ref,
                       won_ref, woh_ref, wob_ref,
                       nodes_ref, hout_ref,
                       xw_scr, hpp_scr):
    f32 = jnp.float32
    R, Hp = hout_ref.shape                  # padded bonds, padded hidden
    A = nodes_ref.shape[0]                  # padded atoms
    max_nb = bgraph_ref.shape[1]
    tb = min(_ROW_TILE, R)
    ta = min(_ROW_TILE, A)

    # depth-invariant x-side matmul, hoisted out of the message-passing loop:
    #   xw[:, 0:H]   = x@Wz_x + b_z
    #   xw[:, H:2H]  = x@Wr_x + b_Ur   (U_r bias folded into the r gate)
    #   xw[:, 2H:3H] = x@Wh_x + b_h
    xw_scr[...] = (jnp.dot(fmess_ref[...], wx_ref[...],
                           preferred_element_type=f32) + b3_ref[...])

    if depth == 0:
        hout_ref[...] = jnp.zeros((R, Hp), f32)

    for d in range(depth):                  # static unroll (depth is small)
        last = (d == depth - 1)
        # previous step's full h (VMEM resident); unused at step 0 (h == 0)
        h_old = None if d == 0 else hpp_scr[(d - 1) % 2]
        for t0 in range(0, R, tb):
            T = min(tb, R - t0)
            zx = xw_scr[t0:t0 + T, 0:Hp]
            hx = xw_scr[t0:t0 + T, 2 * Hp:3 * Hp]
            if d == 0:
                # first step: h == 0 -> sum_h == sum_gated == 0 exactly
                z = _sigmoid(zx)
                pre_h = jnp.tanh(hx)
                new_h = z * pre_h
            else:
                r1 = xw_scr[t0:t0 + T, Hp:2 * Hp]
                bgt = bgraph_ref[t0:t0 + T, :]                    # (T, max_nb)
                cols = lax.broadcasted_iota(jnp.int32, (T, R), 1)
                sum_h = jnp.zeros((T, Hp), f32)
                sum_g = jnp.zeros((T, Hp), f32)
                for j in range(max_nb):                           # small, static
                    onehot = (cols == bgt[:, j:j + 1]).astype(f32)
                    h_j = jnp.dot(onehot, h_old, preferred_element_type=f32)
                    r_j = _sigmoid(r1 + jnp.dot(h_j, ur_ref[...],
                                                preferred_element_type=f32))
                    sum_h = sum_h + h_j
                    sum_g = sum_g + r_j * h_j
                z = _sigmoid(zx + jnp.dot(sum_h, wzh_ref[...],
                                          preferred_element_type=f32))
                pre_h = jnp.tanh(hx + jnp.dot(sum_g, whh_ref[...],
                                              preferred_element_type=f32))
                new_h = (1.0 - z) * sum_h + z * pre_h
            if last:
                hout_ref[t0:t0 + T, :] = new_h
            else:
                hpp_scr[d % 2, t0:t0 + T, :] = new_h
        # message row 0 is always masked (DGCNGRU zeroes it every step):
        # single (1, Hp) store instead of a full-tile iota multiply.
        if last:
            hout_ref[0:1, :] = jnp.zeros((1, Hp), f32)
        else:
            hpp_scr[d % 2, 0:1, :] = jnp.zeros((1, Hp), f32)

    # ---- node update, gathering straight from the in-VMEM final h ----------
    h_fin = hout_ref[...]
    for t0 in range(0, A, ta):
        T = min(ta, A - t0)
        agt = agraph_ref[t0:t0 + T, :]                            # (T, max_nb)
        cols = lax.broadcasted_iota(jnp.int32, (T, R), 1)
        cnt = jnp.zeros((T, R), f32)
        for j in range(max_nb):
            cnt = cnt + (cols == agt[:, j:j + 1]).astype(f32)
        nei = jnp.dot(cnt, h_fin, preferred_element_type=f32)
        pre = (jnp.dot(fnode_ref[t0:t0 + T, :], won_ref[...],
                       preferred_element_type=f32)
               + jnp.dot(nei, woh_ref[...], preferred_element_type=f32)
               + wob_ref[...])
        gelu = 0.5 * pre * (1.0 + _erf(pre * (1.0 / math.sqrt(2.0))))
        nodes_ref[t0:t0 + T, :] = gelu * mask_ref[t0:t0 + T, :]


_CPARAMS = pltpu.CompilerParams(vmem_limit_bytes=48 * 1024 * 1024)


# ---------------------------------------------------------------------------
# Parameter packing: pad feature dims to 128 lanes, concat x-side gate weights
# (U_r bias folded into the r-gate bias).  Zero padding is semantics-
# preserving: padded weight rows/cols are zero, so padded h lanes stay zero.
# ---------------------------------------------------------------------------
def _pack_params(params, input_size, h_size, in_p, h_p, nf_p):
    f32 = jnp.float32

    def pad2(w, r, c):
        return jnp.zeros((r, c), f32).at[:w.shape[0], :w.shape[1]].set(w)

    wx = jnp.zeros((in_p, 3 * h_p), f32)
    wx = wx.at[:input_size, 0:h_size].set(params["wz_x"])
    wx = wx.at[:input_size, h_p:h_p + h_size].set(params["wr_x"])
    wx = wx.at[:input_size, 2 * h_p:2 * h_p + h_size].set(params["wh_x"])

    b3 = jnp.zeros((1, 3 * h_p), f32)
    b3 = b3.at[:, 0:h_size].set(params["wz_b"])
    b3 = b3.at[:, h_p:h_p + h_size].set(params["ur_b"])   # U_r bias -> r gate
    b3 = b3.at[:, 2 * h_p:2 * h_p + h_size].set(params["wh_b"])

    return {
        "wx": wx, "b3": b3,
        "wz_h": pad2(params["wz_h"], h_p, h_p),
        "wh_h": pad2(params["wh_h"], h_p, h_p),
        "ur_w": pad2(params["ur_w"], h_p, h_p),
        "wo_n": pad2(params["wo_n"], nf_p, h_p),
        "wo_h": pad2(params["wo_h"], h_p, h_p),
        "wo_b": pad2(params["wo_b"], 1, h_p),
    }


def dgcn_encoder_forward(params, fnode, fmess, agraph, bgraph, mask, depth):
    """Pallas implementation of DGCNEncoder.forward -> (node_hiddens*mask, h)."""
    n_atoms, node_fdim = fnode.shape
    n_bonds, input_size = fmess.shape
    max_nb = bgraph.shape[1]
    h_size = params["wz_h"].shape[0]

    h_p = _round_up(h_size, _LANE)
    in_p = _round_up(input_size, _LANE)
    nf_p = _round_up(node_fdim, _LANE)
    r_p = _round_up(n_bonds, _SUBLANE)
    a_p = _round_up(n_atoms, _SUBLANE)

    pk = _pack_params(params, input_size, h_size, in_p, h_p, nf_p)

    f32 = jnp.float32
    fmess_p = jnp.zeros((r_p, in_p), f32).at[:n_bonds, :input_size].set(fmess)
    fnode_p = jnp.zeros((a_p, nf_p), f32).at[:n_atoms, :node_fdim].set(fnode)
    bgraph_p = jnp.zeros((r_p, max_nb), jnp.int32
                         ).at[:n_bonds].set(bgraph.astype(jnp.int32))
    agraph_p = jnp.zeros((a_p, max_nb), jnp.int32
                         ).at[:n_atoms].set(agraph.astype(jnp.int32))
    if mask is None:
        mask = jnp.ones((n_atoms, 1), f32).at[0, 0].set(0.0)
    mask_p = jnp.zeros((a_p, 1), f32).at[:n_atoms].set(mask.astype(f32))

    # rough scheduler hint (MXU flops dominated by on-chip one-hot gathers)
    gsteps = max(depth - 1, 0)
    flops = int(2 * r_p * in_p * 3 * h_p
                + gsteps * max_nb * (2 * r_p * r_p * h_p + 2 * r_p * h_p * h_p)
                + depth * 2 * (2 * r_p * h_p * h_p)
                + 2 * a_p * r_p * h_p
                + 2 * a_p * (nf_p + h_p) * h_p)
    transcendentals = int(depth * r_p * h_p * (2 + max_nb) + 2 * a_p * h_p)
    bytes_accessed = int(4 * (r_p * in_p + a_p * nf_p + r_p * max_nb
                              + a_p * max_nb + a_p
                              + in_p * 3 * h_p + 4 * h_p * h_p + nf_p * h_p
                              + a_p * h_p + r_p * h_p))

    nodes_p, h_out = pl.pallas_call(
        functools.partial(_dgcn_fused_kernel, depth),
        out_shape=(jax.ShapeDtypeStruct((a_p, h_p), f32),
                   jax.ShapeDtypeStruct((r_p, h_p), f32)),
        scratch_shapes=[
            pltpu.VMEM((r_p, 3 * h_p), f32),     # hoisted x-side gate matmul
            pltpu.VMEM((2, r_p, h_p), f32),      # VMEM-resident h (ping-pong)
        ],
        compiler_params=_CPARAMS,
        cost_estimate=pl.CostEstimate(flops=flops,
                                      transcendentals=transcendentals,
                                      bytes_accessed=bytes_accessed),
    )(fmess_p, fnode_p, bgraph_p, agraph_p, mask_p,
      pk["wx"], pk["b3"], pk["wz_h"], pk["wh_h"], pk["ur_w"],
      pk["wo_n"], pk["wo_h"], pk["wo_b"])

    return nodes_p[:n_atoms, :h_size], h_out[:n_bonds, :h_size]


# ---------------------------------------------------------------------------
# Deterministic parameter init (PyTorch-Linear-style U(-1/sqrt(fan_in), ...)),
# weights stored pre-transposed as (in_features, out_features).
# ---------------------------------------------------------------------------
def init_params(key, input_size, h_size, node_fdim):
    def linear(key, fan_in, fan_out, bias=True):
        bound = 1.0 / math.sqrt(fan_in)
        kw, kb = jax.random.split(key)
        w = jax.random.uniform(kw, (fan_in, fan_out), jnp.float32, -bound, bound)
        b = (jax.random.uniform(kb, (1, fan_out), jnp.float32, -bound, bound)
             if bias else None)
        return w, b

    keys = jax.random.split(key, 5)
    wz, wz_b = linear(keys[0], input_size + h_size, h_size)      # W_z
    wr, _ = linear(keys[1], input_size, h_size, bias=False)      # W_r
    ur, ur_b = linear(keys[2], h_size, h_size)                   # U_r
    wh, wh_b = linear(keys[3], input_size + h_size, h_size)      # W_h
    wo, wo_b = linear(keys[4], node_fdim + h_size, h_size)       # W_o

    return {
        "wz_x": wz[:input_size], "wz_h": wz[input_size:], "wz_b": wz_b,
        "wr_x": wr,
        "ur_w": ur, "ur_b": ur_b,
        "wh_x": wh[:input_size], "wh_h": wh[input_size:], "wh_b": wh_b,
        "wo_n": wo[:node_fdim], "wo_h": wo[node_fdim:], "wo_b": wo_b,
    }


# ---------------------------------------------------------------------------
# Plain-JAX reference (mirror of the PyTorch module) for a sanity check.
# ---------------------------------------------------------------------------
def _reference_forward(params, fnode, fmess, agraph, bgraph, mask, depth):
    hp = jax.lax.Precision.HIGHEST
    mm = functools.partial(jnp.matmul, precision=hp)
    h_size = params["wz_h"].shape[0]
    n_bonds = fmess.shape[0]
    msk = jnp.ones((n_bonds, 1), jnp.float32).at[0, 0].set(0.0)
    h = jnp.zeros((n_bonds, h_size), jnp.float32)
    for _ in range(depth):
        h_nei = h[bgraph]                                  # (n_bonds, max_nb, h)
        sum_h = h_nei.sum(axis=1)
        z = jax.nn.sigmoid(mm(fmess, params["wz_x"]) + mm(sum_h, params["wz_h"])
                           + params["wz_b"])
        r1 = mm(fmess, params["wr_x"])
        r2 = mm(h_nei, params["ur_w"]) + params["ur_b"]
        r = jax.nn.sigmoid(r1[:, None, :] + r2)
        sum_g = (r * h_nei).sum(axis=1)
        pre_h = jnp.tanh(mm(fmess, params["wh_x"]) + mm(sum_g, params["wh_h"])
                         + params["wh_b"])
        h = ((1.0 - z) * sum_h + z * pre_h) * msk
    nei = h[agraph].sum(axis=1)
    pre = mm(fnode, params["wo_n"]) + mm(nei, params["wo_h"]) + params["wo_b"]
    gelu = 0.5 * pre * (1.0 + jax.scipy.special.erf(pre / math.sqrt(2.0)))
    if mask is None:
        mask = jnp.ones((fnode.shape[0], 1), jnp.float32).at[0, 0].set(0.0)
    return gelu * mask, h


if __name__ == "__main__":
    # Small, module-consistent shapes.
    enc_hidden_size = 32      # h_size
    enc_num_layers = 3        # GRU depth
    input_size = 16           # message feature dim
    node_fdim = 24            # node feature dim
    n_atoms, n_bonds, max_nb = 8, 16, 4

    key = jax.random.PRNGKey(0)
    k_par, k_fn, k_fm, k_ag, k_bg = jax.random.split(key, 5)

    params = init_params(k_par, input_size, enc_hidden_size, node_fdim)

    fnode = jax.random.normal(k_fn, (n_atoms, node_fdim), jnp.float32)
    fmess = jax.random.normal(k_fm, (n_bonds, input_size), jnp.float32)
    agraph = jax.random.randint(k_ag, (n_atoms, max_nb), 0, n_bonds, jnp.int32)
    bgraph = jax.random.randint(k_bg, (n_bonds, max_nb), 0, n_bonds, jnp.int32)
    mask = jnp.ones((n_atoms, 1), jnp.float32).at[0, 0].set(0.0)

    fwd = jax.jit(dgcn_encoder_forward, static_argnums=(6,))
    node_hiddens, h_msgs = fwd(params, fnode, fmess, agraph, bgraph, mask,
                               enc_num_layers)
    jax.block_until_ready((node_hiddens, h_msgs))

    assert node_hiddens.shape == (n_atoms, enc_hidden_size)
    assert h_msgs.shape == (n_bonds, enc_hidden_size)

    ref_nodes, ref_h = _reference_forward(params, fnode, fmess, agraph, bgraph,
                                          mask, enc_num_layers)
    # In-kernel MXU f32 dots run at default (reduced) precision vs. the
    # HIGHEST-precision reference, so use a slightly looser tolerance.
    assert jnp.allclose(node_hiddens, ref_nodes, atol=2e-2, rtol=2e-2)
    assert jnp.allclose(h_msgs, ref_h, atol=2e-2, rtol=2e-2)

    print("KERNEL_OK")
</pallas_src>

<mosaic_0001>
module attributes {stable_mosaic.version = 11 : i64} {
  func.func @_dgcn_fused_kernel(%arg0: memref<16x128xf32, #tpu.memory_space<vmem>>, %arg1: memref<8x128xf32, #tpu.memory_space<vmem>>, %arg2: memref<16x4xi32, #tpu.memory_space<vmem>>, %arg3: memref<8x4xi32, #tpu.memory_space<vmem>>, %arg4: memref<8x1xf32, #tpu.memory_space<vmem>>, %arg5: memref<128x384xf32, #tpu.memory_space<vmem>>, %arg6: memref<1x384xf32, #tpu.memory_space<vmem>>, %arg7: memref<128x128xf32, #tpu.memory_space<vmem>>, %arg8: memref<128x128xf32, #tpu.memory_space<vmem>>, %arg9: memref<128x128xf32, #tpu.memory_space<vmem>>, %arg10: memref<128x128xf32, #tpu.memory_space<vmem>>, %arg11: memref<128x128xf32, #tpu.memory_space<vmem>>, %arg12: memref<1x128xf32, #tpu.memory_space<vmem>>, %arg13: memref<8x128xf32, #tpu.memory_space<vmem>>, %arg14: memref<16x128xf32, #tpu.memory_space<vmem>>, %arg15: memref<16x384xf32, #tpu.memory_space<vmem>>, %arg16: memref<2x16x128xf32, #tpu.memory_space<vmem>>) attributes {dimension_semantics = [], scalar_prefetch = 0 : i64, scratch_operands = 2 : i64, tpu.core_type = #tpu.core_type<tc>} {
    %c0 = arith.constant 0 : index
    %c0_0 = arith.constant 0 : index
    %0 = vector.load %arg0[%c0, %c0_0] : memref<16x128xf32, #tpu.memory_space<vmem>>, vector<16x128xf32>
    %c0_1 = arith.constant 0 : index
    %c0_2 = arith.constant 0 : index
    %1 = vector.load %arg5[%c0_1, %c0_2] : memref<128x384xf32, #tpu.memory_space<vmem>>, vector<128x384xf32>
    %cst = arith.constant dense<0.000000e+00> : vector<16x384xf32>
    %2 = tpu.matmul %0, %1, %cst {dimension_numbers = #tpu.dot_dimension_numbers<[1], [0], [0], [1], [0, 0, 1, 1], [], []>} : vector<16x128xf32>, vector<128x384xf32>, vector<16x384xf32> -> vector<16x384xf32>
    %c0_3 = arith.constant 0 : index
    %c0_4 = arith.constant 0 : index
    %3 = vector.load %arg6[%c0_3, %c0_4] : memref<1x384xf32, #tpu.memory_space<vmem>>, vector<1x384xf32>
    %4 = vector.broadcast %3 : vector<1x384xf32> to vector<16x384xf32>
    %5 = arith.addf %2, %4 : vector<16x384xf32>
    %c0_5 = arith.constant 0 : index
    %c0_6 = arith.constant 0 : index
    %6 = vector.load %arg15[%c0_5, %c0_6] : memref<16x384xf32, #tpu.memory_space<vmem>>, vector<16x384xf32>
    tpu.vector_store %arg15[%c0_5, %c0_6], %5 {strides = array<i32>} : memref<16x384xf32, #tpu.memory_space<vmem>>, vector<16x384xf32>,
    %c0_7 = arith.constant 0 : index
    %c0_8 = arith.constant 0 : index
    %7 = vector.load %arg15[%c0_7, %c0_8] : memref<16x384xf32, #tpu.memory_space<vmem>>, vector<16x128xf32>
    %c0_9 = arith.constant 0 : index
    %c256 = arith.constant 256 : index
    %8 = vector.load %arg15[%c0_9, %c256] : memref<16x384xf32, #tpu.memory_space<vmem>>, vector<16x128xf32>
    %cst_10 = arith.constant 5.000000e-01 : f32
    %9 = vector.broadcast %cst_10 : f32 to vector<16x128xf32>
    %10 = arith.mulf %9, %7 : vector<16x128xf32>
    %11 = math.tanh %10 : vector<16x128xf32>
    %cst_11 = arith.constant 1.000000e+00 : f32
    %12 = vector.broadcast %cst_11 : f32 to vector<16x128xf32>
    %13 = arith.addf %12, %11 : vector<16x128xf32>
    %cst_12 = arith.constant 5.000000e-01 : f32
    %14 = vector.broadcast %cst_12 : f32 to vector<16x128xf32>
    %15 = arith.mulf %14, %13 : vector<16x128xf32>
    %16 = math.tanh %8 : vector<16x128xf32>
    %17 = arith.mulf %15, %16 : vector<16x128xf32>
    %c0_13 = arith.constant 0 : index
    %c0_14 = arith.constant 0 : index
    %c0_15 = arith.constant 0 : index
    %18 = vector.load %arg16[%c0_13, %c0_14, %c0_15] : memref<2x16x128xf32, #tpu.memory_space<vmem>>, vector<1x16x128xf32>
    %19 = vector.shape_cast %18 : vector<1x16x128xf32> to vector<16x128xf32>
    %20 = vector.shape_cast %17 : vector<16x128xf32> to vector<1x16x128xf32>
    tpu.vector_store %arg16[%c0_13, %c0_14, %c0_15], %20 {strides = array<i32>} : memref<2x16x128xf32, #tpu.memory_space<vmem>>, vector<1x16x128xf32>,
    %cst_16 = arith.constant 0.000000e+00 : f32
    %21 = vector.broadcast %cst_16 : f32 to vector<1x128xf32>
    %c0_17 = arith.constant 0 : index
    %c0_18 = arith.constant 0 : index
    %c0_19 = arith.constant 0 : index
    %22 = vector.load %arg16[%c0_17, %c0_18, %c0_19] : memref<2x16x128xf32, #tpu.memory_space<vmem>>, vector<1x1x128xf32>
    %23 = vector.shape_cast %22 : vector<1x1x128xf32> to vector<1x128xf32>
    %24 = vector.shape_cast %21 : vector<1x128xf32> to vector<1x1x128xf32>
    tpu.vector_store %arg16[%c0_17, %c0_18, %c0_19], %24 {strides = array<i32>} : memref<2x16x128xf32, #tpu.memory_space<vmem>>, vector<1x1x128xf32>,
    %c0_20 = arith.constant 0 : index
    %c0_21 = arith.constant 0 : index
    %c0_22 = arith.constant 0 : index
    %25 = vector.load %arg16[%c0_20, %c0_21, %c0_22] : memref<2x16x128xf32, #tpu.memory_space<vmem>>, vector<1x16x128xf32>
    %26 = vector.shape_cast %25 : vector<1x16x128xf32> to vector<16x128xf32>
    %c0_23 = arith.constant 0 : index
    %c0_24 = arith.constant 0 : index
    %27 = vector.load %arg15[%c0_23, %c0_24] : memref<16x384xf32, #tpu.memory_space<vmem>>, vector<16x128xf32>
    %c0_25 = arith.constant 0 : index
    %c256_26 = arith.constant 256 : index
    %28 = vector.load %arg15[%c0_25, %c256_26] : memref<16x384xf32, #tpu.memory_space<vmem>>, vector<16x128xf32>
    %c0_27 = arith.constant 0 : index
    %c128 = arith.constant 128 : index
    %29 = vector.load %arg15[%c0_27, %c128] : memref<16x384xf32, #tpu.memory_space<vmem>>, vector<16x128xf32>
    %c0_28 = arith.constant 0 : index
    %c0_29 = arith.constant 0 : index
    %30 = vector.load %arg2[%c0_28, %c0_29] : memref<16x4xi32, #tpu.memory_space<vmem>>, vector<16x4xi32>
    %31 = tpu.iota {dimensions = array<i32: 1>} : vector<16x16xi32>
    %cst_30 = arith.constant 0.000000e+00 : f32
    %32 = vector.broadcast %cst_30 : f32 to vector<16x128xf32>
    %cst_31 = arith.constant 0.000000e+00 : f32
    %33 = vector.broadcast %cst_31 : f32 to vector<16x128xf32>
    %34 = vector.extract_strided_slice %30 {offsets = [0, 0], sizes = [16, 1], strides = [1, 1]} : vector<16x4xi32> to vector<16x1xi32>
    %35 = vector.broadcast %34 : vector<16x1xi32> to vector<16x16xi32>
    %36 = arith.cmpi eq, %31, %35 : vector<16x16xi32>
    %37 = arith.extui %36 : vector<16x16xi1> to vector<16x16xi32>
    %38 = arith.sitofp %37 : vector<16x16xi32> to vector<16x16xf32>
    %cst_32 = arith.constant dense<0.000000e+00> : vector<16x128xf32>
    %39 = tpu.matmul %38, %26, %cst_32 {dimension_numbers = #tpu.dot_dimension_numbers<[1], [0], [0], [1], [0, 0, 1, 1], [], []>} : vector<16x16xf32>, vector<16x128xf32>, vector<16x128xf32> -> vector<16x128xf32>
    %c0_33 = arith.constant 0 : index
    %c0_34 = arith.constant 0 : index
    %40 = vector.load %arg9[%c0_33, %c0_34] : memref<128x128xf32, #tpu.memory_space<vmem>>, vector<128x128xf32>
    %cst_35 = arith.constant dense<0.000000e+00> : vector<16x128xf32>
    %41 = tpu.matmul %39, %40, %cst_35 {dimension_numbers = #tpu.dot_dimension_numbers<[1], [0], [0], [1], [0, 0, 1, 1], [], []>} : vector<16x128xf32>, vector<128x128xf32>, vector<16x128xf32> -> vector<16x128xf32>
    %42 = arith.addf %29, %41 : vector<16x128xf32>
    %cst_36 = arith.constant 5.000000e-01 : f32
    %43 = vector.broadcast %cst_36 : f32 to vector<16x128xf32>
    %44 = arith.mulf %43, %42 : vector<16x128xf32>
    %45 = math.tanh %44 : vector<16x128xf32>
    %cst_37 = arith.constant 1.000000e+00 : f32
    %46 = vector.broadcast %cst_37 : f32 to vector<16x128xf32>
    %47 = arith.addf %46, %45 : vector<16x128xf32>
    %cst_38 = arith.constant 5.000000e-01 : f32
    %48 = vector.broadcast %cst_38 : f32 to vector<16x128xf32>
    %49 = arith.mulf %48, %47 : vector<16x128xf32>
    %50 = arith.addf %32, %39 : vector<16x128xf32>
    %51 = arith.mulf %49, %39 : vector<16x128xf32>
    %52 = arith.addf %33, %51 : vector<16x128xf32>
    %53 = vector.extract_strided_slice %30 {offsets = [0, 1], sizes = [16, 1], strides = [1, 1]} : vector<16x4xi32> to vector<16x1xi32>
    %54 = vector.broadcast %53 : vector<16x1xi32> to vector<16x16xi32>
    %55 = arith.cmpi eq, %31, %54 : vector<16x16xi32>
    %56 = arith.extui %55 : vector<16x16xi1> to vector<16x16xi32>
    %57 = arith.sitofp %56 : vector<16x16xi32> to vector<16x16xf32>
    %cst_39 = arith.constant dense<0.000000e+00> : vector<16x128xf32>
    %58 = tpu.matmul %57, %26, %cst_39 {dimension_numbers = #tpu.dot_dimension_numbers<[1], [0], [0], [1], [0, 0, 1, 1], [], []>} : vector<16x16xf32>, vector<16x128xf32>, vector<16x128xf32> -> vector<16x128xf32>
    %c0_40 = arith.constant 0 : index
    %c0_41 = arith.constant 0 : index
    %59 = vector.load %arg9[%c0_40, %c0_41] : memref<128x128xf32, #tpu.memory_space<vmem>>, vector<128x128xf32>
    %cst_42 = arith.constant dense<0.000000e+00> : vector<16x128xf32>
    %60 = tpu.matmul %58, %59, %cst_42 {dimension_numbers = #tpu.dot_dimension_numbers<[1], [0], [0], [1], [0, 0, 1, 1], [], []>} : vector<16x128xf32>, vector<128x128xf32>, vector<16x128xf32> -> vector<16x128xf32>
    %61 = arith.addf %29, %60 : vector<16x128xf32>
    %cst_43 = arith.constant 5.000000e-01 : f32
    %62 = vector.broadcast %cst_43 : f32 to vector<16x128xf32>
    %63 = arith.mulf %62, %61 : vector<16x128xf32>
    %64 = math.tanh %63 : vector<16x128xf32>
    %cst_44 = arith.constant 1.000000e+00 : f32
    %65 = vector.broadcast %cst_44 : f32 to vector<16x128xf32>
    %66 = arith.addf %65, %64 : vector<16x128xf32>
    %cst_45 = arith.constant 5.000000e-01 : f32
    %67 = vector.broadcast %cst_45 : f32 to vector<16x128xf32>
    %68 = arith.mulf %67, %66 : vector<16x128xf32>
    %69 = arith.addf %50, %58 : vector<16x128xf32>
    %70 = arith.mulf %68, %58 : vector<16x128xf32>
    %71 = arith.addf %52, %70 : vector<16x128xf32>
    %72 = vector.extract_strided_slice %30 {offsets = [0, 2], sizes = [16, 1], strides = [1, 1]} : vector<16x4xi32> to vector<16x1xi32>
    %73 = vector.broadcast %72 : vector<16x1xi32> to vector<16x16xi32>
    %74 = arith.cmpi eq, %31, %73 : vector<16x16xi32>
    %75 = arith.extui %74 : vector<16x16xi1> to vector<16x16xi32>
    %76 = arith.sitofp %75 : vector<16x16xi32> to vector<16x16xf32>
    %cst_46 = arith.constant dense<0.000000e+00> : vector<16x128xf32>
    %77 = tpu.matmul %76, %26, %cst_46 {dimension_numbers = #tpu.dot_dimension_numbers<[1], [0], [0], [1], [0, 0, 1, 1], [], []>} : vector<16x16xf32>, vector<16x128xf32>, vector<16x128xf32> -> vector<16x128xf32>
    %c0_47 = arith.constant 0 : index
    %c0_48 = arith.constant 0 : index
    %78 = vector.load %arg9[%c0_47, %c0_48] : memref<128x128xf32, #tpu.memory_space<vmem>>, vector<128x128xf32>
    %cst_49 = arith.constant dense<0.000000e+00> : vector<16x128xf32>
    %79 = tpu.matmul %77, %78, %cst_49 {dimension_numbers = #tpu.dot_dimension_numbers<[1], [0], [0], [1], [0, 0, 1, 1], [], []>} : vector<16x128xf32>, vector<128x128xf32>, vector<16x128xf32> -> vector<16x128xf32>
    %80 = arith.addf %29, %79 : vector<16x128xf32>
    %cst_50 = arith.constant 5.000000e-01 : f32
    %81 = vector.broadcast %cst_50 : f32 to vector<16x128xf32>
    %82 = arith.mulf %81, %80 : vector<16x128xf32>
    %83 = math.tanh %82 : vector<16x128xf32>
    %cst_51 = arith.constant 1.000000e+00 : f32
    %84 = vector.broadcast %cst_51 : f32 to vector<16x128xf32>
    %85 = arith.addf %84, %83 : vector<16x128xf32>
    %cst_52 = arith.constant 5.000000e-01 : f32
    %86 = vector.broadcast %cst_52 : f32 to vector<16x128xf32>
    %87 = arith.mulf %86, %85 : vector<16x128xf32>
    %88 = arith.addf %69, %77 : vector<16x128xf32>
    %89 = arith.mulf %87, %77 : vector<16x128xf32>
    %90 = arith.addf %71, %89 : vector<16x128xf32>
    %91 = vector.extract_strided_slice %30 {offsets = [0, 3], sizes = [16, 1], strides = [1, 1]} : vector<16x4xi32> to vector<16x1xi32>
    %92 = vector.broadcast %91 : vector<16x1xi32> to vector<16x16xi32>
    %93 = arith.cmpi eq, %31, %92 : vector<16x16xi32>
    %94 = arith.extui %93 : vector<16x16xi1> to vector<16x16xi32>
    %95 = arith.sitofp %94 : vector<16x16xi32> to vector<16x16xf32>
    %cst_53 = arith.constant dense<0.000000e+00> : vector<16x128xf32>
    %96 = tpu.matmul %95, %26, %cst_53 {dimension_numbers = #tpu.dot_dimension_numbers<[1], [0], [0], [1], [0, 0, 1, 1], [], []>} : vector<16x16xf32>, vector<16x128xf32>, vector<16x128xf32> -> vector<16x128xf32>
    %c0_54 = arith.constant 0 : index
    %c0_55 = arith.constant 0 : index
    %97 = vector.load %arg9[%c0_54, %c0_55] : memref<128x128xf32, #tpu.memory_space<vmem>>, vector<128x128xf32>
    %cst_56 = arith.constant dense<0.000000e+00> : vector<16x128xf32>
    %98 = tpu.matmul %96, %97, %cst_56 {dimension_numbers = #tpu.dot_dimension_numbers<[1], [0], [0], [1], [0, 0, 1, 1], [], []>} : vector<16x128xf32>, vector<128x128xf32>, vector<16x128xf32> -> vector<16x128xf32>
    %99 = arith.addf %29, %98 : vector<16x128xf32>
    %cst_57 = arith.constant 5.000000e-01 : f32
    %100 = vector.broadcast %cst_57 : f32 to vector<16x128xf32>
    %101 = arith.mulf %100, %99 : vector<16x128xf32>
    %102 = math.tanh %101 : vector<16x128xf32>
    %cst_58 = arith.constant 1.000000e+00 : f32
    %103 = vector.broadcast %cst_58 : f32 to vector<16x128xf32>
    %104 = arith.addf %103, %102 : vector<16x128xf32>
    %cst_59 = arith.constant 5.000000e-01 : f32
    %105 = vector.broadcast %cst_59 : f32 to vector<16x128xf32>
    %106 = arith.mulf %105, %104 : vector<16x128xf32>
    %107 = arith.addf %88, %96 : vector<16x128xf32>
    %108 = arith.mulf %106, %96 : vector<16x128xf32>
    %109 = arith.addf %90, %108 : vector<16x128xf32>
    %c0_60 = arith.constant 0 : index
    %c0_61 = arith.constant 0 : index
    %110 = vector.load %arg7[%c0_60, %c0_61] : memref<128x128xf32, #tpu.memory_space<vmem>>, vector<128x128xf32>
    %cst_62 = arith.constant dense<0.000000e+00> : vector<16x128xf32>
    %111 = tpu.matmul %107, %110, %cst_62 {dimension_numbers = #tpu.dot_dimension_numbers<[1], [0], [0], [1], [0, 0, 1, 1], [], []>} : vector<16x128xf32>, vector<128x128xf32>, vector<16x128xf32> -> vector<16x128xf32>
    %112 = arith.addf %27, %111 : vector<16x128xf32>
    %cst_63 = arith.constant 5.000000e-01 : f32
    %113 = vector.broadcast %cst_63 : f32 to vector<16x128xf32>
    %114 = arith.mulf %113, %112 : vector<16x128xf32>
    %115 = math.tanh %114 : vector<16x128xf32>
    %cst_64 = arith.constant 1.000000e+00 : f32
    %116 = vector.broadcast %cst_64 : f32 to vector<16x128xf32>
    %117 = arith.addf %116, %115 : vector<16x128xf32>
    %cst_65 = arith.constant 5.000000e-01 : f32
    %118 = vector.broadcast %cst_65 : f32 to vector<16x128xf32>
    %119 = arith.mulf %118, %117 : vector<16x128xf32>
    %c0_66 = arith.constant 0 : index
    %c0_67 = arith.constant 0 : index
    %120 = vector.load %arg8[%c0_66, %c0_67] : memref<128x128xf32, #tpu.memory_space<vmem>>, vector<128x128xf32>
    %cst_68 = arith.constant dense<0.000000e+00> : vector<16x128xf32>
    %121 = tpu.matmul %109, %120, %cst_68 {dimension_numbers = #tpu.dot_dimension_numbers<[1], [0], [0], [1], [0, 0, 1, 1], [], []>} : vector<16x128xf32>, vector<128x128xf32>, vector<16x128xf32> -> vector<16x128xf32>
    %122 = arith.addf %28, %121 : vector<16x128xf32>
    %123 = math.tanh %122 : vector<16x128xf32>
    %cst_69 = arith.constant 1.000000e+00 : f32
    %124 = vector.broadcast %cst_69 : f32 to vector<16x128xf32>
    %125 = arith.subf %124, %119 : vector<16x128xf32>
    %126 = arith.mulf %125, %107 : vector<16x128xf32>
    %127 = arith.mulf %119, %123 : vector<16x128xf32>
    %128 = arith.addf %126, %127 : vector<16x128xf32>
    %c1 = arith.constant 1 : index
    %c0_70 = arith.constant 0 : index
    %c0_71 = arith.constant 0 : index
    %129 = vector.load %arg16[%c1, %c0_70, %c0_71] : memref<2x16x128xf32, #tpu.memory_space<vmem>>, vector<1x16x128xf32>
    %130 = vector.shape_cast %129 : vector<1x16x128xf32> to vector<16x128xf32>
    %131 = vector.shape_cast %128 : vector<16x128xf32> to vector<1x16x128xf32>
    tpu.vector_store %arg16[%c1, %c0_70, %c0_71], %131 {strides = array<i32>} : memref<2x16x128xf32, #tpu.memory_space<vmem>>, vector<1x16x128xf32>,
    %cst_72 = arith.constant 0.000000e+00 : f32
    %132 = vector.broadcast %cst_72 : f32 to vector<1x128xf32>
    %c1_73 = arith.constant 1 : index
    %c0_74 = arith.constant 0 : index
    %c0_75 = arith.constant 0 : index
    %133 = vector.load %arg16[%c1_73, %c0_74, %c0_75] : memref<2x16x128xf32, #tpu.memory_space<vmem>>, vector<1x1x128xf32>
    %134 = vector.shape_cast %133 : vector<1x1x128xf32> to vector<1x128xf32>
    %135 = vector.shape_cast %132 : vector<1x128xf32> to vector<1x1x128xf32>
    tpu.vector_store %arg16[%c1_73, %c0_74, %c0_75], %135 {strides = array<i32>} : memref<2x16x128xf32, #tpu.memory_space<vmem>>, vector<1x1x128xf32>,
    %c1_76 = arith.constant 1 : index
    %c0_77 = arith.constant 0 : index
    %c0_78 = arith.constant 0 : index
    %136 = vector.load %arg16[%c1_76, %c0_77, %c0_78] : memref<2x16x128xf32, #tpu.memory_space<vmem>>, vector<1x16x128xf32>
    %137 = vector.shape_cast %136 : vector<1x16x128xf32> to vector<16x128xf32>
    %c0_79 = arith.constant 0 : index
    %c0_80 = arith.constant 0 : index
    %138 = vector.load %arg15[%c0_79, %c0_80] : memref<16x384xf32, #tpu.memory_space<vmem>>, vector<16x128xf32>
    %c0_81 = arith.constant 0 : index
    %c256_82 = arith.constant 256 : index
    %139 = vector.load %arg15[%c0_81, %c256_82] : memref<16x384xf32, #tpu.memory_space<vmem>>, vector<16x128xf32>
    %c0_83 = arith.constant 0 : index
    %c128_84 = arith.constant 128 : index
    %140 = vector.load %arg15[%c0_83, %c128_84] : memref<16x384xf32, #tpu.memory_space<vmem>>, vector<16x128xf32>
    %c0_85 = arith.constant 0 : index
    %c0_86 = arith.constant 0 : index
    %141 = vector.load %arg2[%c0_85, %c0_86] : memref<16x4xi32, #tpu.memory_space<vmem>>, vector<16x4xi32>
    %142 = tpu.iota {dimensions = array<i32: 1>} : vector<16x16xi32>
    %cst_87 = arith.constant 0.000000e+00 : f32
    %143 = vector.broadcast %cst_87 : f32 to vector<16x128xf32>
    %cst_88 = arith.constant 0.000000e+00 : f32
    %144 = vector.broadcast %cst_88 : f32 to vector<16x128xf32>
    %145 = vector.extract_strided_slice %141 {offsets = [0, 0], sizes = [16, 1], strides = [1, 1]} : vector<16x4xi32> to vector<16x1xi32>
    %146 = vector.broadcast %145 : vector<16x1xi32> to vector<16x16xi32>
    %147 = arith.cmpi eq, %142, %146 : vector<16x16xi32>
    %148 = arith.extui %147 : vector<16x16xi1> to vector<16x16xi32>
    %149 = arith.sitofp %148 : vector<16x16xi32> to vector<16x16xf32>
    %cst_89 = arith.constant dense<0.000000e+00> : vector<16x128xf32>
    %150 = tpu.matmul %149, %137, %cst_89 {dimension_numbers = #tpu.dot_dimension_numbers<[1], [0], [0], [1], [0, 0, 1, 1], [], []>} : vector<16x16xf32>, vector<16x128xf32>, vector<16x128xf32> -> vector<16x128xf32>
    %c0_90 = arith.constant 0 : index
    %c0_91 = arith.constant 0 : index
    %151 = vector.load %arg9[%c0_90, %c0_91] : memref<128x128xf32, #tpu.memory_space<vmem>>, vector<128x128xf32>
    %cst_92 = arith.constant dense<0.000000e+00> : vector<16x128xf32>
    %152 = tpu.matmul %150, %151, %cst_92 {dimension_numbers = #tpu.dot_dimension_numbers<[1], [0], [0], [1], [0, 0, 1, 1], [], []>} : vector<16x128xf32>, vector<128x128xf32>, vector<16x128xf32> -> vector<16x128xf32>
    %153 = arith.addf %140, %152 : vector<16x128xf32>
    %cst_93 = arith.constant 5.000000e-01 : f32
    %154 = vector.broadcast %cst_93 : f32 to vector<16x128xf32>
    %155 = arith.mulf %154, %153 : vector<16x128xf32>
    %156 = math.tanh %155 : vector<16x128xf32>
    %cst_94 = arith.constant 1.000000e+00 : f32
    %157 = vector.broadcast %cst_94 : f32 to vector<16x128xf32>
    %158 = arith.addf %157, %156 : vector<16x128xf32>
    %cst_95 = arith.constant 5.000000e-01 : f32
    %159 = vector.broadcast %cst_95 : f32 to vector<16x128xf32>
    %160 = arith.mulf %159, %158 : vector<16x128xf32>
    %161 = arith.addf %143, %150 : vector<16x128xf32>
    %162 = arith.mulf %160, %150 : vector<16x128xf32>
    %163 = arith.addf %144, %162 : vector<16x128xf32>
    %164 = vector.extract_strided_slice %141 {offsets = [0, 1], sizes = [16, 1], strides = [1, 1]} : vector<16x4xi32> to vector<16x1xi32>
    %165 = vector.broadcast %164 : vector<16x1xi32> to vector<16x16xi32>
    %166 = arith.cmpi eq, %142, %165 : vector<16x16xi32>
    %167 = arith.extui %166 : vector<16x16xi1> to vector<16x16xi32>
    %168 = arith.sitofp %167 : vector<16x16xi32> to vector<16x16xf32>
    %cst_96 = arith.constant dense<0.000000e+00> : vector<16x128xf32>
    %169 = tpu.matmul %168, %137, %cst_96 {dimension_numbers = #tpu.dot_dimension_numbers<[1], [0], [0], [1], [0, 0, 1, 1], [], []>} : vector<16x16xf32>, vector<16x128xf32>, vector<16x128xf32> -> vector<16x128xf32>
    %c0_97 = arith.constant 0 : index
    %c0_98 = arith.constant 0 : index
    %170 = vector.load %arg9[%c0_97, %c0_98] : memref<128x128xf32, #tpu.memory_space<vmem>>, vector<128x128xf32>
    %cst_99 = arith.constant dense<0.000000e+00> : vector<16x128xf32>
    %171 = tpu.matmul %169, %170, %cst_99 {dimension_numbers = #tpu.dot_dimension_numbers<[1], [0], [0], [1], [0, 0, 1, 1], [], []>} : vector<16x128xf32>, vector<128x128xf32>, vector<16x128xf32> -> vector<16x128xf32>
    %172 = arith.addf %140, %171 : vector<16x128xf32>
    %cst_100 = arith.constant 5.000000e-01 : f32
    %173 = vector.broadcast %cst_100 : f32 to vector<16x128xf32>
    %174 = arith.mulf %173, %172 : vector<16x128xf32>
    %175 = math.tanh %174 : vector<16x128xf32>
    %cst_101 = arith.constant 1.000000e+00 : f32
    %176 = vector.broadcast %cst_101 : f32 to vector<16x128xf32>
    %177 = arith.addf %176, %175 : vector<16x128xf32>
    %cst_102 = arith.constant 5.000000e-01 : f32
    %178 = vector.broadcast %cst_102 : f32 to vector<16x128xf32>
    %179 = arith.mulf %178, %177 : vector<16x128xf32>
    %180 = arith.addf %161, %169 : vector<16x128xf32>
    %181 = arith.mulf %179, %169 : vector<16x128xf32>
    %182 = arith.addf %163, %181 : vector<16x128xf32>
    %183 = vector.extract_strided_slice %141 {offsets = [0, 2], sizes = [16, 1], strides = [1, 1]} : vector<16x4xi32> to vector<16x1xi32>
    %184 = vector.broadcast %183 : vector<16x1xi32> to vector<16x16xi32>
    %185 = arith.cmpi eq, %142, %184 : vector<16x16xi32>
    %186 = arith.extui %185 : vector<16x16xi1> to vector<16x16xi32>
    %187 = arith.sitofp %186 : vector<16x16xi32> to vector<16x16xf32>
    %cst_103 = arith.constant dense<0.000000e+00> : vector<16x128xf32>
    %188 = tpu.matmul %187, %137, %cst_103 {dimension_numbers = #tpu.dot_dimension_numbers<[1], [0], [0], [1], [0, 0, 1, 1], [], []>} : vector<16x16xf32>, vector<16x128xf32>, vector<16x128xf32> -> vector<16x128xf32>
    %c0_104 = arith.constant 0 : index
    %c0_105 = arith.constant 0 : index
    %189 = vector.load %arg9[%c0_104, %c0_105] : memref<128x128xf32, #tpu.memory_space<vmem>>, vector<128x128xf32>
    %cst_106 = arith.constant dense<0.000000e+00> : vector<16x128xf32>
    %190 = tpu.matmul %188, %189, %cst_106 {dimension_numbers = #tpu.dot_dimension_numbers<[1], [0], [0], [1], [0, 0, 1, 1], [], []>} : vector<16x128xf32>, vector<128x128xf32>, vector<16x128xf32> -> vector<16x128xf32>
    %191 = arith.addf %140, %190 : vector<16x128xf32>
    %cst_107 = arith.constant 5.000000e-01 : f32
    %192 = vector.broadcast %cst_107 : f32 to vector<16x128xf32>
    %193 = arith.mulf %192, %191 : vector<16x128xf32>
    %194 = math.tanh %193 : vector<16x128xf32>
    %cst_108 = arith.constant 1.000000e+00 : f32
    %195 = vector.broadcast %cst_108 : f32 to vector<16x128xf32>
    %196 = arith.addf %195, %194 : vector<16x128xf32>
    %cst_109 = arith.constant 5.000000e-01 : f32
    %197 = vector.broadcast %cst_109 : f32 to vector<16x128xf32>
    %198 = arith.mulf %197, %196 : vector<16x128xf32>
    %199 = arith.addf %180, %188 : vector<16x128xf32>
    %200 = arith.mulf %198, %188 : vector<16x128xf32>
    %201 = arith.addf %182, %200 : vector<16x128xf32>
    %202 = vector.extract_strided_slice %141 {offsets = [0, 3], sizes = [16, 1], strides = [1, 1]} : vector<16x4xi32> to vector<16x1xi32>
    %203 = vector.broadcast %202 : vector<16x1xi32> to vector<16x16xi32>
    %204 = arith.cmpi eq, %142, %203 : vector<16x16xi32>
    %205 = arith.extui %204 : vector<16x16xi1> to vector<16x16xi32>
    %206 = arith.sitofp %205 : vector<16x16xi32> to vector<16x16xf32>
    %cst_110 = arith.constant dense<0.000000e+00> : vector<16x128xf32>
    %207 = tpu.matmul %206, %137, %cst_110 {dimension_numbers = #tpu.dot_dimension_numbers<[1], [0], [0], [1], [0, 0, 1, 1], [], []>} : vector<16x16xf32>, vector<16x128xf32>, vector<16x128xf32> -> vector<16x128xf32>
    %c0_111 = arith.constant 0 : index
    %c0_112 = arith.constant 0 : index
    %208 = vector.load %arg9[%c0_111, %c0_112] : memref<128x128xf32, #tpu.memory_space<vmem>>, vector<128x128xf32>
    %cst_113 = arith.constant dense<0.000000e+00> : vector<16x128xf32>
    %209 = tpu.matmul %207, %208, %cst_113 {dimension_numbers = #tpu.dot_dimension_numbers<[1], [0], [0], [1], [0, 0, 1, 1], [], []>} : vector<16x128xf32>, vector<128x128xf32>, vector<16x128xf32> -> vector<16x128xf32>
    %210 = arith.addf %140, %209 : vector<16x128xf32>
    %cst_114 = arith.constant 5.000000e-01 : f32
    %211 = vector.broadcast %cst_114 : f32 to vector<16x128xf32>
    %212 = arith.mulf %211, %210 : vector<16x128xf32>
    %213 = math.tanh %212 : vector<16x128xf32>
    %cst_115 = arith.constant 1.000000e+00 : f32
    %214 = vector.broadcast %cst_115 : f32 to vector<16x128xf32>
    %215 = arith.addf %214, %213 : vector<16x128xf32>
    %cst_116 = arith.constant 5.000000e-01 : f32
    %216 = vector.broadcast %cst_116 : f32 to vector<16x128xf32>
    %217 = arith.mulf %216, %215 : vector<16x128xf32>
    %218 = arith.addf %199, %207 : vector<16x128xf32>
    %219 = arith.mulf %217, %207 : vector<16x128xf32>
    %220 = arith.addf %201, %219 : vector<16x128xf32>
    %c0_117 = arith.constant 0 : index
    %c0_118 = arith.constant 0 : index
    %221 = vector.load %arg7[%c0_117, %c0_118] : memref<128x128xf32, #tpu.memory_space<vmem>>, vector<128x128xf32>
    %cst_119 = arith.constant dense<0.000000e+00> : vector<16x128xf32>
    %222 = tpu.matmul %218, %221, %cst_119 {dimension_numbers = #tpu.dot_dimension_numbers<[1], [0], [0], [1], [0, 0, 1, 1], [], []>} : vector<16x128xf32>, vector<128x128xf32>, vector<16x128xf32> -> vector<16x128xf32>
    %223 = arith.addf %138, %222 : vector<16x128xf32>
    %cst_120 = arith.constant 5.000000e-01 : f32
    %224 = vector.broadcast %cst_120 : f32 to vector<16x128xf32>
    %225 = arith.mulf %224, %223 : vector<16x128xf32>
    %226 = math.tanh %225 : vector<16x128xf32>
    %cst_121 = arith.constant 1.000000e+00 : f32
    %227 = vector.broadcast %cst_121 : f32 to vector<16x128xf32>
    %228 = arith.addf %227, %226 : vector<16x128xf32>
    %cst_122 = arith.constant 5.000000e-01 : f32
    %229 = vector.broadcast %cst_122 : f32 to vector<16x128xf32>
    %230 = arith.mulf %229, %228 : vector<16x128xf32>
    %c0_123 = arith.constant 0 : index
    %c0_124 = arith.constant 0 : index
    %231 = vector.load %arg8[%c0_123, %c0_124] : memref<128x128xf32, #tpu.memory_space<vmem>>, vector<128x128xf32>
    %cst_125 = arith.constant dense<0.000000e+00> : vector<16x128xf32>
    %232 = tpu.matmul %220, %231, %cst_125 {dimension_numbers = #tpu.dot_dimension_numbers<[1], [0], [0], [1], [0, 0, 1, 1], [], []>} : vector<16x128xf32>, vector<128x128xf32>, vector<16x128xf32> -> vector<16x128xf32>
    %233 = arith.addf %139, %232 : vector<16x128xf32>
    %234 = math.tanh %233 : vector<16x128xf32>
    %cst_126 = arith.constant 1.000000e+00 : f32
    %235 = vector.broadcast %cst_126 : f32 to vector<16x128xf32>
    %236 = arith.subf %235, %230 : vector<16x128xf32>
    %237 = arith.mulf %236, %218 : vector<16x128xf32>
    %238 = arith.mulf %230, %234 : vector<16x128xf32>
    %239 = arith.addf %237, %238 : vector<16x128xf32>
    %c0_127 = arith.constant 0 : index
    %c0_128 = arith.constant 0 : index
    %240 = vector.load %arg14[%c0_127, %c0_128] : memref<16x128xf32, #tpu.memory_space<vmem>>, vector<16x128xf32>
    tpu.vector_store %arg14[%c0_127, %c0_128], %239 {strides = array<i32>} : memref<16x128xf32, #tpu.memory_space<vmem>>, vector<16x128xf32>,
    %cst_129 = arith.constant 0.000000e+00 : f32
    %241 = vector.broadcast %cst_129 : f32 to vector<1x128xf32>
    %c0_130 = arith.constant 0 : index
    %c0_131 = arith.constant 0 : index
    %242 = vector.load %arg14[%c0_130, %c0_131] : memref<16x128xf32, #tpu.memory_space<vmem>>, vector<1x128xf32>
    tpu.vector_store %arg14[%c0_130, %c0_131], %241 {strides = array<i32>} : memref<16x128xf32, #tpu.memory_space<vmem>>, vector<1x128xf32>,
    %c0_132 = arith.constant 0 : index
    %c0_133 = arith.constant 0 : index
    %243 = vector.load %arg14[%c0_132, %c0_133] : memref<16x128xf32, #tpu.memory_space<vmem>>, vector<16x128xf32>
    %c0_134 = arith.constant 0 : index
    %c0_135 = arith.constant 0 : index
    %244 = vector.load %arg3[%c0_134, %c0_135] : memref<8x4xi32, #tpu.memory_space<vmem>>, vector<8x4xi32>
    %245 = tpu.iota {dimensions = array<i32: 1>} : vector<8x16xi32>
    %cst_136 = arith.constant 0.000000e+00 : f32
    %246 = vector.broadcast %cst_136 : f32 to vector<8x16xf32>
    %247 = vector.extract_strided_slice %244 {offsets = [0, 0], sizes = [8, 1], strides = [1, 1]} : vector<8x4xi32> to vector<8x1xi32>
    %248 = vector.broadcast %247 : vector<8x1xi32> to vector<8x16xi32>
    %249 = arith.cmpi eq, %245, %248 : vector<8x16xi32>
    %250 = arith.extui %249 : vector<8x16xi1> to vector<8x16xi32>
    %251 = arith.sitofp %250 : vector<8x16xi32> to vector<8x16xf32>
    %252 = arith.addf %246, %251 : vector<8x16xf32>
    %253 = vector.extract_strided_slice %244 {offsets = [0, 1], sizes = [8, 1], strides = [1, 1]} : vector<8x4xi32> to vector<8x1xi32>
    %254 = vector.broadcast %253 : vector<8x1xi32> to vector<8x16xi32>
    %255 = arith.cmpi eq, %245, %254 : vector<8x16xi32>
    %256 = arith.extui %255 : vector<8x16xi1> to vector<8x16xi32>
    %257 = arith.sitofp %256 : vector<8x16xi32> to vector<8x16xf32>
    %258 = arith.addf %252, %257 : vector<8x16xf32>
    %259 = vector.extract_strided_slice %244 {offsets = [0, 2], sizes = [8, 1], strides = [1, 1]} : vector<8x4xi32> to vector<8x1xi32>
    %260 = vector.broadcast %259 : vector<8x1xi32> to vector<8x16xi32>
    %261 = arith.cmpi eq, %245, %260 : vector<8x16xi32>
    %262 = arith.extui %261 : vector<8x16xi1> to vector<8x16xi32>
    %263 = arith.sitofp %262 : vector<8x16xi32> to vector<8x16xf32>
    %264 = arith.addf %258, %263 : vector<8x16xf32>
    %265 = vector.extract_strided_slice %244 {offsets = [0, 3], sizes = [8, 1], strides = [1, 1]} : vector<8x4xi32> to vector<8x1xi32>
    %266 = vector.broadcast %265 : vector<8x1xi32> to vector<8x16xi32>
    %267 = arith.cmpi eq, %245, %266 : vector<8x16xi32>
    %268 = arith.extui %267 : vector<8x16xi1> to vector<8x16xi32>
    %269 = arith.sitofp %268 : vector<8x16xi32> to vector<8x16xf32>
    %270 = arith.addf %264, %269 : vector<8x16xf32>
    %cst_137 = arith.constant dense<0.000000e+00> : vector<8x128xf32>
    %271 = tpu.matmul %270, %243, %cst_137 {dimension_numbers = #tpu.dot_dimension_numbers<[1], [0], [0], [1], [0, 0, 1, 1], [], []>} : vector<8x16xf32>, vector<16x128xf32>, vector<8x128xf32> -> vector<8x128xf32>
    %c0_138 = arith.constant 0 : index
    %c0_139 = arith.constant 0 : index
    %272 = vector.load %arg1[%c0_138, %c0_139] : memref<8x128xf32, #tpu.memory_space<vmem>>, vector<8x128xf32>
    %c0_140 = arith.constant 0 : index
    %c0_141 = arith.constant 0 : index
    %273 = vector.load %arg10[%c0_140, %c0_141] : memref<128x128xf32, #tpu.memory_space<vmem>>, vector<128x128xf32>
    %cst_142 = arith.constant dense<0.000000e+00> : vector<8x128xf32>
    %274 = tpu.matmul %272, %273, %cst_142 {dimension_numbers = #tpu.dot_dimension_numbers<[1], [0], [0], [1], [0, 0, 1, 1], [], []>} : vector<8x128xf32>, vector<128x128xf32>, vector<8x128xf32> -> vector<8x128xf32>
    %c0_143 = arith.constant 0 : index
    %c0_144 = arith.constant 0 : index
    %275 = vector.load %arg11[%c0_143, %c0_144] : memref<128x128xf32, #tpu.memory_space<vmem>>, vector<128x128xf32>
    %cst_145 = arith.constant dense<0.000000e+00> : vector<8x128xf32>
    %276 = tpu.matmul %271, %275, %cst_145 {dimension_numbers = #tpu.dot_dimension_numbers<[1], [0], [0], [1], [0, 0, 1, 1], [], []>} : vector<8x128xf32>, vector<128x128xf32>, vector<8x128xf32> -> vector<8x128xf32>
    %277 = arith.addf %274, %276 : vector<8x128xf32>
    %c0_146 = arith.constant 0 : index
    %c0_147 = arith.constant 0 : index
    %278 = vector.load %arg12[%c0_146, %c0_147] : memref<1x128xf32, #tpu.memory_space<vmem>>, vector<1x128xf32>
    %279 = vector.broadcast %278 : vector<1x128xf32> to vector<8x128xf32>
    %280 = arith.addf %277, %279 : vector<8x128xf32>
    %cst_148 = arith.constant 5.000000e-01 : f32
    %281 = vector.broadcast %cst_148 : f32 to vector<8x128xf32>
    %282 = arith.mulf %281, %280 : vector<8x128xf32>
    %cst_149 = arith.constant 0.707106769 : f32
    %283 = vector.broadcast %cst_149 : f32 to vector<8x128xf32>
    %284 = arith.mulf %280, %283 : vector<8x128xf32>
    %285 = math.absf %284 : vector<8x128xf32>
    %cst_150 = arith.constant 0.327591091 : f32
    %286 = vector.broadcast %cst_150 : f32 to vector<8x128xf32>
    %287 = arith.mulf %286, %285 : vector<8x128xf32>
    %cst_151 = arith.constant 1.000000e+00 : f32
    %288 = vector.broadcast %cst_151 : f32 to vector<8x128xf32>
    %289 = arith.addf %288, %287 : vector<8x128xf32>
    %cst_152 = arith.constant 1.000000e+00 : f32
    %290 = vector.broadcast %cst_152 : f32 to vector<8x128xf32>
    %291 = arith.divf %290, %289 : vector<8x128xf32>
    %cst_153 = arith.constant 1.06140542 : f32
    %292 = vector.broadcast %cst_153 : f32 to vector<8x128xf32>
    %293 = arith.mulf %292, %291 : vector<8x128xf32>
    %cst_154 = arith.constant -1.45315206 : f32
    %294 = vector.broadcast %cst_154 : f32 to vector<8x128xf32>
    %295 = arith.addf %293, %294 : vector<8x128xf32>
    %296 = arith.mulf %295, %291 : vector<8x128xf32>
    %cst_155 = arith.constant 1.42141378 : f32
    %297 = vector.broadcast %cst_155 : f32 to vector<8x128xf32>
    %298 = arith.addf %296, %297 : vector<8x128xf32>
    %299 = arith.mulf %298, %291 : vector<8x128xf32>
    %cst_156 = arith.constant -0.284496725 : f32
    %300 = vector.broadcast %cst_156 : f32 to vector<8x128xf32>
    %301 = arith.addf %299, %300 : vector<8x128xf32>
    %302 = arith.mulf %301, %291 : vector<8x128xf32>
    %cst_157 = arith.constant 0.254829586 : f32
    %303 = vector.broadcast %cst_157 : f32 to vector<8x128xf32>
    %304 = arith.addf %302, %303 : vector<8x128xf32>
    %305 = arith.mulf %304, %291 : vector<8x128xf32>
    %cst_158 = arith.constant 0.000000e+00 : f32
    %306 = vector.broadcast %cst_158 : f32 to vector<8x128xf32>
    %307 = arith.subf %306, %285 : vector<8x128xf32>
    %308 = arith.mulf %307, %285 : vector<8x128xf32>
    %309 = math.exp %308 : vector<8x128xf32>
    %310 = arith.mulf %305, %309 : vector<8x128xf32>
    %cst_159 = arith.constant 1.000000e+00 : f32
    %311 = vector.broadcast %cst_159 : f32 to vector<8x128xf32>
    %312 = arith.subf %311, %310 : vector<8x128xf32>
    %cst_160 = arith.constant 0.000000e+00 : f32
    %313 = vector.broadcast %cst_160 : f32 to vector<8x128xf32>
    %314 = arith.cmpf oge, %284, %313 : vector<8x128xf32>
    %cst_161 = arith.constant 0.000000e+00 : f32
    %315 = vector.broadcast %cst_161 : f32 to vector<8x128xf32>
    %316 = arith.subf %315, %312 : vector<8x128xf32>
    %317 = arith.select %314, %312, %316 : vector<8x128xi1>, vector<8x128xf32>
    %cst_162 = arith.constant 1.000000e+00 : f32
    %318 = vector.broadcast %cst_162 : f32 to vector<8x128xf32>
    %319 = arith.addf %318, %317 : vector<8x128xf32>
    %320 = arith.mulf %282, %319 : vector<8x128xf32>
    %c0_163 = arith.constant 0 : index
    %c0_164 = arith.constant 0 : index
    %321 = vector.load %arg4[%c0_163, %c0_164] : memref<8x1xf32, #tpu.memory_space<vmem>>, vector<8x1xf32>
    %322 = vector.broadcast %321 : vector<8x1xf32> to vector<8x128xf32>
    %323 = arith.mulf %320, %322 : vector<8x128xf32>
    %c0_165 = arith.constant 0 : index
    %c0_166 = arith.constant 0 : index
    %324 = vector.load %arg13[%c0_165, %c0_166] : memref<8x128xf32, #tpu.memory_space<vmem>>, vector<8x128xf32>
    tpu.vector_store %arg13[%c0_165, %c0_166], %323 {strides = array<i32>} : memref<8x128xf32, #tpu.memory_space<vmem>>, vector<8x128xf32>,
    return
  }
}

</mosaic_0001>

<llo_original>
// kernel: dgcn_encoder_forward.1
$region0: #{dgcn_encoder_forward.1}
  #allocation0 [shape = 'u32[]', space=smem, size = 0x4, offset = 0x4, fixed_abs, tag = 'smem constant byte address 0x4 - core index']
  #allocation1 [shape = 'u32[144,128]{1,0:T(1,128)}', space=vmem, size = 0x12000, scoped, tag = 'internal scratch']
  #allocation2 [shape = 'f32[16,384]{1,0:T(8,128)}', space=vmem, size = 0x6000, scoped, tag = 'scratch operand']
  #allocation3 [shape = 'f32[2,16,128]{2,1,0:T(8,128)}', space=vmem, size = 0x4000, scoped, tag = 'scratch operand']
  %s0 = inlined_call_operand.vmem [shape: f32[16,128], index: 0, kind: input, shape index: {}]
  %s1 = inlined_call_operand.vmem [shape: f32[8,128], index: 1, kind: input, shape index: {}]
  %s2 = inlined_call_operand.vmem [shape: s32[16,4], index: 2, kind: input, shape index: {}]
  %s3 = inlined_call_operand.vmem [shape: s32[8,4], index: 3, kind: input, shape index: {}]
  %s4 = inlined_call_operand.vmem [shape: f32[8,1], index: 4, kind: input, shape index: {}]
  %s5 = inlined_call_operand.vmem [shape: f32[128,384], index: 5, kind: input, shape index: {}]
  %s6 = inlined_call_operand.vmem [shape: f32[1,384], index: 6, kind: input, shape index: {}]
  %s7 = inlined_call_operand.vmem [shape: f32[128,128], index: 7, kind: input, shape index: {}]
  %s8 = inlined_call_operand.vmem [shape: f32[128,128], index: 8, kind: input, shape index: {}]
  %s9 = inlined_call_operand.vmem [shape: f32[128,128], index: 9, kind: input, shape index: {}]
  %s10 = inlined_call_operand.vmem [shape: f32[128,128], index: 10, kind: input, shape index: {}]
  %s11 = inlined_call_operand.vmem [shape: f32[128,128], index: 11, kind: input, shape index: {}]
  %s12 = inlined_call_operand.vmem [shape: f32[1,128], index: 12, kind: input, shape index: {}]
  %s13 = inlined_call_operand.hbm [shape: f32[8,128], index: 13, kind: output, shape index: {0}]
  %s14 = inlined_call_operand.hbm [shape: f32[16,128], index: 14, kind: output, shape index: {1}]
  %15 = xla_tuple %s13, %s14
  %s16 = sld [smem:[#allocation0]]
  $region70: #{dgcn_encoder_forward.1} parent=0
    _
  %s18 = ssub.s32 1, %s16
  %s19 = scalar_select 0, %s18, %s16
  $region1: #{dgcn_encoder_forward.1} parent=0
    #allocation4 [shape = 'u8[4096]{0}', space=vmem, size = 0x1000, scoped, tag = 'output window, operand 0, single buffered']
    #allocation5 [shape = 's32[1]{0}', space=sflag, size = 0x4, scoped, tag = 'scoped memory for dgcn_encoder_forward.1']
    #allocation6 [shape = 'u8[8192]{0}', space=vmem, size = 0x2000, scoped, tag = 'output window, operand 1, single buffered']
    #allocation7 [shape = 's32[1]{0}', space=sflag, size = 0x4, scoped, tag = 'scoped memory for dgcn_encoder_forward.1']
    %20 = vsyncpa [#allocation5], 0
    %21 = vsyncpa [#allocation7], 0
    // Predicated region
    $region2: #{dgcn_encoder_forward.1} parent=1 // pred_check
      _
    $region3: #{dgcn_encoder_forward.1} parent=1 // pred_check_branch
      %23 = sbr.rel (0) target = $region5
    $region4: #{dgcn_encoder_forward.1} parent=1 // pred_region
      _
    $region5: #{dgcn_encoder_forward.1} parent=1 // pred_fallthru
      _
    // Predicated region
    $region6: #{dgcn_encoder_forward.1} parent=1 // pred_check
      _
    $region7: #{dgcn_encoder_forward.1} parent=1 // pred_check_branch
      %25 = sbr.rel (0) target = $region9
    $region8: #{dgcn_encoder_forward.1} parent=1 // pred_region
      _
    $region9: #{dgcn_encoder_forward.1} parent=1 // pred_fallthru
      _
    // Predicated region
    $region10: #{dgcn_encoder_forward.1} parent=1 // pred_check
      _
    $region11: #{dgcn_encoder_forward.1} parent=1 // pred_check_branch
      %27 = sbr.rel (0) target = $region13
    $region12: #{dgcn_encoder_forward.1} parent=1 // pred_region
      _
    $region13: #{dgcn_encoder_forward.1} parent=1 // pred_fallthru
      _
    // Predicated region
    $region14: #{dgcn_encoder_forward.1} parent=1 // pred_check
      _
    $region15: #{dgcn_encoder_forward.1} parent=1 // pred_check_branch
      %29 = sbr.rel (0) target = $region17
    $region16: #{dgcn_encoder_forward.1} parent=1 // pred_region
      _
    $region17: #{dgcn_encoder_forward.1} parent=1 // pred_fallthru
      _
    // Predicated region
    $region18: #{dgcn_encoder_forward.1} parent=1 // pred_check
      _
    $region19: #{dgcn_encoder_forward.1} parent=1 // pred_check_branch
      %31 = sbr.rel (0) target = $region21
    $region20: #{dgcn_encoder_forward.1} parent=1 // pred_region
      _
    $region21: #{dgcn_encoder_forward.1} parent=1 // pred_fallthru
      _
    // Predicated region
    $region22: #{dgcn_encoder_forward.1} parent=1 // pred_check
      _
    $region23: #{dgcn_encoder_forward.1} parent=1 // pred_check_branch
      %33 = sbr.rel (0) target = $region25
    $region24: #{dgcn_encoder_forward.1} parent=1 // pred_region
      _
    $region25: #{dgcn_encoder_forward.1} parent=1 // pred_fallthru
      _
    // Predicated region
    $region26: #{dgcn_encoder_forward.1} parent=1 // pred_check
      _
    $region27: #{dgcn_encoder_forward.1} parent=1 // pred_check_branch
      %35 = sbr.rel (0) target = $region29
    $region28: #{dgcn_encoder_forward.1} parent=1 // pred_region
      _
    $region29: #{dgcn_encoder_forward.1} parent=1 // pred_fallthru
      _
    // Predicated region
    $region30: #{dgcn_encoder_forward.1} parent=1 // pred_check
      _
    $region31: #{dgcn_encoder_forward.1} parent=1 // pred_check_branch
      %37 = sbr.rel (0) target = $region33
    $region32: #{dgcn_encoder_forward.1} parent=1 // pred_region
      _
    $region33: #{dgcn_encoder_forward.1} parent=1 // pred_fallthru
      _
    // Predicated region
    $region34: #{dgcn_encoder_forward.1} parent=1 // pred_check
      _
    $region35: #{dgcn_encoder_forward.1} parent=1 // pred_check_branch
      %39 = sbr.rel (0) target = $region37
    $region36: #{dgcn_encoder_forward.1} parent=1 // pred_region
      _
    $region37: #{dgcn_encoder_forward.1} parent=1 // pred_fallthru
      _
    // Predicated region
    $region38: #{dgcn_encoder_forward.1} parent=1 // pred_check
      _
    $region39: #{dgcn_encoder_forward.1} parent=1 // pred_check_branch
      %41 = sbr.rel (0) target = $region41
    $region40: #{dgcn_encoder_forward.1} parent=1 // pred_region
      _
    $region41: #{dgcn_encoder_forward.1} parent=1 // pred_fallthru
      _
    // Predicated region
    $region42: #{dgcn_encoder_forward.1} parent=1 // pred_check
      _
    $region43: #{dgcn_encoder_forward.1} parent=1 // pred_check_branch
      %43 = sbr.rel (0) target = $region45
    $region44: #{dgcn_encoder_forward.1} parent=1 // pred_region
      _
    $region45: #{dgcn_encoder_forward.1} parent=1 // pred_fallthru
      _
    // Predicated region
    $region46: #{dgcn_encoder_forward.1} parent=1 // pred_check
      _
    $region47: #{dgcn_encoder_forward.1} parent=1 // pred_check_branch
      %45 = sbr.rel (0) target = $region49
    $region48: #{dgcn_encoder_forward.1} parent=1 // pred_region
      _
    $region49: #{dgcn_encoder_forward.1} parent=1 // pred_fallthru
      _
    // Predicated region
    $region50: #{dgcn_encoder_forward.1} parent=1 // pred_check
      _
    $region51: #{dgcn_encoder_forward.1} parent=1 // pred_check_branch
      %47 = sbr.rel (0) target = $region53
    $region52: #{dgcn_encoder_forward.1} parent=1 // pred_region
      _
    $region53: #{dgcn_encoder_forward.1} parent=1 // pred_fallthru
      _
    %v48 = vld [vmem:[%s0] sm:$0xff]
    %v49 = vld [vmem:[%s0 + $0x8] sm:$0xff]
    %v50 = vld [vmem:[%s5] sm:$0xff]
    %v51 = vld [vmem:[%s5 + $0x8] sm:$0xff]
    %v52 = vld [vmem:[%s5 + $0x10] sm:$0xff]
    %v53 = vld [vmem:[%s5 + $0x18] sm:$0xff]
    %v54 = vld [vmem:[%s5 + $0x20] sm:$0xff]
    %v55 = vld [vmem:[%s5 + $0x28] sm:$0xff]
    %v56 = vld [vmem:[%s5 + $0x30] sm:$0xff]
    %v57 = vld [vmem:[%s5 + $0x38] sm:$0xff]
    %v58 = vld [vmem:[%s5 + $0x40] sm:$0xff]
    %v59 = vld [vmem:[%s5 + $0x48] sm:$0xff]
    %v60 = vld [vmem:[%s5 + $0x50] sm:$0xff]
    %v61 = vld [vmem:[%s5 + $0x58] sm:$0xff]
    %v62 = vld [vmem:[%s5 + $0x60] sm:$0xff]
    %v63 = vld [vmem:[%s5 + $0x68] sm:$0xff]
    %v64 = vld [vmem:[%s5 + $0x70] sm:$0xff]
    %v65 = vld [vmem:[%s5 + $0x78] sm:$0xff]
    %v66 = vld [vmem:[%s5 + $0x80] sm:$0xff]
    %v67 = vld [vmem:[%s5 + $0x88] sm:$0xff]
    %v68 = vld [vmem:[%s5 + $0x90] sm:$0xff]
    %v69 = vld [vmem:[%s5 + $0x98] sm:$0xff]
    %v70 = vld [vmem:[%s5 + $0xa0] sm:$0xff]
    %v71 = vld [vmem:[%s5 + $0xa8] sm:$0xff]
    %v72 = vld [vmem:[%s5 + $0xb0] sm:$0xff]
    %v73 = vld [vmem:[%s5 + $0xb8] sm:$0xff]
    %v74 = vld [vmem:[%s5 + $0xc0] sm:$0xff]
    %v75 = vld [vmem:[%s5 + $0xc8] sm:$0xff]
    %v76 = vld [vmem:[%s5 + $0xd0] sm:$0xff]
    %v77 = vld [vmem:[%s5 + $0xd8] sm:$0xff]
    %v78 = vld [vmem:[%s5 + $0xe0] sm:$0xff]
    %v79 = vld [vmem:[%s5 + $0xe8] sm:$0xff]
    %v80 = vld [vmem:[%s5 + $0xf0] sm:$0xff]
    %v81 = vld [vmem:[%s5 + $0xf8] sm:$0xff]
    %v82 = vld [vmem:[%s5 + $0x100] sm:$0xff]
    %v83 = vld [vmem:[%s5 + $0x108] sm:$0xff]
    %v84 = vld [vmem:[%s5 + $0x110] sm:$0xff]
    %v85 = vld [vmem:[%s5 + $0x118] sm:$0xff]
    %v86 = vld [vmem:[%s5 + $0x120] sm:$0xff]
    %v87 = vld [vmem:[%s5 + $0x128] sm:$0xff]
    %v88 = vld [vmem:[%s5 + $0x130] sm:$0xff]
    %v89 = vld [vmem:[%s5 + $0x138] sm:$0xff]
    %v90 = vld [vmem:[%s5 + $0x140] sm:$0xff]
    %v91 = vld [vmem:[%s5 + $0x148] sm:$0xff]
    %v92 = vld [vmem:[%s5 + $0x150] sm:$0xff]
    %v93 = vld [vmem:[%s5 + $0x158] sm:$0xff]
    %v94 = vld [vmem:[%s5 + $0x160] sm:$0xff]
    %v95 = vld [vmem:[%s5 + $0x168] sm:$0xff]
    %v96 = vld [vmem:[%s5 + $0x170] sm:$0xff]
    %v97 = vld [vmem:[%s5 + $0x178] sm:$0xff]
    %v98 = vld [vmem:[%s6] sm:$0x7]
    %v100 = vlaneseq
    %v101 = vshrl.u32 %v100, 7
    %v102 = vsub.s32 0, %v101
    %v103 = vrot.slane %v98, %v102
    %v104 = vlaneseq
    %v105 = vshrl.u32 %v104, 7
    %v106 = vsub.s32 1, %v105
    %v107 = vrot.slane %v98, %v106
    %v108 = vlaneseq
    %v109 = vshrl.u32 %v108, 7
    %v110 = vsub.s32 2, %v109
    %v111 = vrot.slane %v98, %v110
    %115 = vmatprep.subr.mxu0 %v51
    %116 = vmatpush1.msra.mxu0 %v50
    %117 = vmatprep.subr.mxu0 %v54
    %118 = vmatpush1.msra.mxu0 %v53
    %119 = vmatprep.subr.mxu0 %v57
    %120 = vmatpush1.msra.mxu0 %v56
    %121 = vmatprep.subr.mxu0 %v60
    %122 = vmatpush1.msra.mxu0 %v59
    %123 = vmatprep.subr.mxu0 %v63
    %124 = vmatpush1.msra.mxu0 %v62
    %125 = vmatprep.subr.mxu0 %v66
    %126 = vmatpush1.msra.mxu0 %v65
    %127 = vmatprep.subr.mxu0 %v69
    %128 = vmatpush1.msra.mxu0 %v68
    %129 = vmatprep.subr.mxu0 %v72
    %130 = vmatpush1.msra.mxu0 %v71
    %131 = vmatprep.subr.mxu0 %v75
    %132 = vmatpush1.msra.mxu0 %v74
    %133 = vmatprep.subr.mxu0 %v78
    %134 = vmatpush1.msra.mxu0 %v77
    %135 = vmatprep.subr.mxu0 %v81
    %136 = vmatpush1.msra.mxu0 %v80
    %137 = vmatprep.subr.mxu0 %v84
    %138 = vmatpush1.msra.mxu0 %v83
    %139 = vmatprep.subr.mxu0 %v87
    %140 = vmatpush1.msra.mxu0 %v86
    %141 = vmatprep.subr.mxu0 %v90
    %142 = vmatpush1.msra.mxu0 %v89
    %143 = vmatprep.subr.mxu0 %v93
    %144 = vmatpush1.msra.mxu0 %v92
    %145 = vmatprep.subr.mxu0 %v96
    %146 = vmatpush1.msra.mxu0 %v95
    %147 = vmatprep.subr.mxu0 0.0
    %148 = vmatpush1.msra.mxu0 0.0
    %149 = vmatprep.subr.mxu0 0.0
    %150 = vmatpush1.msra.mxu0 0.0
    %151 = vmatprep.subr.mxu0 0.0
    %152 = vmatpush1.msra.mxu0 0.0
    %153 = vmatprep.subr.mxu0 0.0
    %154 = vmatpush1.msra.mxu0 0.0
    %155 = vmatprep.subr.mxu0 0.0
    %156 = vmatpush1.msra.mxu0 0.0
    %157 = vmatprep.subr.mxu0 0.0
    %158 = vmatpush1.msra.mxu0 0.0
    %159 = vmatprep.subr.mxu0 0.0
    %160 = vmatpush1.msra.mxu0 0.0
    %161 = vmatprep.subr.mxu0 0.0
    %162 = vmatpush1.msra.mxu0 0.0
    %163 = vmatprep.subr.mxu0 0.0
    %164 = vmatpush1.msra.mxu0 0.0
    %165 = vmatprep.subr.mxu0 0.0
    %166 = vmatpush1.msra.mxu0 0.0
    %167 = vmatprep.subr.mxu0 0.0
    %168 = vmatpush1.msra.mxu0 0.0
    %169 = vmatprep.subr.mxu0 0.0
    %170 = vmatpush1.msra.mxu0 0.0
    %171 = vmatprep.subr.mxu0 0.0
    %172 = vmatpush1.msra.mxu0 0.0
    %173 = vmatprep.subr.mxu0 0.0
    %174 = vmatpush1.msra.mxu0 0.0
    %175 = vmatprep.subr.mxu0 0.0
    %176 = vmatpush1.msra.mxu0 0.0
    %177 = vmatprep.subr.mxu0 0.0
    %178 = vmatpush1.msra.mxu0 0.0
    %179 = vmatprep.mubr.f32.mxu0 0.0
    %180 = vmatmul.mubr.f32.gmra.mrb[0].mxu0 %v48
    %v181 = vpop.f32.mrb[0].mxu0
    %v182 = vadd.f32 %v103, %v181
    %v183 = vpop.f32.mrb[0].mxu0
    %v184 = vadd.f32 %v107, %v183
    %185 = vmatprep.mubr.f32.mxu0 0.0
    %186 = vmatmul.mubr.f32.gmra.mrb[0].mxu0 %v49
    %v187 = vpop.f32.mrb[0].mxu0
    %v188 = vadd.f32 %v103, %v187
    %v189 = vpop.f32.mrb[0].mxu0
    %v190 = vadd.f32 %v107, %v189
    %191 = vdwg.mxu0
    %192 = vmatprep.subr.mxu0 0.0
    %193 = vmatpush1.msra.mxu0 %v52
    %194 = vmatprep.subr.mxu0 0.0
    %195 = vmatpush1.msra.mxu0 %v55
    %196 = vmatprep.subr.mxu0 0.0
    %197 = vmatpush1.msra.mxu0 %v58
    %198 = vmatprep.subr.mxu0 0.0
    %199 = vmatpush1.msra.mxu0 %v61
    %200 = vmatprep.subr.mxu0 0.0
    %201 = vmatpush1.msra.mxu0 %v64
    %202 = vmatprep.subr.mxu0 0.0
    %203 = vmatpush1.msra.mxu0 %v67
    %204 = vmatprep.subr.mxu0 0.0
    %205 = vmatpush1.msra.mxu0 %v70
    %206 = vmatprep.subr.mxu0 0.0
    %207 = vmatpush1.msra.mxu0 %v73
    %208 = vmatprep.subr.mxu0 0.0
    %209 = vmatpush1.msra.mxu0 %v76
    %210 = vmatprep.subr.mxu0 0.0
    %211 = vmatpush1.msra.mxu0 %v79
    %212 = vmatprep.subr.mxu0 0.0
    %213 = vmatpush1.msra.mxu0 %v82
    %214 = vmatprep.subr.mxu0 0.0
    %215 = vmatpush1.msra.mxu0 %v85
    %216 = vmatprep.subr.mxu0 0.0
    %217 = vmatpush1.msra.mxu0 %v88
    %218 = vmatprep.subr.mxu0 0.0
    %219 = vmatpush1.msra.mxu0 %v91
    %220 = vmatprep.subr.mxu0 0.0
    %221 = vmatpush1.msra.mxu0 %v94
    %222 = vmatprep.subr.mxu0 0.0
    %223 = vmatpush1.msra.mxu0 %v97
    %224 = vmatprep.subr.mxu0 0.0
    %225 = vmatpush1.msra.mxu0 0.0
    %226 = vmatprep.subr.mxu0 0.0
    %227 = vmatpush1.msra.mxu0 0.0
    %228 = vmatprep.subr.mxu0 0.0
    %229 = vmatpush1.msra.mxu0 0.0
    %230 = vmatprep.subr.mxu0 0.0
    %231 = vmatpush1.msra.mxu0 0.0
    %232 = vmatprep.subr.mxu0 0.0
    %233 = vmatpush1.msra.mxu0 0.0
    %234 = vmatprep.subr.mxu0 0.0
    %235 = vmatpush1.msra.mxu0 0.0
    %236 = vmatprep.subr.mxu0 0.0
    %237 = vmatpush1.msra.mxu0 0.0
    %238 = vmatprep.subr.mxu0 0.0
    %239 = vmatpush1.msra.mxu0 0.0
    %240 = vmatprep.subr.mxu0 0.0
    %241 = vmatpush1.msra.mxu0 0.0
    %242 = vmatprep.subr.mxu0 0.0
    %243 = vmatpush1.msra.mxu0 0.0
    %244 = vmatprep.subr.mxu0 0.0
    %245 = vmatpush1.msra.mxu0 0.0
    %246 = vmatprep.subr.mxu0 0.0
    %247 = vmatpush1.msra.mxu0 0.0
    %248 = vmatprep.subr.mxu0 0.0
    %249 = vmatpush1.msra.mxu0 0.0
    %250 = vmatprep.subr.mxu0 0.0
    %251 = vmatpush1.msra.mxu0 0.0
    %252 = vmatprep.subr.mxu0 0.0
    %253 = vmatpush1.msra.mxu0 0.0
    %254 = vmatprep.subr.mxu0 0.0
    %255 = vmatpush1.msra.mxu0 0.0
    %256 = vmatprep.mubr.f32.mxu0 0.0
    %257 = vmatmul.mubr.f32.gmra.mrb[0].mxu0 %v48
    %v258 = vpop.f32.mrb[0].mxu0
    %v259 = vadd.f32 %v111, %v258
    %v260 = vpop.f32.mrb[0].mxu0
    %261 = vmatprep.mubr.f32.mxu0 0.0
    %262 = vmatmul.mubr.f32.gmra.mrb[0].mxu0 %v49
    %v263 = vpop.f32.mrb[0].mxu0
    %v264 = vadd.f32 %v111, %v263
    %v265 = vpop.f32.mrb[0].mxu0
    %266 = vdwg.mxu0
    %267 = vst [vmem:[#allocation2] sm:$0xff] %v182
    %268 = vst [vmem:[#allocation2 + $0x8] sm:$0xff] %v184
    %269 = vst [vmem:[#allocation2 + $0x10] sm:$0xff] %v259
    %270 = vst [vmem:[#allocation2 + $0x18] sm:$0xff] %v188
    %271 = vst [vmem:[#allocation2 + $0x20] sm:$0xff] %v190
    %272 = vst [vmem:[#allocation2 + $0x28] sm:$0xff] %v264
    %v273 = vld [vmem:[#allocation2] sm:$0xff]
    %v274 = vld [vmem:[#allocation2 + $0x18] sm:$0xff]
    %v275 = vld [vmem:[#allocation2 + $0x10] sm:$0xff]
    %v276 = vld [vmem:[#allocation2 + $0x28] sm:$0xff]
    %v277 = vmul.f32 %v273, 0.5
    %v278 = vmul.f32 %v274, 0.5
    %v279 = vtanh.pop %v277
    %v280 = vtanh.pop %v278
    %v281 = vadd.f32 %v279, 1.0
    %v282 = vadd.f32 %v280, 1.0
    %v283 = vmul.f32 %v281, 0.5
    %v284 = vmul.f32 %v282, 0.5
    %v285 = vtanh.pop %v275
    %v286 = vtanh.pop %v276
    %v287 = vmul.f32 %v283, %v285
    %v288 = vmul.f32 %v284, %v286
    %289 = vst [vmem:[#allocation3] sm:$0xff] %v287
    %290 = vst [vmem:[#allocation3 + $0x8] sm:$0xff] %v288
    %291 = vst [vmem:[#allocation3] sm:$0x1] 0.0
    %v292 = vld [vmem:[#allocation3] sm:$0xff]
    %v293 = vld [vmem:[#allocation3 + $0x8] sm:$0xff]
    %v294 = vld [vmem:[#allocation2] sm:$0xff]
    %v295 = vld [vmem:[#allocation2 + $0x18] sm:$0xff]
    %v296 = vld [vmem:[#allocation2 + $0x10] sm:$0xff]
    %v297 = vld [vmem:[#allocation2 + $0x28] sm:$0xff]
    %v298 = vld [vmem:[#allocation2 + $0x8] sm:$0xff]
    %v299 = vld [vmem:[#allocation2 + $0x20] sm:$0xff]
    %v300 = vld [vmem:[%s2] sm:$0xff]
    %v301 = vld [vmem:[%s2 + $0x8] sm:$0xff]
    %v302 = vlaneseq
    %v303 = vand.u32 %v302, 127
    %304 = vset.pattern.permute.xlu0 0
    %305 = vperm.xlu0 %304, %v300
    %v306 = vpop.permute.xlu0 %305
    %307 = vset.pattern.permute.xlu0 0
    %308 = vperm.xlu0 %307, %v301
    %v309 = vpop.permute.xlu0 %308
    %vm310 = vcmp.eq.s32.totalorder %v303, %v306
    %vm311 = vcmp.eq.s32.totalorder %v303, %v309
    %v312 = vsel %vm310, 1, 0
    %v313 = vsel %vm311, 1, 0
    %v314 = vcvt.s32.f32 %v312
    %v315 = vcvt.s32.f32 %v313
    %vm316 = vcmask 130048
    %v318 = vsel %vm316, %v314, 0
    %v321 = vsel %vm316, %v315, 0
    %323 = vmatprep.subr.mxu0 0.0
    %324 = vmatpush1.msra.mxu0 %v292
    %325 = vmatprep.subr.mxu0 0.0
    %326 = vmatpush1.msra.mxu0 %v293
    %327 = vmatprep.subr.mxu0 0.0
    %328 = vmatpush1.msra.mxu0 0.0
    %329 = vmatprep.subr.mxu0 0.0
    %330 = vmatpush1.msra.mxu0 0.0
    %331 = vmatprep.subr.mxu0 0.0
    %332 = vmatpush1.msra.mxu0 0.0
    %333 = vmatprep.subr.mxu0 0.0
    %334 = vmatpush1.msra.mxu0 0.0
    %335 = vmatprep.subr.mxu0 0.0
    %336 = vmatpush1.msra.mxu0 0.0
    %337 = vmatprep.subr.mxu0 0.0
    %338 = vmatpush1.msra.mxu0 0.0
    %339 = vmatprep.subr.mxu0 0.0
    %340 = vmatpush1.msra.mxu0 0.0
    %341 = vmatprep.subr.mxu0 0.0
    %342 = vmatpush1.msra.mxu0 0.0
    %343 = vmatprep.subr.mxu0 0.0
    %344 = vmatpush1.msra.mxu0 0.0
    %345 = vmatprep.subr.mxu0 0.0
    %346 = vmatpush1.msra.mxu0 0.0
    %347 = vmatprep.subr.mxu0 0.0
    %348 = vmatpush1.msra.mxu0 0.0
    %349 = vmatprep.subr.mxu0 0.0
    %350 = vmatpush1.msra.mxu0 0.0
    %351 = vmatprep.subr.mxu0 0.0
    %352 = vmatpush1.msra.mxu0 0.0
    %353 = vmatprep.subr.mxu0 0.0
    %354 = vmatpush1.msra.mxu0 0.0
    %355 = vmatprep.subr.mxu0 0.0
    %356 = vmatpush1.msra.mxu0 0.0
    %357 = vmatprep.subr.mxu0 0.0
    %358 = vmatpush1.msra.mxu0 0.0
    %359 = vmatprep.subr.mxu0 0.0
    %360 = vmatpush1.msra.mxu0 0.0
    %361 = vmatprep.subr.mxu0 0.0
    %362 = vmatpush1.msra.mxu0 0.0
    %363 = vmatprep.subr.mxu0 0.0
    %364 = vmatpush1.msra.mxu0 0.0
    %365 = vmatprep.subr.mxu0 0.0
    %366 = vmatpush1.msra.mxu0 0.0
    %367 = vmatprep.subr.mxu0 0.0
    %368 = vmatpush1.msra.mxu0 0.0
    %369 = vmatprep.subr.mxu0 0.0
    %370 = vmatpush1.msra.mxu0 0.0
    %371 = vmatprep.subr.mxu0 0.0
    %372 = vmatpush1.msra.mxu0 0.0
    %373 = vmatprep.subr.mxu0 0.0
    %374 = vmatpush1.msra.mxu0 0.0
    %375 = vmatprep.subr.mxu0 0.0
    %376 = vmatpush1.msra.mxu0 0.0
    %377 = vmatprep.subr.mxu0 0.0
    %378 = vmatpush1.msra.mxu0 0.0
    %379 = vmatprep.subr.mxu0 0.0
    %380 = vmatpush1.msra.mxu0 0.0
    %381 = vmatprep.subr.mxu0 0.0
    %382 = vmatpush1.msra.mxu0 0.0
    %383 = vmatprep.subr.mxu0 0.0
    %384 = vmatpush1.msra.mxu0 0.0
    %385 = vmatprep.subr.mxu0 0.0
    %386 = vmatpush1.msra.mxu0 0.0
    %387 = vmatprep.mubr.f32.mxu0 0.0
    %388 = vmatmul.mubr.f32.gmra.mrb[0].mxu0 %v318
    %v389 = vpop.f32.mrb[0].mxu0
    %v390 = vadd.f32 0.0, %v389
    %v391 = vpop.f32.mrb[0].mxu0
    %392 = vmatprep.mubr.f32.mxu0 0.0
    %393 = vmatmul.mubr.f32.gmra.mrb[0].mxu0 %v321
    %v394 = vpop.f32.mrb[0].mxu0
    %v395 = vadd.f32 0.0, %v394
    %v396 = vpop.f32.mrb[0].mxu0
    %397 = vdwg.mxu0
    %v398 = vld [vmem:[%s9] sm:$0xff]
    %v399 = vld [vmem:[%s9 + $0x8] sm:$0xff]
    %v400 = vld [vmem:[%s9 + $0x10] sm:$0xff]
    %v401 = vld [vmem:[%s9 + $0x18] sm:$0xff]
    %v402 = vld [vmem:[%s9 + $0x20] sm:$0xff]
    %v403 = vld [vmem:[%s9 + $0x28] sm:$0xff]
    %v404 = vld [vmem:[%s9 + $0x30] sm:$0xff]
    %v405 = vld [vmem:[%s9 + $0x38] sm:$0xff]
    %v406 = vld [vmem:[%s9 + $0x40] sm:$0xff]
    %v407 = vld [vmem:[%s9 + $0x48] sm:$0xff]
    %v408 = vld [vmem:[%s9 + $0x50] sm:$0xff]
    %v409 = vld [vmem:[%s9 + $0x58] sm:$0xff]
    %v410 = vld [vmem:[%s9 + $0x60] sm:$0xff]
    %v411 = vld [vmem:[%s9 + $0x68] sm:$0xff]
    %v412 = vld [vmem:[%s9 + $0x70] sm:$0xff]
    %v413 = vld [vmem:[%s9 + $0x78] sm:$0xff]
    %414 = vmatprep.subr.mxu0 0.0
    %415 = vmatpush1.msra.mxu0 %v398
    %416 = vmatprep.subr.mxu0 0.0
    %417 = vmatpush1.msra.mxu0 %v399
    %418 = vmatprep.subr.mxu0 0.0
    %419 = vmatpush1.msra.mxu0 %v400
    %420 = vmatprep.subr.mxu0 0.0
    %421 = vmatpush1.msra.mxu0 %v401
    %422 = vmatprep.subr.mxu0 0.0
    %423 = vmatpush1.msra.mxu0 %v402
    %424 = vmatprep.subr.mxu0 0.0
    %425 = vmatpush1.msra.mxu0 %v403
    %426 = vmatprep.subr.mxu0 0.0
    %427 = vmatpush1.msra.mxu0 %v404
    %428 = vmatprep.subr.mxu0 0.0
    %429 = vmatpush1.msra.mxu0 %v405
    %430 = vmatprep.subr.mxu0 0.0
    %431 = vmatpush1.msra.mxu0 %v406
    %432 = vmatprep.subr.mxu0 0.0
    %433 = vmatpush1.msra.mxu0 %v407
    %434 = vmatprep.subr.mxu0 0.0
    %435 = vmatpush1.msra.mxu0 %v408
    %436 = vmatprep.subr.mxu0 0.0
    %437 = vmatpush1.msra.mxu0 %v409
    %438 = vmatprep.subr.mxu0 0.0
    %439 = vmatpush1.msra.mxu0 %v410
    %440 = vmatprep.subr.mxu0 0.0
    %441 = vmatpush1.msra.mxu0 %v411
    %442 = vmatprep.subr.mxu0 0.0
    %443 = vmatpush1.msra.mxu0 %v412
    %444 = vmatprep.subr.mxu0 0.0
    %445 = vmatpush1.msra.mxu0 %v413
    %446 = vmatprep.subr.mxu0 0.0
    %447 = vmatpush1.msra.mxu0 0.0
    %448 = vmatprep.subr.mxu0 0.0
    %449 = vmatpush1.msra.mxu0 0.0
    %450 = vmatprep.subr.mxu0 0.0
    %451 = vmatpush1.msra.mxu0 0.0
    %452 = vmatprep.subr.mxu0 0.0
    %453 = vmatpush1.msra.mxu0 0.0
    %454 = vmatprep.subr.mxu0 0.0
    %455 = vmatpush1.msra.mxu0 0.0
    %456 = vmatprep.subr.mxu0 0.0
    %457 = vmatpush1.msra.mxu0 0.0
    %458 = vmatprep.subr.mxu0 0.0
    %459 = vmatpush1.msra.mxu0 0.0
    %460 = vmatprep.subr.mxu0 0.0
    %461 = vmatpush1.msra.mxu0 0.0
    %462 = vmatprep.subr.mxu0 0.0
    %463 = vmatpush1.msra.mxu0 0.0
    %464 = vmatprep.subr.mxu0 0.0
    %465 = vmatpush1.msra.mxu0 0.0
    %466 = vmatprep.subr.mxu0 0.0
    %467 = vmatpush1.msra.mxu0 0.0
    %468 = vmatprep.subr.mxu0 0.0
    %469 = vmatpush1.msra.mxu0 0.0
    %470 = vmatprep.subr.mxu0 0.0
    %471 = vmatpush1.msra.mxu0 0.0
    %472 = vmatprep.subr.mxu0 0.0
    %473 = vmatpush1.msra.mxu0 0.0
    %474 = vmatprep.subr.mxu0 0.0
    %475 = vmatpush1.msra.mxu0 0.0
    %476 = vmatprep.subr.mxu0 0.0
    %477 = vmatpush1.msra.mxu0 0.0
    %478 = vmatprep.mubr.f32.mxu0 0.0
    %479 = vmatmul.mubr.f32.gmra.mrb[0].mxu0 %v390
    %v480 = vpop.f32.mrb[0].mxu0
    %v481 = vadd.f32 0.0, %v480
    %v482 = vpop.f32.mrb[0].mxu0
    %483 = vmatprep.mubr.f32.mxu0 0.0
    %484 = vmatmul.mubr.f32.gmra.mrb[0].mxu0 %v395
    %v485 = vpop.f32.mrb[0].mxu0
    %v486 = vadd.f32 0.0, %v485
    %v487 = vpop.f32.mrb[0].mxu0
    %488 = vdwg.mxu0
    %v489 = vadd.f32 %v298, %v481
    %v490 = vadd.f32 %v299, %v486
    %v491 = vmul.f32 %v489, 0.5
    %v492 = vmul.f32 %v490, 0.5
    %v493 = vtanh.pop %v491
    %v494 = vtanh.pop %v492
    %v495 = vadd.f32 %v493, 1.0
    %v496 = vadd.f32 %v494, 1.0
    %v497 = vmul.f32 %v495, 0.5
    %v498 = vmul.f32 %v496, 0.5
    %v499 = vadd.f32 %v390, 0.0
    %v500 = vadd.f32 %v395, 0.0
    %v501 = vmul.f32 %v497, %v390
    %v502 = vmul.f32 %v498, %v395
    %v503 = vadd.f32 %v501, 0.0
    %v504 = vadd.f32 %v502, 0.0
    %505 = vset.pattern.permute.xlu0 1
    %506 = vperm.xlu0 %505, %v300
    %v507 = vpop.permute.xlu0 %506
    %508 = vset.pattern.permute.xlu0 1
    %509 = vperm.xlu0 %508, %v301
    %v510 = vpop.permute.xlu0 %509
    %vm511 = vcmp.eq.s32.totalorder %v303, %v507
    %vm512 = vcmp.eq.s32.totalorder %v303, %v510
    %v513 = vsel %vm511, 1, 0
    %v514 = vsel %vm512, 1, 0
    %v515 = vcvt.s32.f32 %v513
    %v516 = vcvt.s32.f32 %v514
    %v518 = vsel %vm316, %v515, 0
    %v521 = vsel %vm316, %v516, 0
    %523 = vmatprep.subr.mxu0 0.0
    %524 = vmatpush1.msra.mxu0 %v292
    %525 = vmatprep.subr.mxu0 0.0
    %526 = vmatpush1.msra.mxu0 %v293
    %527 = vmatprep.subr.mxu0 0.0
    %528 = vmatpush1.msra.mxu0 0.0
    %529 = vmatprep.subr.mxu0 0.0
    %530 = vmatpush1.msra.mxu0 0.0
    %531 = vmatprep.subr.mxu0 0.0
    %532 = vmatpush1.msra.mxu0 0.0
    %533 = vmatprep.subr.mxu0 0.0
    %534 = vmatpush1.msra.mxu0 0.0
    %535 = vmatprep.subr.mxu0 0.0
    %536 = vmatpush1.msra.mxu0 0.0
    %537 = vmatprep.subr.mxu0 0.0
    %538 = vmatpush1.msra.mxu0 0.0
    %539 = vmatprep.subr.mxu0 0.0
    %540 = vmatpush1.msra.mxu0 0.0
    %541 = vmatprep.subr.mxu0 0.0
    %542 = vmatpush1.msra.mxu0 0.0
    %543 = vmatprep.subr.mxu0 0.0
    %544 = vmatpush1.msra.mxu0 0.0
    %545 = vmatprep.subr.mxu0 0.0
    %546 = vmatpush1.msra.mxu0 0.0
    %547 = vmatprep.subr.mxu0 0.0
    %548 = vmatpush1.msra.mxu0 0.0
    %549 = vmatprep.subr.mxu0 0.0
    %550 = vmatpush1.msra.mxu0 0.0
    %551 = vmatprep.subr.mxu0 0.0
    %552 = vmatpush1.msra.mxu0 0.0
    %553 = vmatprep.subr.mxu0 0.0
    %554 = vmatpush1.msra.mxu0 0.0
    %555 = vmatprep.subr.mxu0 0.0
    %556 = vmatpush1.msra.mxu0 0.0
    %557 = vmatprep.subr.mxu0 0.0
    %558 = vmatpush1.msra.mxu0 0.0
    %559 = vmatprep.subr.mxu0 0.0
    %560 = vmatpush1.msra.mxu0 0.0
    %561 = vmatprep.subr.mxu0 0.0
    %562 = vmatpush1.msra.mxu0 0.0
    %563 = vmatprep.subr.mxu0 0.0
    %564 = vmatpush1.msra.mxu0 0.0
    %565 = vmatprep.subr.mxu0 0.0
    %566 = vmatpush1.msra.mxu0 0.0
    %567 = vmatprep.subr.mxu0 0.0
    %568 = vmatpush1.msra.mxu0 0.0
    %569 = vmatprep.subr.mxu0 0.0
    %570 = vmatpush1.msra.mxu0 0.0
    %571 = vmatprep.subr.mxu0 0.0
    %572 = vmatpush1.msra.mxu0 0.0
    %573 = vmatprep.subr.mxu0 0.0
    %574 = vmatpush1.msra.mxu0 0.0
    %575 = vmatprep.subr.mxu0 0.0
    %576 = vmatpush1.msra.mxu0 0.0
    %577 = vmatprep.subr.mxu0 0.0
    %578 = vmatpush1.msra.mxu0 0.0
    %579 = vmatprep.subr.mxu0 0.0
    %580 = vmatpush1.msra.mxu0 0.0
    %581 = vmatprep.subr.mxu0 0.0
    %582 = vmatpush1.msra.mxu0 0.0
    %583 = vmatprep.subr.mxu0 0.0
    %584 = vmatpush1.msra.mxu0 0.0
    %585 = vmatprep.subr.mxu0 0.0
    %586 = vmatpush1.msra.mxu0 0.0
    %587 = vmatprep.mubr.f32.mxu0 0.0
    %588 = vmatmul.mubr.f32.gmra.mrb[0].mxu0 %v518
    %v589 = vpop.f32.mrb[0].mxu0
    %v590 = vadd.f32 0.0, %v589
    %v591 = vpop.f32.mrb[0].mxu0
    %592 = vmatprep.mubr.f32.mxu0 0.0
    %593 = vmatmul.mubr.f32.gmra.mrb[0].mxu0 %v521
    %v594 = vpop.f32.mrb[0].mxu0
    %v595 = vadd.f32 0.0, %v594
    %v596 = vpop.f32.mrb[0].mxu0
    %597 = vdwg.mxu0
    %598 = vmatprep.subr.mxu0 0.0
    %599 = vmatpush1.msra.mxu0 %v398
    %600 = vmatprep.subr.mxu0 0.0
    %601 = vmatpush1.msra.mxu0 %v399
    %602 = vmatprep.subr.mxu0 0.0
    %603 = vmatpush1.msra.mxu0 %v400
    %604 = vmatprep.subr.mxu0 0.0
    %605 = vmatpush1.msra.mxu0 %v401
    %606 = vmatprep.subr.mxu0 0.0
    %607 = vmatpush1.msra.mxu0 %v402
    %608 = vmatprep.subr.mxu0 0.0
    %609 = vmatpush1.msra.mxu0 %v403
    %610 = vmatprep.subr.mxu0 0.0
    %611 = vmatpush1.msra.mxu0 %v404
    %612 = vmatprep.subr.mxu0 0.0
    %613 = vmatpush1.msra.mxu0 %v405
    %614 = vmatprep.subr.mxu0 0.0
    %615 = vmatpush1.msra.mxu0 %v406
    %616 = vmatprep.subr.mxu0 0.0
    %617 = vmatpush1.msra.mxu0 %v407
    %618 = vmatprep.subr.mxu0 0.0
    %619 = vmatpush1.msra.mxu0 %v408
    %620 = vmatprep.subr.mxu0 0.0
    %621 = vmatpush1.msra.mxu0 %v409
    %622 = vmatprep.subr.mxu0 0.0
    %623 = vmatpush1.msra.mxu0 %v410
    %624 = vmatprep.subr.mxu0 0.0
    %625 = vmatpush1.msra.mxu0 %v411
    %626 = vmatprep.subr.mxu0 0.0
    %627 = vmatpush1.msra.mxu0 %v412
    %628 = vmatprep.subr.mxu0 0.0
    %629 = vmatpush1.msra.mxu0 %v413
    %630 = vmatprep.subr.mxu0 0.0
    %631 = vmatpush1.msra.mxu0 0.0
    %632 = vmatprep.subr.mxu0 0.0
    %633 = vmatpush1.msra.mxu0 0.0
    %634 = vmatprep.subr.mxu0 0.0
    %635 = vmatpush1.msra.mxu0 0.0
    %636 = vmatprep.subr.mxu0 0.0
    %637 = vmatpush1.msra.mxu0 0.0
    %638 = vmatprep.subr.mxu0 0.0
    %639 = vmatpush1.msra.mxu0 0.0
    %640 = vmatprep.subr.mxu0 0.0
    %641 = vmatpush1.msra.mxu0 0.0
    %642 = vmatprep.subr.mxu0 0.0
    %643 = vmatpush1.msra.mxu0 0.0
    %644 = vmatprep.subr.mxu0 0.0
    %645 = vmatpush1.msra.mxu0 0.0
    %646 = vmatprep.subr.mxu0 0.0
    %647 = vmatpush1.msra.mxu0 0.0
    %648 = vmatprep.subr.mxu0 0.0
    %649 = vmatpush1.msra.mxu0 0.0
    %650 = vmatprep.subr.mxu0 0.0
    %651 = vmatpush1.msra.mxu0 0.0
    %652 = vmatprep.subr.mxu0 0.0
    %653 = vmatpush1.msra.mxu0 0.0
    %654 = vmatprep.subr.mxu0 0.0
    %655 = vmatpush1.msra.mxu0 0.0
    %656 = vmatprep.subr.mxu0 0.0
    %657 = vmatpush1.msra.mxu0 0.0
    %658 = vmatprep.subr.mxu0 0.0
    %659 = vmatpush1.msra.mxu0 0.0
    %660 = vmatprep.subr.mxu0 0.0
    %661 = vmatpush1.msra.mxu0 0.0
    %662 = vmatprep.mubr.f32.mxu0 0.0
    %663 = vmatmul.mubr.f32.gmra.mrb[0].mxu0 %v590
    %v664 = vpop.f32.mrb[0].mxu0
    %v665 = vadd.f32 0.0, %v664
    %v666 = vpop.f32.mrb[0].mxu0
    %667 = vmatprep.mubr.f32.mxu0 0.0
    %668 = vmatmul.mubr.f32.gmra.mrb[0].mxu0 %v595
    %v669 = vpop.f32.mrb[0].mxu0
    %v670 = vadd.f32 0.0, %v669
    %v671 = vpop.f32.mrb[0].mxu0
    %672 = vdwg.mxu0
    %v673 = vadd.f32 %v298, %v665
    %v674 = vadd.f32 %v299, %v670
    %v675 = vmul.f32 %v673, 0.5
    %v676 = vmul.f32 %v674, 0.5
    %v677 = vtanh.pop %v675
    %v678 = vtanh.pop %v676
    %v679 = vadd.f32 %v677, 1.0
    %v680 = vadd.f32 %v678, 1.0
    %v681 = vmul.f32 %v679, 0.5
    %v682 = vmul.f32 %v680, 0.5
    %v683 = vadd.f32 %v499, %v590
    %v684 = vadd.f32 %v500, %v595
    %v685 = vmul.f32 %v681, %v590
    %v686 = vmul.f32 %v682, %v595
    %v687 = vadd.f32 %v503, %v685
    %v688 = vadd.f32 %v504, %v686
    %689 = vset.pattern.permute.xlu0 2
    %690 = vperm.xlu0 %689, %v300
    %v691 = vpop.permute.xlu0 %690
    %692 = vset.pattern.permute.xlu0 2
    %693 = vperm.xlu0 %692, %v301
    %v694 = vpop.permute.xlu0 %693
    %vm695 = vcmp.eq.s32.totalorder %v303, %v691
    %vm696 = vcmp.eq.s32.totalorder %v303, %v694
    %v697 = vsel %vm695, 1, 0
    %v698 = vsel %vm696, 1, 0
    %v699 = vcvt.s32.f32 %v697
    %v700 = vcvt.s32.f32 %v698
    %v702 = vsel %vm316, %v699, 0
    %v705 = vsel %vm316, %v700, 0
    %707 = vmatprep.subr.mxu0 0.0
    %708 = vmatpush1.msra.mxu0 %v292
    %709 = vmatprep.subr.mxu0 0.0
    %710 = vmatpush1.msra.mxu0 %v293
    %711 = vmatprep.subr.mxu0 0.0
    %712 = vmatpush1.msra.mxu0 0.0
    %713 = vmatprep.subr.mxu0 0.0
    %714 = vmatpush1.msra.mxu0 0.0
    %715 = vmatprep.subr.mxu0 0.0
    %716 = vmatpush1.msra.mxu0 0.0
    %717 = vmatprep.subr.mxu0 0.0
    %718 = vmatpush1.msra.mxu0 0.0
    %719 = vmatprep.subr.mxu0 0.0
    %720 = vmatpush1.msra.mxu0 0.0
    %721 = vmatprep.subr.mxu0 0.0
    %722 = vmatpush1.msra.mxu0 0.0
    %723 = vmatprep.subr.mxu0 0.0
    %724 = vmatpush1.msra.mxu0 0.0
    %725 = vmatprep.subr.mxu0 0.0
    %726 = vmatpush1.msra.mxu0 0.0
    %727 = vmatprep.subr.mxu0 0.0
    %728 = vmatpush1.msra.mxu0 0.0
    %729 = vmatprep.subr.mxu0 0.0
    %730 = vmatpush1.msra.mxu0 0.0
    %731 = vmatprep.subr.mxu0 0.0
    %732 = vmatpush1.msra.mxu0 0.0
    %733 = vmatprep.subr.mxu0 0.0
    %734 = vmatpush1.msra.mxu0 0.0
    %735 = vmatprep.subr.mxu0 0.0
    %736 = vmatpush1.msra.mxu0 0.0
    %737 = vmatprep.subr.mxu0 0.0
    %738 = vmatpush1.msra.mxu0 0.0
    %739 = vmatprep.subr.mxu0 0.0
    %740 = vmatpush1.msra.mxu0 0.0
    %741 = vmatprep.subr.mxu0 0.0
    %742 = vmatpush1.msra.mxu0 0.0
    %743 = vmatprep.subr.mxu0 0.0
    %744 = vmatpush1.msra.mxu0 0.0
    %745 = vmatprep.subr.mxu0 0.0
    %746 = vmatpush1.msra.mxu0 0.0
    %747 = vmatprep.subr.mxu0 0.0
    %748 = vmatpush1.msra.mxu0 0.0
    %749 = vmatprep.subr.mxu0 0.0
    %750 = vmatpush1.msra.mxu0 0.0
    %751 = vmatprep.subr.mxu0 0.0
    %752 = vmatpush1.msra.mxu0 0.0
    %753 = vmatprep.subr.mxu0 0.0
    %754 = vmatpush1.msra.mxu0 0.0
    %755 = vmatprep.subr.mxu0 0.0
    %756 = vmatpush1.msra.mxu0 0.0
    %757 = vmatprep.subr.mxu0 0.0
    %758 = vmatpush1.msra.mxu0 0.0
    %759 = vmatprep.subr.mxu0 0.0
    %760 = vmatpush1.msra.mxu0 0.0
    %761 = vmatprep.subr.mxu0 0.0
    %762 = vmatpush1.msra.mxu0 0.0
    %763 = vmatprep.subr.mxu0 0.0
    %764 = vmatpush1.msra.mxu0 0.0
    %765 = vmatprep.subr.mxu0 0.0
    %766 = vmatpush1.msra.mxu0 0.0
    %767 = vmatprep.subr.mxu0 0.0
    %768 = vmatpush1.msra.mxu0 0.0
    %769 = vmatprep.subr.mxu0 0.0
    %770 = vmatpush1.msra.mxu0 0.0
    %771 = vmatprep.mubr.f32.mxu0 0.0
    %772 = vmatmul.mubr.f32.gmra.mrb[0].mxu0 %v702
    %v773 = vpop.f32.mrb[0].mxu0
    %v774 = vadd.f32 0.0, %v773
    %v775 = vpop.f32.mrb[0].mxu0
    %776 = vmatprep.mubr.f32.mxu0 0.0
    %777 = vmatmul.mubr.f32.gmra.mrb[0].mxu0 %v705
    %v778 = vpop.f32.mrb[0].mxu0
    %v779 = vadd.f32 0.0, %v778
    %v780 = vpop.f32.mrb[0].mxu0
    %781 = vdwg.mxu0
    %782 = vmatprep.subr.mxu0 0.0
    %783 = vmatpush1.msra.mxu0 %v398
    %784 = vmatprep.subr.mxu0 0.0
    %785 = vmatpush1.msra.mxu0 %v399
    %786 = vmatprep.subr.mxu0 0.0
    %787 = vmatpush1.msra.mxu0 %v400
    %788 = vmatprep.subr.mxu0 0.0
    %789 = vmatpush1.msra.mxu0 %v401
    %790 = vmatprep.subr.mxu0 0.0
    %791 = vmatpush1.msra.mxu0 %v402
    %792 = vmatprep.subr.mxu0 0.0
    %793 = vmatpush1.msra.mxu0 %v403
    %794 = vmatprep.subr.mxu0 0.0
    %795 = vmatpush1.msra.mxu0 %v404
    %796 = vmatprep.subr.mxu0 0.0
    %797 = vmatpush1.msra.mxu0 %v405
    %798 = vmatprep.subr.mxu0 0.0
    %799 = vmatpush1.msra.mxu0 %v406
    %800 = vmatprep.subr.mxu0 0.0
    %801 = vmatpush1.msra.mxu0 %v407
    %802 = vmatprep.subr.mxu0 0.0
    %803 = vmatpush1.msra.mxu0 %v408
    %804 = vmatprep.subr.mxu0 0.0
    %805 = vmatpush1.msra.mxu0 %v409
    %806 = vmatprep.subr.mxu0 0.0
    %807 = vmatpush1.msra.mxu0 %v410
    %808 = vmatprep.subr.mxu0 0.0
    %809 = vmatpush1.msra.mxu0 %v411
    %810 = vmatprep.subr.mxu0 0.0
    %811 = vmatpush1.msra.mxu0 %v412
    %812 = vmatprep.subr.mxu0 0.0
    %813 = vmatpush1.msra.mxu0 %v413
    %814 = vmatprep.subr.mxu0 0.0
    %815 = vmatpush1.msra.mxu0 0.0
    %816 = vmatprep.subr.mxu0 0.0
    %817 = vmatpush1.msra.mxu0 0.0
    %818 = vmatprep.subr.mxu0 0.0
    %819 = vmatpush1.msra.mxu0 0.0
    %820 = vmatprep.subr.mxu0 0.0
    %821 = vmatpush1.msra.mxu0 0.0
    %822 = vmatprep.subr.mxu0 0.0
    %823 = vmatpush1.msra.mxu0 0.0
    %824 = vmatprep.subr.mxu0 0.0
    %825 = vmatpush1.msra.mxu0 0.0
    %826 = vmatprep.subr.mxu0 0.0
    %827 = vmatpush1.msra.mxu0 0.0
    %828 = vmatprep.subr.mxu0 0.0
    %829 = vmatpush1.msra.mxu0 0.0
    %830 = vmatprep.subr.mxu0 0.0
    %831 = vmatpush1.msra.mxu0 0.0
    %832 = vmatprep.subr.mxu0 0.0
    %833 = vmatpush1.msra.mxu0 0.0
    %834 = vmatprep.subr.mxu0 0.0
    %835 = vmatpush1.msra.mxu0 0.0
    %836 = vmatprep.subr.mxu0 0.0
    %837 = vmatpush1.msra.mxu0 0.0
    %838 = vmatprep.subr.mxu0 0.0
    %839 = vmatpush1.msra.mxu0 0.0
    %840 = vmatprep.subr.mxu0 0.0
    %841 = vmatpush1.msra.mxu0 0.0
    %842 = vmatprep.subr.mxu0 0.0
    %843 = vmatpush1.msra.mxu0 0.0
    %844 = vmatprep.subr.mxu0 0.0
    %845 = vmatpush1.msra.mxu0 0.0
    %846 = vmatprep.mubr.f32.mxu0 0.0
    %847 = vmatmul.mubr.f32.gmra.mrb[0].mxu0 %v774
    %v848 = vpop.f32.mrb[0].mxu0
    %v849 = vadd.f32 0.0, %v848
    %v850 = vpop.f32.mrb[0].mxu0
    %851 = vmatprep.mubr.f32.mxu0 0.0
    %852 = vmatmul.mubr.f32.gmra.mrb[0].mxu0 %v779
    %v853 = vpop.f32.mrb[0].mxu0
    %v854 = vadd.f32 0.0, %v853
    %v855 = vpop.f32.mrb[0].mxu0
    %856 = vdwg.mxu0
    %v857 = vadd.f32 %v298, %v849
    %v858 = vadd.f32 %v299, %v854
    %v859 = vmul.f32 %v857, 0.5
    %v860 = vmul.f32 %v858, 0.5
    %v861 = vtanh.pop %v859
    %v862 = vtanh.pop %v860
    %v863 = vadd.f32 %v861, 1.0
    %v864 = vadd.f32 %v862, 1.0
    %v865 = vmul.f32 %v863, 0.5
    %v866 = vmul.f32 %v864, 0.5
    %v867 = vadd.f32 %v683, %v774
    %v868 = vadd.f32 %v684, %v779
    %v869 = vmul.f32 %v865, %v774
    %v870 = vmul.f32 %v866, %v779
    %v871 = vadd.f32 %v687, %v869
    %v872 = vadd.f32 %v688, %v870
    %873 = vset.pattern.permute.xlu0 3
    %874 = vperm.xlu0 %873, %v300
    %v875 = vpop.permute.xlu0 %874
    %876 = vset.pattern.permute.xlu0 3
    %877 = vperm.xlu0 %876, %v301
    %v878 = vpop.permute.xlu0 %877
    %vm879 = vcmp.eq.s32.totalorder %v303, %v875
    %vm880 = vcmp.eq.s32.totalorder %v303, %v878
    %v881 = vsel %vm879, 1, 0
    %v882 = vsel %vm880, 1, 0
    %v883 = vcvt.s32.f32 %v881
    %v884 = vcvt.s32.f32 %v882
    %v886 = vsel %vm316, %v883, 0
    %v889 = vsel %vm316, %v884, 0
    %891 = vmatprep.subr.mxu0 0.0
    %892 = vmatpush1.msra.mxu0 %v292
    %893 = vmatprep.subr.mxu0 0.0
    %894 = vmatpush1.msra.mxu0 %v293
    %895 = vmatprep.subr.mxu0 0.0
    %896 = vmatpush1.msra.mxu0 0.0
    %897 = vmatprep.subr.mxu0 0.0
    %898 = vmatpush1.msra.mxu0 0.0
    %899 = vmatprep.subr.mxu0 0.0
    %900 = vmatpush1.msra.mxu0 0.0
    %901 = vmatprep.subr.mxu0 0.0
    %902 = vmatpush1.msra.mxu0 0.0
    %903 = vmatprep.subr.mxu0 0.0
    %904 = vmatpush1.msra.mxu0 0.0
    %905 = vmatprep.subr.mxu0 0.0
    %906 = vmatpush1.msra.mxu0 0.0
    %907 = vmatprep.subr.mxu0 0.0
    %908 = vmatpush1.msra.mxu0 0.0
    %909 = vmatprep.subr.mxu0 0.0
    %910 = vmatpush1.msra.mxu0 0.0
    %911 = vmatprep.subr.mxu0 0.0
    %912 = vmatpush1.msra.mxu0 0.0
    %913 = vmatprep.subr.mxu0 0.0
    %914 = vmatpush1.msra.mxu0 0.0
    %915 = vmatprep.subr.mxu0 0.0
    %916 = vmatpush1.msra.mxu0 0.0
    %917 = vmatprep.subr.mxu0 0.0
    %918 = vmatpush1.msra.mxu0 0.0
    %919 = vmatprep.subr.mxu0 0.0
    %920 = vmatpush1.msra.mxu0 0.0
    %921 = vmatprep.subr.mxu0 0.0
    %922 = vmatpush1.msra.mxu0 0.0
    %923 = vmatprep.subr.mxu0 0.0
    %924 = vmatpush1.msra.mxu0 0.0
    %925 = vmatprep.subr.mxu0 0.0
    %926 = vmatpush1.msra.mxu0 0.0
    %927 = vmatprep.subr.mxu0 0.0
    %928 = vmatpush1.msra.mxu0 0.0
    %929 = vmatprep.subr.mxu0 0.0
    %930 = vmatpush1.msra.mxu0 0.0
    %931 = vmatprep.subr.mxu0 0.0
    %932 = vmatpush1.msra.mxu0 0.0
    %933 = vmatprep.subr.mxu0 0.0
    %934 = vmatpush1.msra.mxu0 0.0
    %935 = vmatprep.subr.mxu0 0.0
    %936 = vmatpush1.msra.mxu0 0.0
    %937 = vmatprep.subr.mxu0 0.0
    %938 = vmatpush1.msra.mxu0 0.0
    %939 = vmatprep.subr.mxu0 0.0
    %940 = vmatpush1.msra.mxu0 0.0
    %941 = vmatprep.subr.mxu0 0.0
    %942 = vmatpush1.msra.mxu0 0.0
    %943 = vmatprep.subr.mxu0 0.0
    %944 = vmatpush1.msra.mxu0 0.0
    %945 = vmatprep.subr.mxu0 0.0
    %946 = vmatpush1.msra.mxu0 0.0
    %947 = vmatprep.subr.mxu0 0.0
    %948 = vmatpush1.msra.mxu0 0.0
    %949 = vmatprep.subr.mxu0 0.0
    %950 = vmatpush1.msra.mxu0 0.0
    %951 = vmatprep.subr.mxu0 0.0
    %952 = vmatpush1.msra.mxu0 0.0
    %953 = vmatprep.subr.mxu0 0.0
    %954 = vmatpush1.msra.mxu0 0.0
    %955 = vmatprep.mubr.f32.mxu0 0.0
    %956 = vmatmul.mubr.f32.gmra.mrb[0].mxu0 %v886
    %v957 = vpop.f32.mrb[0].mxu0
    %v958 = vadd.f32 0.0, %v957
    %v959 = vpop.f32.mrb[0].mxu0
    %960 = vmatprep.mubr.f32.mxu0 0.0
    %961 = vmatmul.mubr.f32.gmra.mrb[0].mxu0 %v889
    %v962 = vpop.f32.mrb[0].mxu0
    %v963 = vadd.f32 0.0, %v962
    %v964 = vpop.f32.mrb[0].mxu0
    %965 = vdwg.mxu0
    %966 = vmatprep.subr.mxu0 0.0
    %967 = vmatpush1.msra.mxu0 %v398
    %968 = vmatprep.subr.mxu0 0.0
    %969 = vmatpush1.msra.mxu0 %v399
    %970 = vmatprep.subr.mxu0 0.0
    %971 = vmatpush1.msra.mxu0 %v400
    %972 = vmatprep.subr.mxu0 0.0
    %973 = vmatpush1.msra.mxu0 %v401
    %974 = vmatprep.subr.mxu0 0.0
    %975 = vmatpush1.msra.mxu0 %v402
    %976 = vmatprep.subr.mxu0 0.0
    %977 = vmatpush1.msra.mxu0 %v403
    %978 = vmatprep.subr.mxu0 0.0
    %979 = vmatpush1.msra.mxu0 %v404
    %980 = vmatprep.subr.mxu0 0.0
    %981 = vmatpush1.msra.mxu0 %v405
    %982 = vmatprep.subr.mxu0 0.0
    %983 = vmatpush1.msra.mxu0 %v406
    %984 = vmatprep.subr.mxu0 0.0
    %985 = vmatpush1.msra.mxu0 %v407
    %986 = vmatprep.subr.mxu0 0.0
    %987 = vmatpush1.msra.mxu0 %v408
    %988 = vmatprep.subr.mxu0 0.0
    %989 = vmatpush1.msra.mxu0 %v409
    %990 = vmatprep.subr.mxu0 0.0
    %991 = vmatpush1.msra.mxu0 %v410
    %992 = vmatprep.subr.mxu0 0.0
    %993 = vmatpush1.msra.mxu0 %v411
    %994 = vmatprep.subr.mxu0 0.0
    %995 = vmatpush1.msra.mxu0 %v412
    %996 = vmatprep.subr.mxu0 0.0
    %997 = vmatpush1.msra.mxu0 %v413
    %998 = vmatprep.subr.mxu0 0.0
    %999 = vmatpush1.msra.mxu0 0.0
    %1000 = vmatprep.subr.mxu0 0.0
    %1001 = vmatpush1.msra.mxu0 0.0
    %1002 = vmatprep.subr.mxu0 0.0
    %1003 = vmatpush1.msra.mxu0 0.0
    %1004 = vmatprep.subr.mxu0 0.0
    %1005 = vmatpush1.msra.mxu0 0.0
    %1006 = vmatprep.subr.mxu0 0.0
    %1007 = vmatpush1.msra.mxu0 0.0
    %1008 = vmatprep.subr.mxu0 0.0
    %1009 = vmatpush1.msra.mxu0 0.0
    %1010 = vmatprep.subr.mxu0 0.0
    %1011 = vmatpush1.msra.mxu0 0.0
    %1012 = vmatprep.subr.mxu0 0.0
    %1013 = vmatpush1.msra.mxu0 0.0
    %1014 = vmatprep.subr.mxu0 0.0
    %1015 = vmatpush1.msra.mxu0 0.0
    %1016 = vmatprep.subr.mxu0 0.0
    %1017 = vmatpush1.msra.mxu0 0.0
    %1018 = vmatprep.subr.mxu0 0.0
    %1019 = vmatpush1.msra.mxu0 0.0
    %1020 = vmatprep.subr.mxu0 0.0
    %1021 = vmatpush1.msra.mxu0 0.0
    %1022 = vmatprep.subr.mxu0 0.0
    %1023 = vmatpush1.msra.mxu0 0.0
    %1024 = vmatprep.subr.mxu0 0.0
    %1025 = vmatpush1.msra.mxu0 0.0
    %1026 = vmatprep.subr.mxu0 0.0
    %1027 = vmatpush1.msra.mxu0 0.0
    %1028 = vmatprep.subr.mxu0 0.0
    %1029 = vmatpush1.msra.mxu0 0.0
    %1030 = vmatprep.mubr.f32.mxu0 0.0
    %1031 = vmatmul.mubr.f32.gmra.mrb[0].mxu0 %v958
    %v1032 = vpop.f32.mrb[0].mxu0
    %v1033 = vadd.f32 0.0, %v1032
    %v1034 = vpop.f32.mrb[0].mxu0
    %1035 = vmatprep.mubr.f32.mxu0 0.0
    %1036 = vmatmul.mubr.f32.gmra.mrb[0].mxu0 %v963
    %v1037 = vpop.f32.mrb[0].mxu0
    %v1038 = vadd.f32 0.0, %v1037
    %v1039 = vpop.f32.mrb[0].mxu0
    %1040 = vdwg.mxu0
    %v1041 = vadd.f32 %v298, %v1033
    %v1042 = vadd.f32 %v299, %v1038
    %v1043 = vmul.f32 %v1041, 0.5
    %v1044 = vmul.f32 %v1042, 0.5
    %v1045 = vtanh.pop %v1043
    %v1046 = vtanh.pop %v1044
    %v1047 = vadd.f32 %v1045, 1.0
    %v1048 = vadd.f32 %v1046, 1.0
    %v1049 = vmul.f32 %v1047, 0.5
    %v1050 = vmul.f32 %v1048, 0.5
    %v1051 = vadd.f32 %v867, %v958
    %v1052 = vadd.f32 %v868, %v963
    %v1053 = vmul.f32 %v1049, %v958
    %v1054 = vmul.f32 %v1050, %v963
    %v1055 = vadd.f32 %v871, %v1053
    %v1056 = vadd.f32 %v872, %v1054
    %v1057 = vld [vmem:[%s7] sm:$0xff]
    %v1058 = vld [vmem:[%s7 + $0x8] sm:$0xff]
    %v1059 = vld [vmem:[%s7 + $0x10] sm:$0xff]
    %v1060 = vld [vmem:[%s7 + $0x18] sm:$0xff]
    %v1061 = vld [vmem:[%s7 + $0x20] sm:$0xff]
    %v1062 = vld [vmem:[%s7 + $0x28] sm:$0xff]
    %v1063 = vld [vmem:[%s7 + $0x30] sm:$0xff]
    %v1064 = vld [vmem:[%s7 + $0x38] sm:$0xff]
    %v1065 = vld [vmem:[%s7 + $0x40] sm:$0xff]
    %v1066 = vld [vmem:[%s7 + $0x48] sm:$0xff]
    %v1067 = vld [vmem:[%s7 + $0x50] sm:$0xff]
    %v1068 = vld [vmem:[%s7 + $0x58] sm:$0xff]
    %v1069 = vld [vmem:[%s7 + $0x60] sm:$0xff]
    %v1070 = vld [vmem:[%s7 + $0x68] sm:$0xff]
    %v1071 = vld [vmem:[%s7 + $0x70] sm:$0xff]
    %v1072 = vld [vmem:[%s7 + $0x78] sm:$0xff]
    %1073 = vmatprep.subr.mxu0 0.0
    %1074 = vmatpush1.msra.mxu0 %v1057
    %1075 = vmatprep.subr.mxu0 0.0
    %1076 = vmatpush1.msra.mxu0 %v1058
    %1077 = vmatprep.subr.mxu0 0.0
    %1078 = vmatpush1.msra.mxu0 %v1059
    %1079 = vmatprep.subr.mxu0 0.0
    %1080 = vmatpush1.msra.mxu0 %v1060
    %1081 = vmatprep.subr.mxu0 0.0
    %1082 = vmatpush1.msra.mxu0 %v1061
    %1083 = vmatprep.subr.mxu0 0.0
    %1084 = vmatpush1.msra.mxu0 %v1062
    %1085 = vmatprep.subr.mxu0 0.0
    %1086 = vmatpush1.msra.mxu0 %v1063
    %1087 = vmatprep.subr.mxu0 0.0
    %1088 = vmatpush1.msra.mxu0 %v1064
    %1089 = vmatprep.subr.mxu0 0.0
    %1090 = vmatpush1.msra.mxu0 %v1065
    %1091 = vmatprep.subr.mxu0 0.0
    %1092 = vmatpush1.msra.mxu0 %v1066
    %1093 = vmatprep.subr.mxu0 0.0
    %1094 = vmatpush1.msra.mxu0 %v1067
    %1095 = vmatprep.subr.mxu0 0.0
    %1096 = vmatpush1.msra.mxu0 %v1068
    %1097 = vmatprep.subr.mxu0 0.0
    %1098 = vmatpush1.msra.mxu0 %v1069
    %1099 = vmatprep.subr.mxu0 0.0
    %1100 = vmatpush1.msra.mxu0 %v1070
    %1101 = vmatprep.subr.mxu0 0.0
    %1102 = vmatpush1.msra.mxu0 %v1071
    %1103 = vmatprep.subr.mxu0 0.0
    %1104 = vmatpush1.msra.mxu0 %v1072
    %1105 = vmatprep.subr.mxu0 0.0
    %1106 = vmatpush1.msra.mxu0 0.0
    %1107 = vmatprep.subr.mxu0 0.0
    %1108 = vmatpush1.msra.mxu0 0.0
    %1109 = vmatprep.subr.mxu0 0.0
    %1110 = vmatpush1.msra.mxu0 0.0
    %1111 = vmatprep.subr.mxu0 0.0
    %1112 = vmatpush1.msra.mxu0 0.0
    %1113 = vmatprep.subr.mxu0 0.0
    %1114 = vmatpush1.msra.mxu0 0.0
    %1115 = vmatprep.subr.mxu0 0.0
    %1116 = vmatpush1.msra.mxu0 0.0
    %1117 = vmatprep.subr.mxu0 0.0
    %1118 = vmatpush1.msra.mxu0 0.0
    %1119 = vmatprep.subr.mxu0 0.0
    %1120 = vmatpush1.msra.mxu0 0.0
    %1121 = vmatprep.subr.mxu0 0.0
    %1122 = vmatpush1.msra.mxu0 0.0
    %1123 = vmatprep.subr.mxu0 0.0
    %1124 = vmatpush1.msra.mxu0 0.0
    %1125 = vmatprep.subr.mxu0 0.0
    %1126 = vmatpush1.msra.mxu0 0.0
    %1127 = vmatprep.subr.mxu0 0.0
    %1128 = vmatpush1.msra.mxu0 0.0
    %1129 = vmatprep.subr.mxu0 0.0
    %1130 = vmatpush1.msra.mxu0 0.0
    %1131 = vmatprep.subr.mxu0 0.0
    %1132 = vmatpush1.msra.mxu0 0.0
    %1133 = vmatprep.subr.mxu0 0.0
    %1134 = vmatpush1.msra.mxu0 0.0
    %1135 = vmatprep.subr.mxu0 0.0
    %1136 = vmatpush1.msra.mxu0 0.0
    %1137 = vmatprep.mubr.f32.mxu0 0.0
    %1138 = vmatmul.mubr.f32.gmra.mrb[0].mxu0 %v1051
    %v1139 = vpop.f32.mrb[0].mxu0
    %v1140 = vadd.f32 0.0, %v1139
    %v1141 = vpop.f32.mrb[0].mxu0
    %1142 = vmatprep.mubr.f32.mxu0 0.0
    %1143 = vmatmul.mubr.f32.gmra.mrb[0].mxu0 %v1052
    %v1144 = vpop.f32.mrb[0].mxu0
    %v1145 = vadd.f32 0.0, %v1144
    %v1146 = vpop.f32.mrb[0].mxu0
    %1147 = vdwg.mxu0
    %v1148 = vadd.f32 %v294, %v1140
    %v1149 = vadd.f32 %v295, %v1145
    %v1150 = vmul.f32 %v1148, 0.5
    %v1151 = vmul.f32 %v1149, 0.5
    %v1152 = vtanh.pop %v1150
    %v1153 = vtanh.pop %v1151
    %v1154 = vadd.f32 %v1152, 1.0
    %v1155 = vadd.f32 %v1153, 1.0
    %v1156 = vmul.f32 %v1154, 0.5
    %v1157 = vmul.f32 %v1155, 0.5
    %v1158 = vld [vmem:[%s8] sm:$0xff]
    %v1159 = vld [vmem:[%s8 + $0x8] sm:$0xff]
    %v1160 = vld [vmem:[%s8 + $0x10] sm:$0xff]
    %v1161 = vld [vmem:[%s8 + $0x18] sm:$0xff]
    %v1162 = vld [vmem:[%s8 + $0x20] sm:$0xff]
    %v1163 = vld [vmem:[%s8 + $0x28] sm:$0xff]
    %v1164 = vld [vmem:[%s8 + $0x30] sm:$0xff]
    %v1165 = vld [vmem:[%s8 + $0x38] sm:$0xff]
    %v1166 = vld [vmem:[%s8 + $0x40] sm:$0xff]
    %v1167 = vld [vmem:[%s8 + $0x48] sm:$0xff]
    %v1168 = vld [vmem:[%s8 + $0x50] sm:$0xff]
    %v1169 = vld [vmem:[%s8 + $0x58] sm:$0xff]
    %v1170 = vld [vmem:[%s8 + $0x60] sm:$0xff]
    %v1171 = vld [vmem:[%s8 + $0x68] sm:$0xff]
    %v1172 = vld [vmem:[%s8 + $0x70] sm:$0xff]
    %v1173 = vld [vmem:[%s8 + $0x78] sm:$0xff]
    %1174 = vmatprep.subr.mxu0 0.0
    %1175 = vmatpush1.msra.mxu0 %v1158
    %1176 = vmatprep.subr.mxu0 0.0
    %1177 = vmatpush1.msra.mxu0 %v1159
    %1178 = vmatprep.subr.mxu0 0.0
    %1179 = vmatpush1.msra.mxu0 %v1160
    %1180 = vmatprep.subr.mxu0 0.0
    %1181 = vmatpush1.msra.mxu0 %v1161
    %1182 = vmatprep.subr.mxu0 0.0
    %1183 = vmatpush1.msra.mxu0 %v1162
    %1184 = vmatprep.subr.mxu0 0.0
    %1185 = vmatpush1.msra.mxu0 %v1163
    %1186 = vmatprep.subr.mxu0 0.0
    %1187 = vmatpush1.msra.mxu0 %v1164
    %1188 = vmatprep.subr.mxu0 0.0
    %1189 = vmatpush1.msra.mxu0 %v1165
    %1190 = vmatprep.subr.mxu0 0.0
    %1191 = vmatpush1.msra.mxu0 %v1166
    %1192 = vmatprep.subr.mxu0 0.0
    %1193 = vmatpush1.msra.mxu0 %v1167
    %1194 = vmatprep.subr.mxu0 0.0
    %1195 = vmatpush1.msra.mxu0 %v1168
    %1196 = vmatprep.subr.mxu0 0.0
    %1197 = vmatpush1.msra.mxu0 %v1169
    %1198 = vmatprep.subr.mxu0 0.0
    %1199 = vmatpush1.msra.mxu0 %v1170
    %1200 = vmatprep.subr.mxu0 0.0
    %1201 = vmatpush1.msra.mxu0 %v1171
    %1202 = vmatprep.subr.mxu0 0.0
    %1203 = vmatpush1.msra.mxu0 %v1172
    %1204 = vmatprep.subr.mxu0 0.0
    %1205 = vmatpush1.msra.mxu0 %v1173
    %1206 = vmatprep.subr.mxu0 0.0
    %1207 = vmatpush1.msra.mxu0 0.0
    %1208 = vmatprep.subr.mxu0 0.0
    %1209 = vmatpush1.msra.mxu0 0.0
    %1210 = vmatprep.subr.mxu0 0.0
    %1211 = vmatpush1.msra.mxu0 0.0
    %1212 = vmatprep.subr.mxu0 0.0
    %1213 = vmatpush1.msra.mxu0 0.0
    %1214 = vmatprep.subr.mxu0 0.0
    %1215 = vmatpush1.msra.mxu0 0.0
    %1216 = vmatprep.subr.mxu0 0.0
    %1217 = vmatpush1.msra.mxu0 0.0
    %1218 = vmatprep.subr.mxu0 0.0
    %1219 = vmatpush1.msra.mxu0 0.0
    %1220 = vmatprep.subr.mxu0 0.0
    %1221 = vmatpush1.msra.mxu0 0.0
    %1222 = vmatprep.subr.mxu0 0.0
    %1223 = vmatpush1.msra.mxu0 0.0
    %1224 = vmatprep.subr.mxu0 0.0
    %1225 = vmatpush1.msra.mxu0 0.0
    %1226 = vmatprep.subr.mxu0 0.0
    %1227 = vmatpush1.msra.mxu0 0.0
    %1228 = vmatprep.subr.mxu0 0.0
    %1229 = vmatpush1.msra.mxu0 0.0
    %1230 = vmatprep.subr.mxu0 0.0
    %1231 = vmatpush1.msra.mxu0 0.0
    %1232 = vmatprep.subr.mxu0 0.0
    %1233 = vmatpush1.msra.mxu0 0.0
    %1234 = vmatprep.subr.mxu0 0.0
    %1235 = vmatpush1.msra.mxu0 0.0
    %1236 = vmatprep.subr.mxu0 0.0
    %1237 = vmatpush1.msra.mxu0 0.0
    %1238 = vmatprep.mubr.f32.mxu0 0.0
    %1239 = vmatmul.mubr.f32.gmra.mrb[0].mxu0 %v1055
    %v1240 = vpop.f32.mrb[0].mxu0
    %v1241 = vadd.f32 0.0, %v1240
    %v1242 = vpop.f32.mrb[0].mxu0
    %1243 = vmatprep.mubr.f32.mxu0 0.0
    %1244 = vmatmul.mubr.f32.gmra.mrb[0].mxu0 %v1056
    %v1245 = vpop.f32.mrb[0].mxu0
    %v1246 = vadd.f32 0.0, %v1245
    %v1247 = vpop.f32.mrb[0].mxu0
    %1248 = vdwg.mxu0
    %v1249 = vadd.f32 %v296, %v1241
    %v1250 = vadd.f32 %v297, %v1246
    %v1251 = vtanh.pop %v1249
    %v1252 = vtanh.pop %v1250
    %v1253 = vsub.f32 1.0, %v1156
    %v1254 = vsub.f32 1.0, %v1157
    %v1255 = vmul.f32 %v1253, %v1051
    %v1256 = vmul.f32 %v1254, %v1052
    %v1257 = vmul.f32 %v1156, %v1251
    %v1258 = vmul.f32 %v1157, %v1252
    %v1259 = vadd.f32 %v1255, %v1257
    %v1260 = vadd.f32 %v1256, %v1258
    %s1261 = scalar_lea.vmem [#allocation3], 16
    %1262 = vst [vmem:[%s1261] sm:$0xff] %v1259
    %1263 = vst [vmem:[%s1261 + $0x8] sm:$0xff] %v1260
    %1264 = vst [vmem:[%s1261] sm:$0x1] 0.0
    %v1265 = vld [vmem:[%s1261] sm:$0xff]
    %v1266 = vld [vmem:[%s1261 + $0x8] sm:$0xff]
    %v1267 = vld [vmem:[#allocation2] sm:$0xff]
    %v1268 = vld [vmem:[#allocation2 + $0x18] sm:$0xff]
    %v1269 = vld [vmem:[#allocation2 + $0x10] sm:$0xff]
    %v1270 = vld [vmem:[#allocation2 + $0x28] sm:$0xff]
    %v1271 = vld [vmem:[#allocation2 + $0x8] sm:$0xff]
    %v1272 = vld [vmem:[#allocation2 + $0x20] sm:$0xff]
    %v1273 = vld [vmem:[%s2] sm:$0xff]
    %v1274 = vld [vmem:[%s2 + $0x8] sm:$0xff]
    %1275 = vset.pattern.permute.xlu0 0
    %1276 = vperm.xlu0 %1275, %v1273
    %v1277 = vpop.permute.xlu0 %1276
    %1278 = vset.pattern.permute.xlu0 0
    %1279 = vperm.xlu0 %1278, %v1274
    %v1280 = vpop.permute.xlu0 %1279
    %vm1281 = vcmp.eq.s32.totalorder %v303, %v1277
    %vm1282 = vcmp.eq.s32.totalorder %v303, %v1280
    %v1283 = vsel %vm1281, 1, 0
    %v1284 = vsel %vm1282, 1, 0
    %v1285 = vcvt.s32.f32 %v1283
    %v1286 = vcvt.s32.f32 %v1284
    %v1288 = vsel %vm316, %v1285, 0
    %v1291 = vsel %vm316, %v1286, 0
    %1293 = vmatprep.subr.mxu0 0.0
    %1294 = vmatpush1.msra.mxu0 %v1265
    %1295 = vmatprep.subr.mxu0 0.0
    %1296 = vmatpush1.msra.mxu0 %v1266
    %1297 = vmatprep.subr.mxu0 0.0
    %1298 = vmatpush1.msra.mxu0 0.0
    %1299 = vmatprep.subr.mxu0 0.0
    %1300 = vmatpush1.msra.mxu0 0.0
    %1301 = vmatprep.subr.mxu0 0.0
    %1302 = vmatpush1.msra.mxu0 0.0
    %1303 = vmatprep.subr.mxu0 0.0
    %1304 = vmatpush1.msra.mxu0 0.0
    %1305 = vmatprep.subr.mxu0 0.0
    %1306 = vmatpush1.msra.mxu0 0.0
    %1307 = vmatprep.subr.mxu0 0.0
    %1308 = vmatpush1.msra.mxu0 0.0
    %1309 = vmatprep.subr.mxu0 0.0
    %1310 = vmatpush1.msra.mxu0 0.0
    %1311 = vmatprep.subr.mxu0 0.0
    %1312 = vmatpush1.msra.mxu0 0.0
    %1313 = vmatprep.subr.mxu0 0.0
    %1314 = vmatpush1.msra.mxu0 0.0
    %1315 = vmatprep.subr.mxu0 0.0
    %1316 = vmatpush1.msra.mxu0 0.0
    %1317 = vmatprep.subr.mxu0 0.0
    %1318 = vmatpush1.msra.mxu0 0.0
    %1319 = vmatprep.subr.mxu0 0.0
    %1320 = vmatpush1.msra.mxu0 0.0
    %1321 = vmatprep.subr.mxu0 0.0
    %1322 = vmatpush1.msra.mxu0 0.0
    %1323 = vmatprep.subr.mxu0 0.0
    %1324 = vmatpush1.msra.mxu0 0.0
    %1325 = vmatprep.subr.mxu0 0.0
    %1326 = vmatpush1.msra.mxu0 0.0
    %1327 = vmatprep.subr.mxu0 0.0
    %1328 = vmatpush1.msra.mxu0 0.0
    %1329 = vmatprep.subr.mxu0 0.0
    %1330 = vmatpush1.msra.mxu0 0.0
    %1331 = vmatprep.subr.mxu0 0.0
    %1332 = vmatpush1.msra.mxu0 0.0
    %1333 = vmatprep.subr.mxu0 0.0
    %1334 = vmatpush1.msra.mxu0 0.0
    %1335 = vmatprep.subr.mxu0 0.0
    %1336 = vmatpush1.msra.mxu0 0.0
    %1337 = vmatprep.subr.mxu0 0.0
    %1338 = vmatpush1.msra.mxu0 0.0
    %1339 = vmatprep.subr.mxu0 0.0
    %1340 = vmatpush1.msra.mxu0 0.0
    %1341 = vmatprep.subr.mxu0 0.0
    %1342 = vmatpush1.msra.mxu0 0.0
    %1343 = vmatprep.subr.mxu0 0.0
    %1344 = vmatpush1.msra.mxu0 0.0
    %1345 = vmatprep.subr.mxu0 0.0
    %1346 = vmatpush1.msra.mxu0 0.0
    %1347 = vmatprep.subr.mxu0 0.0
    %1348 = vmatpush1.msra.mxu0 0.0
    %1349 = vmatprep.subr.mxu0 0.0
    %1350 = vmatpush1.msra.mxu0 0.0
    %1351 = vmatprep.subr.mxu0 0.0
    %1352 = vmatpush1.msra.mxu0 0.0
    %1353 = vmatprep.subr.mxu0 0.0
    %1354 = vmatpush1.msra.mxu0 0.0
    %1355 = vmatprep.subr.mxu0 0.0
    %1356 = vmatpush1.msra.mxu0 0.0
    %1357 = vmatprep.mubr.f32.mxu0 0.0
    %1358 = vmatmul.mubr.f32.gmra.mrb[0].mxu0 %v1288
    %v1359 = vpop.f32.mrb[0].mxu0
    %v1360 = vadd.f32 0.0, %v1359
    %v1361 = vpop.f32.mrb[0].mxu0
    %1362 = vmatprep.mubr.f32.mxu0 0.0
    %1363 = vmatmul.mubr.f32.gmra.mrb[0].mxu0 %v1291
    %v1364 = vpop.f32.mrb[0].mxu0
    %v1365 = vadd.f32 0.0, %v1364
    %v1366 = vpop.f32.mrb[0].mxu0
    %1367 = vdwg.mxu0
    %v1368 = vld [vmem:[%s9] sm:$0xff]
    %v1369 = vld [vmem:[%s9 + $0x8] sm:$0xff]
    %v1370 = vld [vmem:[%s9 + $0x10] sm:$0xff]
    %v1371 = vld [vmem:[%s9 + $0x18] sm:$0xff]
    %v1372 = vld [vmem:[%s9 + $0x20] sm:$0xff]
    %v1373 = vld [vmem:[%s9 + $0x28] sm:$0xff]
    %v1374 = vld [vmem:[%s9 + $0x30] sm:$0xff]
    %v1375 = vld [vmem:[%s9 + $0x38] sm:$0xff]
    %v1376 = vld [vmem:[%s9 + $0x40] sm:$0xff]
    %v1377 = vld [vmem:[%s9 + $0x48] sm:$0xff]
    %v1378 = vld [vmem:[%s9 + $0x50] sm:$0xff]
    %v1379 = vld [vmem:[%s9 + $0x58] sm:$0xff]
    %v1380 = vld [vmem:[%s9 + $0x60] sm:$0xff]
    %v1381 = vld [vmem:[%s9 + $0x68] sm:$0xff]
    %v1382 = vld [vmem:[%s9 + $0x70] sm:$0xff]
    %v1383 = vld [vmem:[%s9 + $0x78] sm:$0xff]
    %1384 = vmatprep.subr.mxu0 0.0
    %1385 = vmatpush1.msra.mxu0 %v1368
    %1386 = vmatprep.subr.mxu0 0.0
    %1387 = vmatpush1.msra.mxu0 %v1369
    %1388 = vmatprep.subr.mxu0 0.0
    %1389 = vmatpush1.msra.mxu0 %v1370
    %1390 = vmatprep.subr.mxu0 0.0
    %1391 = vmatpush1.msra.mxu0 %v1371
    %1392 = vmatprep.subr.mxu0 0.0
    %1393 = vmatpush1.msra.mxu0 %v1372
    %1394 = vmatprep.subr.mxu0 0.0
    %1395 = vmatpush1.msra.mxu0 %v1373
    %1396 = vmatprep.subr.mxu0 0.0
    %1397 = vmatpush1.msra.mxu0 %v1374
    %1398 = vmatprep.subr.mxu0 0.0
    %1399 = vmatpush1.msra.mxu0 %v1375
    %1400 = vmatprep.subr.mxu0 0.0
    %1401 = vmatpush1.msra.mxu0 %v1376
    %1402 = vmatprep.subr.mxu0 0.0
    %1403 = vmatpush1.msra.mxu0 %v1377
    %1404 = vmatprep.subr.mxu0 0.0
    %1405 = vmatpush1.msra.mxu0 %v1378
    %1406 = vmatprep.subr.mxu0 0.0
    %1407 = vmatpush1.msra.mxu0 %v1379
    %1408 = vmatprep.subr.mxu0 0.0
    %1409 = vmatpush1.msra.mxu0 %v1380
    %1410 = vmatprep.subr.mxu0 0.0
    %1411 = vmatpush1.msra.mxu0 %v1381
    %1412 = vmatprep.subr.mxu0 0.0
    %1413 = vmatpush1.msra.mxu0 %v1382
    %1414 = vmatprep.subr.mxu0 0.0
    %1415 = vmatpush1.msra.mxu0 %v1383
    %1416 = vmatprep.subr.mxu0 0.0
    %1417 = vmatpush1.msra.mxu0 0.0
    %1418 = vmatprep.subr.mxu0 0.0
    %1419 = vmatpush1.msra.mxu0 0.0
    %1420 = vmatprep.subr.mxu0 0.0
    %1421 = vmatpush1.msra.mxu0 0.0
    %1422 = vmatprep.subr.mxu0 0.0
    %1423 = vmatpush1.msra.mxu0 0.0
    %1424 = vmatprep.subr.mxu0 0.0
    %1425 = vmatpush1.msra.mxu0 0.0
    %1426 = vmatprep.subr.mxu0 0.0
    %1427 = vmatpush1.msra.mxu0 0.0
    %1428 = vmatprep.subr.mxu0 0.0
    %1429 = vmatpush1.msra.mxu0 0.0
    %1430 = vmatprep.subr.mxu0 0.0
    %1431 = vmatpush1.msra.mxu0 0.0
    %1432 = vmatprep.subr.mxu0 0.0
    %1433 = vmatpush1.msra.mxu0 0.0
    %1434 = vmatprep.subr.mxu0 0.0
    %1435 = vmatpush1.msra.mxu0 0.0
    %1436 = vmatprep.subr.mxu0 0.0
    %1437 = vmatpush1.msra.mxu0 0.0
    %1438 = vmatprep.subr.mxu0 0.0
    %1439 = vmatpush1.msra.mxu0 0.0
    %1440 = vmatprep.subr.mxu0 0.0
    %1441 = vmatpush1.msra.mxu0 0.0
    %1442 = vmatprep.subr.mxu0 0.0
    %1443 = vmatpush1.msra.mxu0 0.0
    %1444 = vmatprep.subr.mxu0 0.0
    %1445 = vmatpush1.msra.mxu0 0.0
    %1446 = vmatprep.subr.mxu0 0.0
    %1447 = vmatpush1.msra.mxu0 0.0
    %1448 = vmatprep.mubr.f32.mxu0 0.0
    %1449 = vmatmul.mubr.f32.gmra.mrb[0].mxu0 %v1360
    %v1450 = vpop.f32.mrb[0].mxu0
    %v1451 = vadd.f32 0.0, %v1450
    %v1452 = vpop.f32.mrb[0].mxu0
    %1453 = vmatprep.mubr.f32.mxu0 0.0
    %1454 = vmatmul.mubr.f32.gmra.mrb[0].mxu0 %v1365
    %v1455 = vpop.f32.mrb[0].mxu0
    %v1456 = vadd.f32 0.0, %v1455
    %v1457 = vpop.f32.mrb[0].mxu0
    %1458 = vdwg.mxu0
    %v1459 = vadd.f32 %v1271, %v1451
    %v1460 = vadd.f32 %v1272, %v1456
    %v1461 = vmul.f32 %v1459, 0.5
    %v1462 = vmul.f32 %v1460, 0.5
    %v1463 = vtanh.pop %v1461
    %v1464 = vtanh.pop %v1462
    %v1465 = vadd.f32 %v1463, 1.0
    %v1466 = vadd.f32 %v1464, 1.0
    %v1467 = vmul.f32 %v1465, 0.5
    %v1468 = vmul.f32 %v1466, 0.5
    %v1469 = vadd.f32 %v1360, 0.0
    %v1470 = vadd.f32 %v1365, 0.0
    %v1471 = vmul.f32 %v1467, %v1360
    %v1472 = vmul.f32 %v1468, %v1365
    %v1473 = vadd.f32 %v1471, 0.0
    %v1474 = vadd.f32 %v1472, 0.0
    %1475 = vset.pattern.permute.xlu0 1
    %1476 = vperm.xlu0 %1475, %v1273
    %v1477 = vpop.permute.xlu0 %1476
    %1478 = vset.pattern.permute.xlu0 1
    %1479 = vperm.xlu0 %1478, %v1274
    %v1480 = vpop.permute.xlu0 %1479
    %vm1481 = vcmp.eq.s32.totalorder %v303, %v1477
    %vm1482 = vcmp.eq.s32.totalorder %v303, %v1480
    %v1483 = vsel %vm1481, 1, 0
    %v1484 = vsel %vm1482, 1, 0
    %v1485 = vcvt.s32.f32 %v1483
    %v1486 = vcvt.s32.f32 %v1484
    %v1488 = vsel %vm316, %v1485, 0
    %v1491 = vsel %vm316, %v1486, 0
    %1493 = vmatprep.subr.mxu0 0.0
    %1494 = vmatpush1.msra.mxu0 %v1265
    %1495 = vmatprep.subr.mxu0 0.0
    %1496 = vmatpush1.msra.mxu0 %v1266
    %1497 = vmatprep.subr.mxu0 0.0
    %1498 = vmatpush1.msra.mxu0 0.0
    %1499 = vmatprep.subr.mxu0 0.0
    %1500 = vmatpush1.msra.mxu0 0.0
    %1501 = vmatprep.subr.mxu0 0.0
    %1502 = vmatpush1.msra.mxu0 0.0
    %1503 = vmatprep.subr.mxu0 0.0
    %1504 = vmatpush1.msra.mxu0 0.0
    %1505 = vmatprep.subr.mxu0 0.0
    %1506 = vmatpush1.msra.mxu0 0.0
    %1507 = vmatprep.subr.mxu0 0.0
    %1508 = vmatpush1.msra.mxu0 0.0
    %1509 = vmatprep.subr.mxu0 0.0
    %1510 = vmatpush1.msra.mxu0 0.0
    %1511 = vmatprep.subr.mxu0 0.0
    %1512 = vmatpush1.msra.mxu0 0.0
    %1513 = vmatprep.subr.mxu0 0.0
    %1514 = vmatpush1.msra.mxu0 0.0
    %1515 = vmatprep.subr.mxu0 0.0
    %1516 = vmatpush1.msra.mxu0 0.0
    %1517 = vmatprep.subr.mxu0 0.0
    %1518 = vmatpush1.msra.mxu0 0.0
    %1519 = vmatprep.subr.mxu0 0.0
    %1520 = vmatpush1.msra.mxu0 0.0
    %1521 = vmatprep.subr.mxu0 0.0
    %1522 = vmatpush1.msra.mxu0 0.0
    %1523 = vmatprep.subr.mxu0 0.0
    %1524 = vmatpush1.msra.mxu0 0.0
    %1525 = vmatprep.subr.mxu0 0.0
    %1526 = vmatpush1.msra.mxu0 0.0
    %1527 = vmatprep.subr.mxu0 0.0
    %1528 = vmatpush1.msra.mxu0 0.0
    %1529 = vmatprep.subr.mxu0 0.0
    %1530 = vmatpush1.msra.mxu0 0.0
    %1531 = vmatprep.subr.mxu0 0.0
    %1532 = vmatpush1.msra.mxu0 0.0
    %1533 = vmatprep.subr.mxu0 0.0
    %1534 = vmatpush1.msra.mxu0 0.0
    %1535 = vmatprep.subr.mxu0 0.0
    %1536 = vmatpush1.msra.mxu0 0.0
    %1537 = vmatprep.subr.mxu0 0.0
    %1538 = vmatpush1.msra.mxu0 0.0
    %1539 = vmatprep.subr.mxu0 0.0
    %1540 = vmatpush1.msra.mxu0 0.0
    %1541 = vmatprep.subr.mxu0 0.0
    %1542 = vmatpush1.msra.mxu0 0.0
    %1543 = vmatprep.subr.mxu0 0.0
    %1544 = vmatpush1.msra.mxu0 0.0
    %1545 = vmatprep.subr.mxu0 0.0
    %1546 = vmatpush1.msra.mxu0 0.0
    %1547 = vmatprep.subr.mxu0 0.0
    %1548 = vmatpush1.msra.mxu0 0.0
    %1549 = vmatprep.subr.mxu0 0.0
    %1550 = vmatpush1.msra.mxu0 0.0
    %1551 = vmatprep.subr.mxu0 0.0
    %1552 = vmatpush1.msra.mxu0 0.0
    %1553 = vmatprep.subr.mxu0 0.0
    %1554 = vmatpush1.msra.mxu0 0.0
    %1555 = vmatprep.subr.mxu0 0.0
    %1556 = vmatpush1.msra.mxu0 0.0
    %1557 = vmatprep.mubr.f32.mxu0 0.0
    %1558 = vmatmul.mubr.f32.gmra.mrb[0].mxu0 %v1488
    %v1559 = vpop.f32.mrb[0].mxu0
    %v1560 = vadd.f32 0.0, %v1559
    %v1561 = vpop.f32.mrb[0].mxu0
    %1562 = vmatprep.mubr.f32.mxu0 0.0
    %1563 = vmatmul.mubr.f32.gmra.mrb[0].mxu0 %v1491
    %v1564 = vpop.f32.mrb[0].mxu0
    %v1565 = vadd.f32 0.0, %v1564
    %v1566 = vpop.f32.mrb[0].mxu0
    %1567 = vdwg.mxu0
    %1568 = vmatprep.subr.mxu0 0.0
    %1569 = vmatpush1.msra.mxu0 %v1368
    %1570 = vmatprep.subr.mxu0 0.0
    %1571 = vmatpush1.msra.mxu0 %v1369
    %1572 = vmatprep.subr.mxu0 0.0
    %1573 = vmatpush1.msra.mxu0 %v1370
    %1574 = vmatprep.subr.mxu0 0.0
    %1575 = vmatpush1.msra.mxu0 %v1371
    %1576 = vmatprep.subr.mxu0 0.0
    %1577 = vmatpush1.msra.mxu0 %v1372
    %1578 = vmatprep.subr.mxu0 0.0
    %1579 = vmatpush1.msra.mxu0 %v1373
    %1580 = vmatprep.subr.mxu0 0.0
    %1581 = vmatpush1.msra.mxu0 %v1374
    %1582 = vmatprep.subr.mxu0 0.0
    %1583 = vmatpush1.msra.mxu0 %v1375
    %1584 = vmatprep.subr.mxu0 0.0
    %1585 = vmatpush1.msra.mxu0 %v1376
    %1586 = vmatprep.subr.mxu0 0.0
    %1587 = vmatpush1.msra.mxu0 %v1377
    %1588 = vmatprep.subr.mxu0 0.0
    %1589 = vmatpush1.msra.mxu0 %v1378
    %1590 = vmatprep.subr.mxu0 0.0
    %1591 = vmatpush1.msra.mxu0 %v1379
    %1592 = vmatprep.subr.mxu0 0.0
    %1593 = vmatpush1.msra.mxu0 %v1380
    %1594 = vmatprep.subr.mxu0 0.0
    %1595 = vmatpush1.msra.mxu0 %v1381
    %1596 = vmatprep.subr.mxu0 0.0
    %1597 = vmatpush1.msra.mxu0 %v1382
    %1598 = vmatprep.subr.mxu0 0.0
    %1599 = vmatpush1.msra.mxu0 %v1383
    %1600 = vmatprep.subr.mxu0 0.0
    %1601 = vmatpush1.msra.mxu0 0.0
    %1602 = vmatprep.subr.mxu0 0.0
    %1603 = vmatpush1.msra.mxu0 0.0
    %1604 = vmatprep.subr.mxu0 0.0
    %1605 = vmatpush1.msra.mxu0 0.0
    %1606 = vmatprep.subr.mxu0 0.0
    %1607 = vmatpush1.msra.mxu0 0.0
    %1608 = vmatprep.subr.mxu0 0.0
    %1609 = vmatpush1.msra.mxu0 0.0
    %1610 = vmatprep.subr.mxu0 0.0
    %1611 = vmatpush1.msra.mxu0 0.0
    %1612 = vmatprep.subr.mxu0 0.0
    %1613 = vmatpush1.msra.mxu0 0.0
    %1614 = vmatprep.subr.mxu0 0.0
    %1615 = vmatpush1.msra.mxu0 0.0
    %1616 = vmatprep.subr.mxu0 0.0
    %1617 = vmatpush1.msra.mxu0 0.0
    %1618 = vmatprep.subr.mxu0 0.0
    %1619 = vmatpush1.msra.mxu0 0.0
    %1620 = vmatprep.subr.mxu0 0.0
    %1621 = vmatpush1.msra.mxu0 0.0
    %1622 = vmatprep.subr.mxu0 0.0
    %1623 = vmatpush1.msra.mxu0 0.0
    %1624 = vmatprep.subr.mxu0 0.0
    %1625 = vmatpush1.msra.mxu0 0.0
    %1626 = vmatprep.subr.mxu0 0.0
    %1627 = vmatpush1.msra.mxu0 0.0
    %1628 = vmatprep.subr.mxu0 0.0
    %1629 = vmatpush1.msra.mxu0 0.0
    %1630 = vmatprep.subr.mxu0 0.0
    %1631 = vmatpush1.msra.mxu0 0.0
    %1632 = vmatprep.mubr.f32.mxu0 0.0
    %1633 = vmatmul.mubr.f32.gmra.mrb[0].mxu0 %v1560
    %v1634 = vpop.f32.mrb[0].mxu0
    %v1635 = vadd.f32 0.0, %v1634
    %v1636 = vpop.f32.mrb[0].mxu0
    %1637 = vmatprep.mubr.f32.mxu0 0.0
    %1638 = vmatmul.mubr.f32.gmra.mrb[0].mxu0 %v1565
    %v1639 = vpop.f32.mrb[0].mxu0
    %v1640 = vadd.f32 0.0, %v1639
    %v1641 = vpop.f32.mrb[0].mxu0
    %1642 = vdwg.mxu0
    %v1643 = vadd.f32 %v1271, %v1635
    %v1644 = vadd.f32 %v1272, %v1640
    %v1645 = vmul.f32 %v1643, 0.5
    %v1646 = vmul.f32 %v1644, 0.5
    %v1647 = vtanh.pop %v1645
    %v1648 = vtanh.pop %v1646
    %v1649 = vadd.f32 %v1647, 1.0
    %v1650 = vadd.f32 %v1648, 1.0
    %v1651 = vmul.f32 %v1649, 0.5
    %v1652 = vmul.f32 %v1650, 0.5
    %v1653 = vadd.f32 %v1469, %v1560
    %v1654 = vadd.f32 %v1470, %v1565
    %v1655 = vmul.f32 %v1651, %v1560
    %v1656 = vmul.f32 %v1652, %v1565
    %v1657 = vadd.f32 %v1473, %v1655
    %v1658 = vadd.f32 %v1474, %v1656
    %1659 = vset.pattern.permute.xlu0 2
    %1660 = vperm.xlu0 %1659, %v1273
    %v1661 = vpop.permute.xlu0 %1660
    %1662 = vset.pattern.permute.xlu0 2
    %1663 = vperm.xlu0 %1662, %v1274
    %v1664 = vpop.permute.xlu0 %1663
    %vm1665 = vcmp.eq.s32.totalorder %v303, %v1661
    %vm1666 = vcmp.eq.s32.totalorder %v303, %v1664
    %v1667 = vsel %vm1665, 1, 0
    %v1668 = vsel %vm1666, 1, 0
    %v1669 = vcvt.s32.f32 %v1667
    %v1670 = vcvt.s32.f32 %v1668
    %v1672 = vsel %vm316, %v1669, 0
    %v1675 = vsel %vm316, %v1670, 0
    %1677 = vmatprep.subr.mxu0 0.0
    %1678 = vmatpush1.msra.mxu0 %v1265
    %1679 = vmatprep.subr.mxu0 0.0
    %1680 = vmatpush1.msra.mxu0 %v1266
    %1681 = vmatprep.subr.mxu0 0.0
    %1682 = vmatpush1.msra.mxu0 0.0
    %1683 = vmatprep.subr.mxu0 0.0
    %1684 = vmatpush1.msra.mxu0 0.0
    %1685 = vmatprep.subr.mxu0 0.0
    %1686 = vmatpush1.msra.mxu0 0.0
    %1687 = vmatprep.subr.mxu0 0.0
    %1688 = vmatpush1.msra.mxu0 0.0
    %1689 = vmatprep.subr.mxu0 0.0
    %1690 = vmatpush1.msra.mxu0 0.0
    %1691 = vmatprep.subr.mxu0 0.0
    %1692 = vmatpush1.msra.mxu0 0.0
    %1693 = vmatprep.subr.mxu0 0.0
    %1694 = vmatpush1.msra.mxu0 0.0
    %1695 = vmatprep.subr.mxu0 0.0
    %1696 = vmatpush1.msra.mxu0 0.0
    %1697 = vmatprep.subr.mxu0 0.0
    %1698 = vmatpush1.msra.mxu0 0.0
    %1699 = vmatprep.subr.mxu0 0.0
    %1700 = vmatpush1.msra.mxu0 0.0
    %1701 = vmatprep.subr.mxu0 0.0
    %1702 = vmatpush1.msra.mxu0 0.0
    %1703 = vmatprep.subr.mxu0 0.0
    %1704 = vmatpush1.msra.mxu0 0.0
    %1705 = vmatprep.subr.mxu0 0.0
    %1706 = vmatpush1.msra.mxu0 0.0
    %1707 = vmatprep.subr.mxu0 0.0
    %1708 = vmatpush1.msra.mxu0 0.0
    %1709 = vmatprep.subr.mxu0 0.0
    %1710 = vmatpush1.msra.mxu0 0.0
    %1711 = vmatprep.subr.mxu0 0.0
    %1712 = vmatpush1.msra.mxu0 0.0
    %1713 = vmatprep.subr.mxu0 0.0
    %1714 = vmatpush1.msra.mxu0 0.0
    %1715 = vmatprep.subr.mxu0 0.0
    %1716 = vmatpush1.msra.mxu0 0.0
    %1717 = vmatprep.subr.mxu0 0.0
    %1718 = vmatpush1.msra.mxu0 0.0
    %1719 = vmatprep.subr.mxu0 0.0
    %1720 = vmatpush1.msra.mxu0 0.0
    %1721 = vmatprep.subr.mxu0 0.0
    %1722 = vmatpush1.msra.mxu0 0.0
    %1723 = vmatprep.subr.mxu0 0.0
    %1724 = vmatpush1.msra.mxu0 0.0
    %1725 = vmatprep.subr.mxu0 0.0
    %1726 = vmatpush1.msra.mxu0 0.0
    %1727 = vmatprep.subr.mxu0 0.0
    %1728 = vmatpush1.msra.mxu0 0.0
    %1729 = vmatprep.subr.mxu0 0.0
    %1730 = vmatpush1.msra.mxu0 0.0
    %1731 = vmatprep.subr.mxu0 0.0
    %1732 = vmatpush1.msra.mxu0 0.0
    %1733 = vmatprep.subr.mxu0 0.0
    %1734 = vmatpush1.msra.mxu0 0.0
    %1735 = vmatprep.subr.mxu0 0.0
    %1736 = vmatpush1.msra.mxu0 0.0
    %1737 = vmatprep.subr.mxu0 0.0
    %1738 = vmatpush1.msra.mxu0 0.0
    %1739 = vmatprep.subr.mxu0 0.0
    %1740 = vmatpush1.msra.mxu0 0.0
    %1741 = vmatprep.mubr.f32.mxu0 0.0
    %1742 = vmatmul.mubr.f32.gmra.mrb[0].mxu0 %v1672
    %v1743 = vpop.f32.mrb[0].mxu0
    %v1744 = vadd.f32 0.0, %v1743
    %v1745 = vpop.f32.mrb[0].mxu0
    %1746 = vmatprep.mubr.f32.mxu0 0.0
    %1747 = vmatmul.mubr.f32.gmra.mrb[0].mxu0 %v1675
    %v1748 = vpop.f32.mrb[0].mxu0
    %v1749 = vadd.f32 0.0, %v1748
    %v1750 = vpop.f32.mrb[0].mxu0
    %1751 = vdwg.mxu0
    %1752 = vmatprep.subr.mxu0 0.0
    %1753 = vmatpush1.msra.mxu0 %v1368
    %1754 = vmatprep.subr.mxu0 0.0
    %1755 = vmatpush1.msra.mxu0 %v1369
    %1756 = vmatprep.subr.mxu0 0.0
    %1757 = vmatpush1.msra.mxu0 %v1370
    %1758 = vmatprep.subr.mxu0 0.0
    %1759 = vmatpush1.msra.mxu0 %v1371
    %1760 = vmatprep.subr.mxu0 0.0
    %1761 = vmatpush1.msra.mxu0 %v1372
    %1762 = vmatprep.subr.mxu0 0.0
    %1763 = vmatpush1.msra.mxu0 %v1373
    %1764 = vmatprep.subr.mxu0 0.0
    %1765 = vmatpush1.msra.mxu0 %v1374
    %1766 = vmatprep.subr.mxu0 0.0
    %1767 = vmatpush1.msra.mxu0 %v1375
    %1768 = vmatprep.subr.mxu0 0.0
    %1769 = vmatpush1.msra.mxu0 %v1376
    %1770 = vmatprep.subr.mxu0 0.0
    %1771 = vmatpush1.msra.mxu0 %v1377
    %1772 = vmatprep.subr.mxu0 0.0
    %1773 = vmatpush1.msra.mxu0 %v1378
    %1774 = vmatprep.subr.mxu0 0.0
    %1775 = vmatpush1.msra.mxu0 %v1379
    %1776 = vmatprep.subr.mxu0 0.0
    %1777 = vmatpush1.msra.mxu0 %v1380
    %1778 = vmatprep.subr.mxu0 0.0
    %1779 = vmatpush1.msra.mxu0 %v1381
    %1780 = vmatprep.subr.mxu0 0.0
    %1781 = vmatpush1.msra.mxu0 %v1382
    %1782 = vmatprep.subr.mxu0 0.0
    %1783 = vmatpush1.msra.mxu0 %v1383
    %1784 = vmatprep.subr.mxu0 0.0
    %1785 = vmatpush1.msra.mxu0 0.0
    %1786 = vmatprep.subr.mxu0 0.0
    %1787 = vmatpush1.msra.mxu0 0.0
    %1788 = vmatprep.subr.mxu0 0.0
    %1789 = vmatpush1.msra.mxu0 0.0
    %1790 = vmatprep.subr.mxu0 0.0
    %1791 = vmatpush1.msra.mxu0 0.0
    %1792 = vmatprep.subr.mxu0 0.0
    %1793 = vmatpush1.msra.mxu0 0.0
    %1794 = vmatprep.subr.mxu0 0.0
    %1795 = vmatpush1.msra.mxu0 0.0
    %1796 = vmatprep.subr.mxu0 0.0
    %1797 = vmatpush1.msra.mxu0 0.0
    %1798 = vmatprep.subr.mxu0 0.0
    %1799 = vmatpush1.msra.mxu0 0.0
    %1800 = vmatprep.subr.mxu0 0.0
    %1801 = vmatpush1.msra.mxu0 0.0
    %1802 = vmatprep.subr.mxu0 0.0
    %1803 = vmatpush1.msra.mxu0 0.0
    %1804 = vmatprep.subr.mxu0 0.0
    %1805 = vmatpush1.msra.mxu0 0.0
    %1806 = vmatprep.subr.mxu0 0.0
    %1807 = vmatpush1.msra.mxu0 0.0
    %1808 = vmatprep.subr.mxu0 0.0
    %1809 = vmatpush1.msra.mxu0 0.0
    %1810 = vmatprep.subr.mxu0 0.0
    %1811 = vmatpush1.msra.mxu0 0.0
    %1812 = vmatprep.subr.mxu0 0.0
    %1813 = vmatpush1.msra.mxu0 0.0
    %1814 = vmatprep.subr.mxu0 0.0
    %1815 = vmatpush1.msra.mxu0 0.0
    %1816 = vmatprep.mubr.f32.mxu0 0.0
    %1817 = vmatmul.mubr.f32.gmra.mrb[0].mxu0 %v1744
    %v1818 = vpop.f32.mrb[0].mxu0
    %v1819 = vadd.f32 0.0, %v1818
    %v1820 = vpop.f32.mrb[0].mxu0
    %1821 = vmatprep.mubr.f32.mxu0 0.0
    %1822 = vmatmul.mubr.f32.gmra.mrb[0].mxu0 %v1749
    %v1823 = vpop.f32.mrb[0].mxu0
    %v1824 = vadd.f32 0.0, %v1823
    %v1825 = vpop.f32.mrb[0].mxu0
    %1826 = vdwg.mxu0
    %v1827 = vadd.f32 %v1271, %v1819
    %v1828 = vadd.f32 %v1272, %v1824
    %v1829 = vmul.f32 %v1827, 0.5
    %v1830 = vmul.f32 %v1828, 0.5
    %v1831 = vtanh.pop %v1829
    %v1832 = vtanh.pop %v1830
    %v1833 = vadd.f32 %v1831, 1.0
    %v1834 = vadd.f32 %v1832, 1.0
    %v1835 = vmul.f32 %v1833, 0.5
    %v1836 = vmul.f32 %v1834, 0.5
    %v1837 = vadd.f32 %v1653, %v1744
    %v1838 = vadd.f32 %v1654, %v1749
    %v1839 = vmul.f32 %v1835, %v1744
    %v1840 = vmul.f32 %v1836, %v1749
    %v1841 = vadd.f32 %v1657, %v1839
    %v1842 = vadd.f32 %v1658, %v1840
    %1843 = vset.pattern.permute.xlu0 3
    %1844 = vperm.xlu0 %1843, %v1273
    %v1845 = vpop.permute.xlu0 %1844
    %1846 = vset.pattern.permute.xlu0 3
    %1847 = vperm.xlu0 %1846, %v1274
    %v1848 = vpop.permute.xlu0 %1847
    %vm1849 = vcmp.eq.s32.totalorder %v303, %v1845
    %vm1850 = vcmp.eq.s32.totalorder %v303, %v1848
    %v1851 = vsel %vm1849, 1, 0
    %v1852 = vsel %vm1850, 1, 0
    %v1853 = vcvt.s32.f32 %v1851
    %v1854 = vcvt.s32.f32 %v1852
    %v1856 = vsel %vm316, %v1853, 0
    %v1859 = vsel %vm316, %v1854, 0
    %1861 = vmatprep.subr.mxu0 0.0
    %1862 = vmatpush1.msra.mxu0 %v1265
    %1863 = vmatprep.subr.mxu0 0.0
    %1864 = vmatpush1.msra.mxu0 %v1266
    %1865 = vmatprep.subr.mxu0 0.0
    %1866 = vmatpush1.msra.mxu0 0.0
    %1867 = vmatprep.subr.mxu0 0.0
    %1868 = vmatpush1.msra.mxu0 0.0
    %1869 = vmatprep.subr.mxu0 0.0
    %1870 = vmatpush1.msra.mxu0 0.0
    %1871 = vmatprep.subr.mxu0 0.0
    %1872 = vmatpush1.msra.mxu0 0.0
    %1873 = vmatprep.subr.mxu0 0.0
    %1874 = vmatpush1.msra.mxu0 0.0
    %1875 = vmatprep.subr.mxu0 0.0
    %1876 = vmatpush1.msra.mxu0 0.0
    %1877 = vmatprep.subr.mxu0 0.0
    %1878 = vmatpush1.msra.mxu0 0.0
    %1879 = vmatprep.subr.mxu0 0.0
    %1880 = vmatpush1.msra.mxu0 0.0
    %1881 = vmatprep.subr.mxu0 0.0
    %1882 = vmatpush1.msra.mxu0 0.0
    %1883 = vmatprep.subr.mxu0 0.0
    %1884 = vmatpush1.msra.mxu0 0.0
    %1885 = vmatprep.subr.mxu0 0.0
    %1886 = vmatpush1.msra.mxu0 0.0
    %1887 = vmatprep.subr.mxu0 0.0
    %1888 = vmatpush1.msra.mxu0 0.0
    %1889 = vmatprep.subr.mxu0 0.0
    %1890 = vmatpush1.msra.mxu0 0.0
    %1891 = vmatprep.subr.mxu0 0.0
    %1892 = vmatpush1.msra.mxu0 0.0
    %1893 = vmatprep.subr.mxu0 0.0
    %1894 = vmatpush1.msra.mxu0 0.0
    %1895 = vmatprep.subr.mxu0 0.0
    %1896 = vmatpush1.msra.mxu0 0.0
    %1897 = vmatprep.subr.mxu0 0.0
    %1898 = vmatpush1.msra.mxu0 0.0
    %1899 = vmatprep.subr.mxu0 0.0
    %1900 = vmatpush1.msra.mxu0 0.0
    %1901 = vmatprep.subr.mxu0 0.0
    %1902 = vmatpush1.msra.mxu0 0.0
    %1903 = vmatprep.subr.mxu0 0.0
    %1904 = vmatpush1.msra.mxu0 0.0
    %1905 = vmatprep.subr.mxu0 0.0
    %1906 = vmatpush1.msra.mxu0 0.0
    %1907 = vmatprep.subr.mxu0 0.0
    %1908 = vmatpush1.msra.mxu0 0.0
    %1909 = vmatprep.subr.mxu0 0.0
    %1910 = vmatpush1.msra.mxu0 0.0
    %1911 = vmatprep.subr.mxu0 0.0
    %1912 = vmatpush1.msra.mxu0 0.0
    %1913 = vmatprep.subr.mxu0 0.0
    %1914 = vmatpush1.msra.mxu0 0.0
    %1915 = vmatprep.subr.mxu0 0.0
    %1916 = vmatpush1.msra.mxu0 0.0
    %1917 = vmatprep.subr.mxu0 0.0
    %1918 = vmatpush1.msra.mxu0 0.0
    %1919 = vmatprep.subr.mxu0 0.0
    %1920 = vmatpush1.msra.mxu0 0.0
    %1921 = vmatprep.subr.mxu0 0.0
    %1922 = vmatpush1.msra.mxu0 0.0
    %1923 = vmatprep.subr.mxu0 0.0
    %1924 = vmatpush1.msra.mxu0 0.0
    %1925 = vmatprep.mubr.f32.mxu0 0.0
    %1926 = vmatmul.mubr.f32.gmra.mrb[0].mxu0 %v1856
    %v1927 = vpop.f32.mrb[0].mxu0
    %v1928 = vadd.f32 0.0, %v1927
    %v1929 = vpop.f32.mrb[0].mxu0
    %1930 = vmatprep.mubr.f32.mxu0 0.0
    %1931 = vmatmul.mubr.f32.gmra.mrb[0].mxu0 %v1859
    %v1932 = vpop.f32.mrb[0].mxu0
    %v1933 = vadd.f32 0.0, %v1932
    %v1934 = vpop.f32.mrb[0].mxu0
    %1935 = vdwg.mxu0
    %1936 = vmatprep.subr.mxu0 0.0
    %1937 = vmatpush1.msra.mxu0 %v1368
    %1938 = vmatprep.subr.mxu0 0.0
    %1939 = vmatpush1.msra.mxu0 %v1369
    %1940 = vmatprep.subr.mxu0 0.0
    %1941 = vmatpush1.msra.mxu0 %v1370
    %1942 = vmatprep.subr.mxu0 0.0
    %1943 = vmatpush1.msra.mxu0 %v1371
    %1944 = vmatprep.subr.mxu0 0.0
    %1945 = vmatpush1.msra.mxu0 %v1372
    %1946 = vmatprep.subr.mxu0 0.0
    %1947 = vmatpush1.msra.mxu0 %v1373
    %1948 = vmatprep.subr.mxu0 0.0
    %1949 = vmatpush1.msra.mxu0 %v1374
    %1950 = vmatprep.subr.mxu0 0.0
    %1951 = vmatpush1.msra.mxu0 %v1375
    %1952 = vmatprep.subr.mxu0 0.0
    %1953 = vmatpush1.msra.mxu0 %v1376
    %1954 = vmatprep.subr.mxu0 0.0
    %1955 = vmatpush1.msra.mxu0 %v1377
    %1956 = vmatprep.subr.mxu0 0.0
    %1957 = vmatpush1.msra.mxu0 %v1378
    %1958 = vmatprep.subr.mxu0 0.0
    %1959 = vmatpush1.msra.mxu0 %v1379
    %1960 = vmatprep.subr.mxu0 0.0
    %1961 = vmatpush1.msra.mxu0 %v1380
    %1962 = vmatprep.subr.mxu0 0.0
    %1963 = vmatpush1.msra.mxu0 %v1381
    %1964 = vmatprep.subr.mxu0 0.0
    %1965 = vmatpush1.msra.mxu0 %v1382
    %1966 = vmatprep.subr.mxu0 0.0
    %1967 = vmatpush1.msra.mxu0 %v1383
    %1968 = vmatprep.subr.mxu0 0.0
    %1969 = vmatpush1.msra.mxu0 0.0
    %1970 = vmatprep.subr.mxu0 0.0
    %1971 = vmatpush1.msra.mxu0 0.0
    %1972 = vmatprep.subr.mxu0 0.0
    %1973 = vmatpush1.msra.mxu0 0.0
    %1974 = vmatprep.subr.mxu0 0.0
    %1975 = vmatpush1.msra.mxu0 0.0
    %1976 = vmatprep.subr.mxu0 0.0
    %1977 = vmatpush1.msra.mxu0 0.0
    %1978 = vmatprep.subr.mxu0 0.0
    %1979 = vmatpush1.msra.mxu0 0.0
    %1980 = vmatprep.subr.mxu0 0.0
    %1981 = vmatpush1.msra.mxu0 0.0
    %1982 = vmatprep.subr.mxu0 0.0
    %1983 = vmatpush1.msra.mxu0 0.0
    %1984 = vmatprep.subr.mxu0 0.0
    %1985 = vmatpush1.msra.mxu0 0.0
    %1986 = vmatprep.subr.mxu0 0.0
    %1987 = vmatpush1.msra.mxu0 0.0
    %1988 = vmatprep.subr.mxu0 0.0
    %1989 = vmatpush1.msra.mxu0 0.0
    %1990 = vmatprep.subr.mxu0 0.0
    %1991 = vmatpush1.msra.mxu0 0.0
    %1992 = vmatprep.subr.mxu0 0.0
    %1993 = vmatpush1.msra.mxu0 0.0
    %1994 = vmatprep.subr.mxu0 0.0
    %1995 = vmatpush1.msra.mxu0 0.0
    %1996 = vmatprep.subr.mxu0 0.0
    %1997 = vmatpush1.msra.mxu0 0.0
    %1998 = vmatprep.subr.mxu0 0.0
    %1999 = vmatpush1.msra.mxu0 0.0
    %2000 = vmatprep.mubr.f32.mxu0 0.0
    %2001 = vmatmul.mubr.f32.gmra.mrb[0].mxu0 %v1928
    %v2002 = vpop.f32.mrb[0].mxu0
    %v2003 = vadd.f32 0.0, %v2002
    %v2004 = vpop.f32.mrb[0].mxu0
    %2005 = vmatprep.mubr.f32.mxu0 0.0
    %2006 = vmatmul.mubr.f32.gmra.mrb[0].mxu0 %v1933
    %v2007 = vpop.f32.mrb[0].mxu0
    %v2008 = vadd.f32 0.0, %v2007
    %v2009 = vpop.f32.mrb[0].mxu0
    %2010 = vdwg.mxu0
    %v2011 = vadd.f32 %v1271, %v2003
    %v2012 = vadd.f32 %v1272, %v2008
    %v2013 = vmul.f32 %v2011, 0.5
    %v2014 = vmul.f32 %v2012, 0.5
    %v2015 = vtanh.pop %v2013
    %v2016 = vtanh.pop %v2014
    %v2017 = vadd.f32 %v2015, 1.0
    %v2018 = vadd.f32 %v2016, 1.0
    %v2019 = vmul.f32 %v2017, 0.5
    %v2020 = vmul.f32 %v2018, 0.5
    %v2021 = vadd.f32 %v1837, %v1928
    %v2022 = vadd.f32 %v1838, %v1933
    %v2023 = vmul.f32 %v2019, %v1928
    %v2024 = vmul.f32 %v2020, %v1933
    %v2025 = vadd.f32 %v1841, %v2023
    %v2026 = vadd.f32 %v1842, %v2024
    %v2027 = vld [vmem:[%s7] sm:$0xff]
    %v2028 = vld [vmem:[%s7 + $0x8] sm:$0xff]
    %v2029 = vld [vmem:[%s7 + $0x10] sm:$0xff]
    %v2030 = vld [vmem:[%s7 + $0x18] sm:$0xff]
    %v2031 = vld [vmem:[%s7 + $0x20] sm:$0xff]
    %v2032 = vld [vmem:[%s7 + $0x28] sm:$0xff]
    %v2033 = vld [vmem:[%s7 + $0x30] sm:$0xff]
    %v2034 = vld [vmem:[%s7 + $0x38] sm:$0xff]
    %v2035 = vld [vmem:[%s7 + $0x40] sm:$0xff]
    %v2036 = vld [vmem:[%s7 + $0x48] sm:$0xff]
    %v2037 = vld [vmem:[%s7 + $0x50] sm:$0xff]
    %v2038 = vld [vmem:[%s7 + $0x58] sm:$0xff]
    %v2039 = vld [vmem:[%s7 + $0x60] sm:$0xff]
    %v2040 = vld [vmem:[%s7 + $0x68] sm:$0xff]
    %v2041 = vld [vmem:[%s7 + $0x70] sm:$0xff]
    %v2042 = vld [vmem:[%s7 + $0x78] sm:$0xff]
    %2043 = vmatprep.subr.mxu0 0.0
    %2044 = vmatpush1.msra.mxu0 %v2027
    %2045 = vmatprep.subr.mxu0 0.0
    %2046 = vmatpush1.msra.mxu0 %v2028
    %2047 = vmatprep.subr.mxu0 0.0
    %2048 = vmatpush1.msra.mxu0 %v2029
    %2049 = vmatprep.subr.mxu0 0.0
    %2050 = vmatpush1.msra.mxu0 %v2030
    %2051 = vmatprep.subr.mxu0 0.0
    %2052 = vmatpush1.msra.mxu0 %v2031
    %2053 = vmatprep.subr.mxu0 0.0
    %2054 = vmatpush1.msra.mxu0 %v2032
    %2055 = vmatprep.subr.mxu0 0.0
    %2056 = vmatpush1.msra.mxu0 %v2033
    %2057 = vmatprep.subr.mxu0 0.0
    %2058 = vmatpush1.msra.mxu0 %v2034
    %2059 = vmatprep.subr.mxu0 0.0
    %2060 = vmatpush1.msra.mxu0 %v2035
    %2061 = vmatprep.subr.mxu0 0.0
    %2062 = vmatpush1.msra.mxu0 %v2036
    %2063 = vmatprep.subr.mxu0 0.0
    %2064 = vmatpush1.msra.mxu0 %v2037
    %2065 = vmatprep.subr.mxu0 0.0
    %2066 = vmatpush1.msra.mxu0 %v2038
    %2067 = vmatprep.subr.mxu0 0.0
    %2068 = vmatpush1.msra.mxu0 %v2039
    %2069 = vmatprep.subr.mxu0 0.0
    %2070 = vmatpush1.msra.mxu0 %v2040
    %2071 = vmatprep.subr.mxu0 0.0
    %2072 = vmatpush1.msra.mxu0 %v2041
    %2073 = vmatprep.subr.mxu0 0.0
    %2074 = vmatpush1.msra.mxu0 %v2042
    %2075 = vmatprep.subr.mxu0 0.0
    %2076 = vmatpush1.msra.mxu0 0.0
    %2077 = vmatprep.subr.mxu0 0.0
    %2078 = vmatpush1.msra.mxu0 0.0
    %2079 = vmatprep.subr.mxu0 0.0
    %2080 = vmatpush1.msra.mxu0 0.0
    %2081 = vmatprep.subr.mxu0 0.0
    %2082 = vmatpush1.msra.mxu0 0.0
    %2083 = vmatprep.subr.mxu0 0.0
    %2084 = vmatpush1.msra.mxu0 0.0
    %2085 = vmatprep.subr.mxu0 0.0
    %2086 = vmatpush1.msra.mxu0 0.0
    %2087 = vmatprep.subr.mxu0 0.0
    %2088 = vmatpush1.msra.mxu0 0.0
    %2089 = vmatprep.subr.mxu0 0.0
    %2090 = vmatpush1.msra.mxu0 0.0
    %2091 = vmatprep.subr.mxu0 0.0
    %2092 = vmatpush1.msra.mxu0 0.0
    %2093 = vmatprep.subr.mxu0 0.0
    %2094 = vmatpush1.msra.mxu0 0.0
    %2095 = vmatprep.subr.mxu0 0.0
    %2096 = vmatpush1.msra.mxu0 0.0
    %2097 = vmatprep.subr.mxu0 0.0
    %2098 = vmatpush1.msra.mxu0 0.0
    %2099 = vmatprep.subr.mxu0 0.0
    %2100 = vmatpush1.msra.mxu0 0.0
    %2101 = vmatprep.subr.mxu0 0.0
    %2102 = vmatpush1.msra.mxu0 0.0
    %2103 = vmatprep.subr.mxu0 0.0
    %2104 = vmatpush1.msra.mxu0 0.0
    %2105 = vmatprep.subr.mxu0 0.0
    %2106 = vmatpush1.msra.mxu0 0.0
    %2107 = vmatprep.mubr.f32.mxu0 0.0
    %2108 = vmatmul.mubr.f32.gmra.mrb[0].mxu0 %v2021
    %v2109 = vpop.f32.mrb[0].mxu0
    %v2110 = vadd.f32 0.0, %v2109
    %v2111 = vpop.f32.mrb[0].mxu0
    %2112 = vmatprep.mubr.f32.mxu0 0.0
    %2113 = vmatmul.mubr.f32.gmra.mrb[0].mxu0 %v2022
    %v2114 = vpop.f32.mrb[0].mxu0
    %v2115 = vadd.f32 0.0, %v2114
    %v2116 = vpop.f32.mrb[0].mxu0
    %2117 = vdwg.mxu0
    %v2118 = vadd.f32 %v1267, %v2110
    %v2119 = vadd.f32 %v1268, %v2115
    %v2120 = vmul.f32 %v2118, 0.5
    %v2121 = vmul.f32 %v2119, 0.5
    %v2122 = vtanh.pop %v2120
    %v2123 = vtanh.pop %v2121
    %v2124 = vadd.f32 %v2122, 1.0
    %v2125 = vadd.f32 %v2123, 1.0
    %v2126 = vmul.f32 %v2124, 0.5
    %v2127 = vmul.f32 %v2125, 0.5
    %v2128 = vld [vmem:[%s8] sm:$0xff]
    %v2129 = vld [vmem:[%s8 + $0x8] sm:$0xff]
    %v2130 = vld [vmem:[%s8 + $0x10] sm:$0xff]
    %v2131 = vld [vmem:[%s8 + $0x18] sm:$0xff]
    %v2132 = vld [vmem:[%s8 + $0x20] sm:$0xff]
    %v2133 = vld [vmem:[%s8 + $0x28] sm:$0xff]
    %v2134 = vld [vmem:[%s8 + $0x30] sm:$0xff]
    %v2135 = vld [vmem:[%s8 + $0x38] sm:$0xff]
    %v2136 = vld [vmem:[%s8 + $0x40] sm:$0xff]
    %v2137 = vld [vmem:[%s8 + $0x48] sm:$0xff]
    %v2138 = vld [vmem:[%s8 + $0x50] sm:$0xff]
    %v2139 = vld [vmem:[%s8 + $0x58] sm:$0xff]
    %v2140 = vld [vmem:[%s8 + $0x60] sm:$0xff]
    %v2141 = vld [vmem:[%s8 + $0x68] sm:$0xff]
    %v2142 = vld [vmem:[%s8 + $0x70] sm:$0xff]
    %v2143 = vld [vmem:[%s8 + $0x78] sm:$0xff]
    %2144 = vmatprep.subr.mxu0 0.0
    %2145 = vmatpush1.msra.mxu0 %v2128
    %2146 = vmatprep.subr.mxu0 0.0
    %2147 = vmatpush1.msra.mxu0 %v2129
    %2148 = vmatprep.subr.mxu0 0.0
    %2149 = vmatpush1.msra.mxu0 %v2130
    %2150 = vmatprep.subr.mxu0 0.0
    %2151 = vmatpush1.msra.mxu0 %v2131
    %2152 = vmatprep.subr.mxu0 0.0
    %2153 = vmatpush1.msra.mxu0 %v2132
    %2154 = vmatprep.subr.mxu0 0.0
    %2155 = vmatpush1.msra.mxu0 %v2133
    %2156 = vmatprep.subr.mxu0 0.0
    %2157 = vmatpush1.msra.mxu0 %v2134
    %2158 = vmatprep.subr.mxu0 0.0
    %2159 = vmatpush1.msra.mxu0 %v2135
    %2160 = vmatprep.subr.mxu0 0.0
    %2161 = vmatpush1.msra.mxu0 %v2136
    %2162 = vmatprep.subr.mxu0 0.0
    %2163 = vmatpush1.msra.mxu0 %v2137
    %2164 = vmatprep.subr.mxu0 0.0
    %2165 = vmatpush1.msra.mxu0 %v2138
    %2166 = vmatprep.subr.mxu0 0.0
    %2167 = vmatpush1.msra.mxu0 %v2139
    %2168 = vmatprep.subr.mxu0 0.0
    %2169 = vmatpush1.msra.mxu0 %v2140
    %2170 = vmatprep.subr.mxu0 0.0
    %2171 = vmatpush1.msra.mxu0 %v2141
    %2172 = vmatprep.subr.mxu0 0.0
    %2173 = vmatpush1.msra.mxu0 %v2142
    %2174 = vmatprep.subr.mxu0 0.0
    %2175 = vmatpush1.msra.mxu0 %v2143
    %2176 = vmatprep.subr.mxu0 0.0
    %2177 = vmatpush1.msra.mxu0 0.0
    %2178 = vmatprep.subr.mxu0 0.0
    %2179 = vmatpush1.msra.mxu0 0.0
    %2180 = vmatprep.subr.mxu0 0.0
    %2181 = vmatpush1.msra.mxu0 0.0
    %2182 = vmatprep.subr.mxu0 0.0
    %2183 = vmatpush1.msra.mxu0 0.0
    %2184 = vmatprep.subr.mxu0 0.0
    %2185 = vmatpush1.msra.mxu0 0.0
    %2186 = vmatprep.subr.mxu0 0.0
    %2187 = vmatpush1.msra.mxu0 0.0
    %2188 = vmatprep.subr.mxu0 0.0
    %2189 = vmatpush1.msra.mxu0 0.0
    %2190 = vmatprep.subr.mxu0 0.0
    %2191 = vmatpush1.msra.mxu0 0.0
    %2192 = vmatprep.subr.mxu0 0.0
    %2193 = vmatpush1.msra.mxu0 0.0
    %2194 = vmatprep.subr.mxu0 0.0
    %2195 = vmatpush1.msra.mxu0 0.0
    %2196 = vmatprep.subr.mxu0 0.0
    %2197 = vmatpush1.msra.mxu0 0.0
    %2198 = vmatprep.subr.mxu0 0.0
    %2199 = vmatpush1.msra.mxu0 0.0
    %2200 = vmatprep.subr.mxu0 0.0
    %2201 = vmatpush1.msra.mxu0 0.0
    %2202 = vmatprep.subr.mxu0 0.0
    %2203 = vmatpush1.msra.mxu0 0.0
    %2204 = vmatprep.subr.mxu0 0.0
    %2205 = vmatpush1.msra.mxu0 0.0
    %2206 = vmatprep.subr.mxu0 0.0
    %2207 = vmatpush1.msra.mxu0 0.0
    %2208 = vmatprep.mubr.f32.mxu0 0.0
    %2209 = vmatmul.mubr.f32.gmra.mrb[0].mxu0 %v2025
    %v2210 = vpop.f32.mrb[0].mxu0
    %v2211 = vadd.f32 0.0, %v2210
    %v2212 = vpop.f32.mrb[0].mxu0
    %2213 = vmatprep.mubr.f32.mxu0 0.0
    %2214 = vmatmul.mubr.f32.gmra.mrb[0].mxu0 %v2026
    %v2215 = vpop.f32.mrb[0].mxu0
    %v2216 = vadd.f32 0.0, %v2215
    %v2217 = vpop.f32.mrb[0].mxu0
    %2218 = vdwg.mxu0
    %v2219 = vadd.f32 %v1269, %v2211
    %v2220 = vadd.f32 %v1270, %v2216
    %v2221 = vtanh.pop %v2219
    %v2222 = vtanh.pop %v2220
    %v2223 = vsub.f32 1.0, %v2126
    %v2224 = vsub.f32 1.0, %v2127
    %v2225 = vmul.f32 %v2223, %v2021
    %v2226 = vmul.f32 %v2224, %v2022
    %v2227 = vmul.f32 %v2126, %v2221
    %v2228 = vmul.f32 %v2127, %v2222
    %v2229 = vadd.f32 %v2225, %v2227
    %v2230 = vadd.f32 %v2226, %v2228
    %2231 = vst [vmem:[#allocation6] sm:$0xff] %v2229
    %2232 = vst [vmem:[#allocation6 + $0x8] sm:$0xff] %v2230
    %2233 = vst [vmem:[#allocation6] sm:$0x1] 0.0
    %v2234 = vld [vmem:[#allocation6] sm:$0xff]
    %v2235 = vld [vmem:[#allocation6 + $0x8] sm:$0xff]
    %v2236 = vld [vmem:[%s3] sm:$0xff]
    %2237 = vset.pattern.permute.xlu0 0
    %2238 = vperm.xlu0 %2237, %v2236
    %v2239 = vpop.permute.xlu0 %2238
    %vm2240 = vcmp.eq.s32.totalorder %v303, %v2239
    %v2241 = vsel %vm2240, 1, 0
    %v2242 = vcvt.s32.f32 %v2241
    %v2243 = vadd.f32 %v2242, 0.0
    %2244 = vset.pattern.permute.xlu0 1
    %2245 = vperm.xlu0 %2244, %v2236
    %v2246 = vpop.permute.xlu0 %2245
    %vm2247 = vcmp.eq.s32.totalorder %v303, %v2246
    %v2248 = vsel %vm2247, 1, 0
    %v2249 = vcvt.s32.f32 %v2248
    %v2250 = vadd.f32 %v2243, %v2249
    %2251 = vset.pattern.permute.xlu0 2
    %2252 = vperm.xlu0 %2251, %v2236
    %v2253 = vpop.permute.xlu0 %2252
    %vm2254 = vcmp.eq.s32.totalorder %v303, %v2253
    %v2255 = vsel %vm2254, 1, 0
    %v2256 = vcvt.s32.f32 %v2255
    %v2257 = vadd.f32 %v2250, %v2256
    %2258 = vset.pattern.permute.xlu0 3
    %2259 = vperm.xlu0 %2258, %v2236
    %v2260 = vpop.permute.xlu0 %2259
    %vm2261 = vcmp.eq.s32.totalorder %v303, %v2260
    %v2262 = vsel %vm2261, 1, 0
    %v2263 = vcvt.s32.f32 %v2262
    %v2264 = vadd.f32 %v2257, %v2263
    %v2266 = vsel %vm316, %v2264, 0
    %2268 = vmatprep.subr.mxu0 0.0
    %2269 = vmatpush1.msra.mxu0 %v2234
    %2270 = vmatprep.subr.mxu0 0.0
    %2271 = vmatpush1.msra.mxu0 %v2235
    %2272 = vmatprep.subr.mxu0 0.0
    %2273 = vmatpush1.msra.mxu0 0.0
    %2274 = vmatprep.subr.mxu0 0.0
    %2275 = vmatpush1.msra.mxu0 0.0
    %2276 = vmatprep.subr.mxu0 0.0
    %2277 = vmatpush1.msra.mxu0 0.0
    %2278 = vmatprep.subr.mxu0 0.0
    %2279 = vmatpush1.msra.mxu0 0.0
    %2280 = vmatprep.subr.mxu0 0.0
    %2281 = vmatpush1.msra.mxu0 0.0
    %2282 = vmatprep.subr.mxu0 0.0
    %2283 = vmatpush1.msra.mxu0 0.0
    %2284 = vmatprep.subr.mxu0 0.0
    %2285 = vmatpush1.msra.mxu0 0.0
    %2286 = vmatprep.subr.mxu0 0.0
    %2287 = vmatpush1.msra.mxu0 0.0
    %2288 = vmatprep.subr.mxu0 0.0
    %2289 = vmatpush1.msra.mxu0 0.0
    %2290 = vmatprep.subr.mxu0 0.0
    %2291 = vmatpush1.msra.mxu0 0.0
    %2292 = vmatprep.subr.mxu0 0.0
    %2293 = vmatpush1.msra.mxu0 0.0
    %2294 = vmatprep.subr.mxu0 0.0
    %2295 = vmatpush1.msra.mxu0 0.0
    %2296 = vmatprep.subr.mxu0 0.0
    %2297 = vmatpush1.msra.mxu0 0.0
    %2298 = vmatprep.subr.mxu0 0.0
    %2299 = vmatpush1.msra.mxu0 0.0
    %2300 = vmatprep.subr.mxu0 0.0
    %2301 = vmatpush1.msra.mxu0 0.0
    %2302 = vmatprep.subr.mxu0 0.0
    %2303 = vmatpush1.msra.mxu0 0.0
    %2304 = vmatprep.subr.mxu0 0.0
    %2305 = vmatpush1.msra.mxu0 0.0
    %2306 = vmatprep.subr.mxu0 0.0
    %2307 = vmatpush1.msra.mxu0 0.0
    %2308 = vmatprep.subr.mxu0 0.0
    %2309 = vmatpush1.msra.mxu0 0.0
    %2310 = vmatprep.subr.mxu0 0.0
    %2311 = vmatpush1.msra.mxu0 0.0
    %2312 = vmatprep.subr.mxu0 0.0
    %2313 = vmatpush1.msra.mxu0 0.0
    %2314 = vmatprep.subr.mxu0 0.0
    %2315 = vmatpush1.msra.mxu0 0.0
    %2316 = vmatprep.subr.mxu0 0.0
    %2317 = vmatpush1.msra.mxu0 0.0
    %2318 = vmatprep.subr.mxu0 0.0
    %2319 = vmatpush1.msra.mxu0 0.0
    %2320 = vmatprep.subr.mxu0 0.0
    %2321 = vmatpush1.msra.mxu0 0.0
    %2322 = vmatprep.subr.mxu0 0.0
    %2323 = vmatpush1.msra.mxu0 0.0
    %2324 = vmatprep.subr.mxu0 0.0
    %2325 = vmatpush1.msra.mxu0 0.0
    %2326 = vmatprep.subr.mxu0 0.0
    %2327 = vmatpush1.msra.mxu0 0.0
    %2328 = vmatprep.subr.mxu0 0.0
    %2329 = vmatpush1.msra.mxu0 0.0
    %2330 = vmatprep.subr.mxu0 0.0
    %2331 = vmatpush1.msra.mxu0 0.0
    %2332 = vmatprep.mubr.f32.mxu0 0.0
    %2333 = vmatmul.mubr.f32.gmra.mrb[0].mxu0 %v2266
    %v2334 = vpop.f32.mrb[0].mxu0
    %v2335 = vadd.f32 0.0, %v2334
    %v2336 = vpop.f32.mrb[0].mxu0
    %2337 = vdwg.mxu0
    %v2338 = vld [vmem:[%s1] sm:$0xff]
    %v2339 = vld [vmem:[%s10] sm:$0xff]
    %v2340 = vld [vmem:[%s10 + $0x8] sm:$0xff]
    %v2341 = vld [vmem:[%s10 + $0x10] sm:$0xff]
    %v2342 = vld [vmem:[%s10 + $0x18] sm:$0xff]
    %v2343 = vld [vmem:[%s10 + $0x20] sm:$0xff]
    %v2344 = vld [vmem:[%s10 + $0x28] sm:$0xff]
    %v2345 = vld [vmem:[%s10 + $0x30] sm:$0xff]
    %v2346 = vld [vmem:[%s10 + $0x38] sm:$0xff]
    %v2347 = vld [vmem:[%s10 + $0x40] sm:$0xff]
    %v2348 = vld [vmem:[%s10 + $0x48] sm:$0xff]
    %v2349 = vld [vmem:[%s10 + $0x50] sm:$0xff]
    %v2350 = vld [vmem:[%s10 + $0x58] sm:$0xff]
    %v2351 = vld [vmem:[%s10 + $0x60] sm:$0xff]
    %v2352 = vld [vmem:[%s10 + $0x68] sm:$0xff]
    %v2353 = vld [vmem:[%s10 + $0x70] sm:$0xff]
    %v2354 = vld [vmem:[%s10 + $0x78] sm:$0xff]
    %v2355 = vld [vmem:[%s11] sm:$0xff]
    %v2356 = vld [vmem:[%s11 + $0x8] sm:$0xff]
    %v2357 = vld [vmem:[%s11 + $0x10] sm:$0xff]
    %v2358 = vld [vmem:[%s11 + $0x18] sm:$0xff]
    %v2359 = vld [vmem:[%s11 + $0x20] sm:$0xff]
    %v2360 = vld [vmem:[%s11 + $0x28] sm:$0xff]
    %v2361 = vld [vmem:[%s11 + $0x30] sm:$0xff]
    %v2362 = vld [vmem:[%s11 + $0x38] sm:$0xff]
    %v2363 = vld [vmem:[%s11 + $0x40] sm:$0xff]
    %v2364 = vld [vmem:[%s11 + $0x48] sm:$0xff]
    %v2365 = vld [vmem:[%s11 + $0x50] sm:$0xff]
    %v2366 = vld [vmem:[%s11 + $0x58] sm:$0xff]
    %v2367 = vld [vmem:[%s11 + $0x60] sm:$0xff]
    %v2368 = vld [vmem:[%s11 + $0x68] sm:$0xff]
    %v2369 = vld [vmem:[%s11 + $0x70] sm:$0xff]
    %v2370 = vld [vmem:[%s11 + $0x78] sm:$0xff]
    %2371 = vmatprep.subr.mxu0 0.0
    %2372 = vmatpush1.msra.mxu0 %v2355
    %2373 = vmatprep.subr.mxu0 0.0
    %2374 = vmatpush1.msra.mxu0 %v2356
    %2375 = vmatprep.subr.mxu0 0.0
    %2376 = vmatpush1.msra.mxu0 %v2357
    %2377 = vmatprep.subr.mxu0 0.0
    %2378 = vmatpush1.msra.mxu0 %v2358
    %2379 = vmatprep.subr.mxu0 0.0
    %2380 = vmatpush1.msra.mxu0 %v2359
    %2381 = vmatprep.subr.mxu0 0.0
    %2382 = vmatpush1.msra.mxu0 %v2360
    %2383 = vmatprep.subr.mxu0 0.0
    %2384 = vmatpush1.msra.mxu0 %v2361
    %2385 = vmatprep.subr.mxu0 0.0
    %2386 = vmatpush1.msra.mxu0 %v2362
    %2387 = vmatprep.subr.mxu0 0.0
    %2388 = vmatpush1.msra.mxu0 %v2363
    %2389 = vmatprep.subr.mxu0 0.0
    %2390 = vmatpush1.msra.mxu0 %v2364
    %2391 = vmatprep.subr.mxu0 0.0
    %2392 = vmatpush1.msra.mxu0 %v2365
    %2393 = vmatprep.subr.mxu0 0.0
    %2394 = vmatpush1.msra.mxu0 %v2366
    %2395 = vmatprep.subr.mxu0 0.0
    %2396 = vmatpush1.msra.mxu0 %v2367
    %2397 = vmatprep.subr.mxu0 0.0
    %2398 = vmatpush1.msra.mxu0 %v2368
    %2399 = vmatprep.subr.mxu0 0.0
    %2400 = vmatpush1.msra.mxu0 %v2369
    %2401 = vmatprep.subr.mxu0 0.0
    %2402 = vmatpush1.msra.mxu0 %v2370
    %2403 = vmatprep.subr.mxu0 0.0
    %2404 = vmatpush1.msra.mxu0 0.0
    %2405 = vmatprep.subr.mxu0 0.0
    %2406 = vmatpush1.msra.mxu0 0.0
    %2407 = vmatprep.subr.mxu0 0.0
    %2408 = vmatpush1.msra.mxu0 0.0
    %2409 = vmatprep.subr.mxu0 0.0
    %2410 = vmatpush1.msra.mxu0 0.0
    %2411 = vmatprep.subr.mxu0 0.0
    %2412 = vmatpush1.msra.mxu0 0.0
    %2413 = vmatprep.subr.mxu0 0.0
    %2414 = vmatpush1.msra.mxu0 0.0
    %2415 = vmatprep.subr.mxu0 0.0
    %2416 = vmatpush1.msra.mxu0 0.0
    %2417 = vmatprep.subr.mxu0 0.0
    %2418 = vmatpush1.msra.mxu0 0.0
    %2419 = vmatprep.subr.mxu0 0.0
    %2420 = vmatpush1.msra.mxu0 0.0
    %2421 = vmatprep.subr.mxu0 0.0
    %2422 = vmatpush1.msra.mxu0 0.0
    %2423 = vmatprep.subr.mxu0 0.0
    %2424 = vmatpush1.msra.mxu0 0.0
    %2425 = vmatprep.subr.mxu0 0.0
    %2426 = vmatpush1.msra.mxu0 0.0
    %2427 = vmatprep.subr.mxu0 0.0
    %2428 = vmatpush1.msra.mxu0 0.0
    %2429 = vmatprep.subr.mxu0 0.0
    %2430 = vmatpush1.msra.mxu0 0.0
    %2431 = vmatprep.subr.mxu0 0.0
    %2432 = vmatpush1.msra.mxu0 0.0
    %2433 = vmatprep.subr.mxu0 0.0
    %2434 = vmatpush1.msra.mxu0 0.0
    %2435 = vmatprep.mubr.f32.mxu0 0.0
    %2436 = vmatmul.mubr.f32.gmra.mrb[0].mxu0 %v2335
    %v2437 = vpop.f32.mrb[0].mxu0
    %v2438 = vadd.f32 0.0, %v2437
    %v2439 = vpop.f32.mrb[0].mxu0
    %2440 = vdwg.mxu0
    %2441 = vmatprep.subr.mxu0 0.0
    %2442 = vmatpush1.msra.mxu0 %v2339
    %2443 = vmatprep.subr.mxu0 0.0
    %2444 = vmatpush1.msra.mxu0 %v2340
    %2445 = vmatprep.subr.mxu0 0.0
    %2446 = vmatpush1.msra.mxu0 %v2341
    %2447 = vmatprep.subr.mxu0 0.0
    %2448 = vmatpush1.msra.mxu0 %v2342
    %2449 = vmatprep.subr.mxu0 0.0
    %2450 = vmatpush1.msra.mxu0 %v2343
    %2451 = vmatprep.subr.mxu0 0.0
    %2452 = vmatpush1.msra.mxu0 %v2344
    %2453 = vmatprep.subr.mxu0 0.0
    %2454 = vmatpush1.msra.mxu0 %v2345
    %2455 = vmatprep.subr.mxu0 0.0
    %2456 = vmatpush1.msra.mxu0 %v2346
    %2457 = vmatprep.subr.mxu0 0.0
    %2458 = vmatpush1.msra.mxu0 %v2347
    %2459 = vmatprep.subr.mxu0 0.0
    %2460 = vmatpush1.msra.mxu0 %v2348
    %2461 = vmatprep.subr.mxu0 0.0
    %2462 = vmatpush1.msra.mxu0 %v2349
    %2463 = vmatprep.subr.mxu0 0.0
    %2464 = vmatpush1.msra.mxu0 %v2350
    %2465 = vmatprep.subr.mxu0 0.0
    %2466 = vmatpush1.msra.mxu0 %v2351
    %2467 = vmatprep.subr.mxu0 0.0
    %2468 = vmatpush1.msra.mxu0 %v2352
    %2469 = vmatprep.subr.mxu0 0.0
    %2470 = vmatpush1.msra.mxu0 %v2353
    %2471 = vmatprep.subr.mxu0 0.0
    %2472 = vmatpush1.msra.mxu0 %v2354
    %2473 = vmatprep.subr.mxu0 0.0
    %2474 = vmatpush1.msra.mxu0 0.0
    %2475 = vmatprep.subr.mxu0 0.0
    %2476 = vmatpush1.msra.mxu0 0.0
    %2477 = vmatprep.subr.mxu0 0.0
    %2478 = vmatpush1.msra.mxu0 0.0
    %2479 = vmatprep.subr.mxu0 0.0
    %2480 = vmatpush1.msra.mxu0 0.0
    %2481 = vmatprep.subr.mxu0 0.0
    %2482 = vmatpush1.msra.mxu0 0.0
    %2483 = vmatprep.subr.mxu0 0.0
    %2484 = vmatpush1.msra.mxu0 0.0
    %2485 = vmatprep.subr.mxu0 0.0
    %2486 = vmatpush1.msra.mxu0 0.0
    %2487 = vmatprep.subr.mxu0 0.0
    %2488 = vmatpush1.msra.mxu0 0.0
    %2489 = vmatprep.subr.mxu0 0.0
    %2490 = vmatpush1.msra.mxu0 0.0
    %2491 = vmatprep.subr.mxu0 0.0
    %2492 = vmatpush1.msra.mxu0 0.0
    %2493 = vmatprep.subr.mxu0 0.0
    %2494 = vmatpush1.msra.mxu0 0.0
    %2495 = vmatprep.subr.mxu0 0.0
    %2496 = vmatpush1.msra.mxu0 0.0
    %2497 = vmatprep.subr.mxu0 0.0
    %2498 = vmatpush1.msra.mxu0 0.0
    %2499 = vmatprep.subr.mxu0 0.0
    %2500 = vmatpush1.msra.mxu0 0.0
    %2501 = vmatprep.subr.mxu0 0.0
    %2502 = vmatpush1.msra.mxu0 0.0
    %2503 = vmatprep.subr.mxu0 0.0
    %2504 = vmatpush1.msra.mxu0 0.0
    %2505 = vmatprep.mubr.f32.mxu0 0.0
    %2506 = vmatmul.mubr.f32.gmra.mrb[0].mxu0 %v2338
    %v2507 = vpop.f32.mrb[0].mxu0
    %v2508 = vadd.f32 %v2438, %v2507
    %v2509 = vpop.f32.mrb[0].mxu0
    %2510 = vdwg.mxu0
    %v2511 = vld [vmem:[%s12] sm:$0x1]
    %v2513 = vlaneseq
    %v2514 = vshrl.u32 %v2513, 7
    %v2515 = vsub.s32 0, %v2514
    %v2516 = vrot.slane %v2511, %v2515
    %v2518 = vadd.f32 %v2508, %v2516
    %v2519 = vmul.f32 %v2518, 0.5
    %v2520 = vmul.f32 %v2518, 0.70710677
    %v2521 = vand.u32 2147483647, %v2520
    %v2522 = vmul.f32 %v2521, 0.3275911
    %v2523 = vadd.f32 %v2522, 1.0
    %v2524 = vrcp.pop %v2523
    %v2525 = vmul.f32 1.0, %v2524
    %v2526 = vmul.f32 %v2525, 1.0614054
    %v2527 = vadd.f32 %v2526, -1.4531521
    %v2528 = vmul.f32 %v2527, %v2525
    %v2529 = vadd.f32 %v2528, 1.4214138
    %v2530 = vmul.f32 %v2529, %v2525
    %v2531 = vadd.f32 %v2530, -0.28449672
    %v2532 = vmul.f32 %v2531, %v2525
    %v2533 = vadd.f32 %v2532, 0.2548296
    %v2534 = vmul.f32 %v2533, %v2525
    %v2535 = vsub.f32 0.0, %v2521
    %v2536 = vmul.f32 %v2535, %v2521
    %v2537 = vmul.f32 %v2536, 1.442695
    %v2538 = vpow.pop %v2537
    %v2539 = vmul.f32 %v2534, %v2538
    %v2540 = vsub.f32 1.0, %v2539
    %vm2541 = vcmp.ge.f32.partialorder %v2520, 0.0
    %v2542 = vsub.f32 0.0, %v2540
    %v2543 = vsel %vm2541, %v2540, %v2542
    %v2544 = vadd.f32 %v2543, 1.0
    %v2545 = vmul.f32 %v2519, %v2544
    %v2546 = vld [vmem:[%s4] sm:$0xff]
    %2548 = vset.pattern.permute.xlu0 0
    %2549 = vperm.xlu0 %2548, %v2546
    %v2550 = vpop.permute.xlu0 %2549
    %v2552 = vmul.f32 %v2545, %v2550
    %2553 = vst [vmem:[#allocation4] sm:$0xff] %v2552
    // Predicated region
    $region54: #{dgcn_encoder_forward.1} parent=1 // pred_check
      _
    $region55: #{dgcn_encoder_forward.1} parent=1 // pred_check_branch
      %2555 = sbr.rel (0) target = $region57
    $region56: #{dgcn_encoder_forward.1} parent=1 // pred_region
      %s2557 = ssub.s32 128, 128
      %2558 = vsyncadd [#allocation5], %s2557
      %s2560 = sshll.u32 [#allocation4], 4
      %s2561 = int_to_ptr.vmem [resolvable:$true] %s2560
      %2563 = dma.vmem_to_hbm [thread:$0]  %s2561, 128, %s13, [#allocation5]
    $region57: #{dgcn_encoder_forward.1} parent=1 // pred_fallthru
      _
    // Predicated region
    $region58: #{dgcn_encoder_forward.1} parent=1 // pred_check
      _
    $region59: #{dgcn_encoder_forward.1} parent=1 // pred_check_branch
      %2565 = sbr.rel (0) target = $region61
    $region60: #{dgcn_encoder_forward.1} parent=1 // pred_region
      %s2567 = ssub.s32 256, 256
      %2568 = vsyncadd [#allocation7], %s2567
      %s2569 = sshll.u32 [#allocation6], 4
      %s2570 = int_to_ptr.vmem [resolvable:$true] %s2569
      %2575 = dma.vmem_to_hbm [thread:$0]  %s2570, 256, %s14, [#allocation7], 128, 128, 8
    $region61: #{dgcn_encoder_forward.1} parent=1 // pred_fallthru
      _
    // Predicated region
    $region62: #{dgcn_encoder_forward.1} parent=1 // pred_check
      _
    $region63: #{dgcn_encoder_forward.1} parent=1 // pred_check_branch
      %2577 = sbr.rel (0) target = $region65
    $region64: #{dgcn_encoder_forward.1} parent=1 // pred_region
      %2578 = dma.done [#allocation5], 128
    $region65: #{dgcn_encoder_forward.1} parent=1 // pred_fallthru
      _
    // Predicated region
    $region66: #{dgcn_encoder_forward.1} parent=1 // pred_check
      _
    $region67: #{dgcn_encoder_forward.1} parent=1 // pred_check_branch
      %2580 = sbr.rel (0) target = $region69
    $region68: #{dgcn_encoder_forward.1} parent=1 // pred_region
      %2581 = dma.done [#allocation7], 256
    $region69: #{dgcn_encoder_forward.1} parent=1 // pred_fallthru
      _
    %2582 = vsyncpa [#allocation5], 1
    %2583 = vsyncpa [#allocation7], 1

</llo_original>
